<compile_context>
chip_gen: v7x
topology: tpu7x:2x2x1
jax: 0.10.0
libtpu: 0.0.40
codegen_flags: <defaults>
</compile_context>

<pallas_src>
import functools

import jax
import jax.numpy as jnp
from jax.experimental import pallas as pl
from jax.experimental.pallas import tpu as pltpu


def _round_up(x, m):
    return (x + m - 1) // m * m


# --------------------------- fused forward kernel ---------------------------
def _fused_lstm_fc_kernel(x_ref, w_ref, b_ref, fcw_ref, fcb_ref, out_ref,
                          act_ref, xh_ref, h_ref, c_ref,
                          *, num_layers, hidden_pad, in_pad, seq_len, chunk):
    """Fused multi-layer LSTM + FC.

    Grid axis 0 = time chunks (sequential).

    x_ref   : (Tc, Bp, In_p)        time-major, zero-padded input chunk
    w_ref   : (L, In_p+Hp, 4*Hp)    per-layer concatenated [W_ih; W_hh]^T
    b_ref   : (L, 1, 4*Hp)          per-layer combined bias (b_ih + b_hh)
    fcw_ref : (Hp, Op)              final linear weight (transposed, padded)
    fcb_ref : (1, Op)               final linear bias (padded)
    out_ref : (Bp, Op)              logits (written only on the last chunk)
    act_ref : (Tc, Bp, Hp)  VMEM    inter-layer activations for this chunk
    xh_ref  : (Bp, In_p+Hp) VMEM    fused [input | h] matmul operand
    h_ref   : (L, Bp, Hp)   VMEM    per-layer hidden carry
    c_ref   : (L, Bp, Hp)   VMEM    per-layer cell carry
    """
    L = num_layers
    Hp = hidden_pad
    In_p = in_pad
    Tc = chunk
    Bp = h_ref.shape[1]

    cidx = pl.program_id(0)
    nchunks = pl.num_programs(0)

    @pl.when(cidx == 0)
    def _():
        h_ref[...] = jnp.zeros_like(h_ref)
        c_ref[...] = jnp.zeros_like(c_ref)

    # Only the last chunk can contain padded timesteps.
    need_mask = (seq_len % Tc) != 0

    for l in range(L):  # static layer loop; weights/bias hoisted per layer
        w_l = w_ref[l]                                        # (In_p+Hp, 4Hp)
        b_l = jnp.broadcast_to(b_ref[l], (Bp, 4 * Hp))        # hoisted bcast

        def step(i, carry, l=l, w_l=w_l, b_l=b_l):
            h_prev = h_ref[l]
            c_prev = c_ref[l]

            # Build fused [input | h] operand -> single MXU matmul per step.
            if l == 0:
                xh_ref[:, :In_p] = x_ref[i]
            else:
                xh_ref[:, :Hp] = act_ref[i]
            xh_ref[:, In_p:] = h_prev

            gates = jnp.dot(xh_ref[...], w_l,
                            preferred_element_type=jnp.float32) + b_l

            # PyTorch gate order: i, f, g, o (each lane-aligned Hp slice).
            i_g = jax.nn.sigmoid(gates[:, 0 * Hp:1 * Hp])
            f_g = jax.nn.sigmoid(gates[:, 1 * Hp:2 * Hp])
            g_g = jnp.tanh(gates[:, 2 * Hp:3 * Hp])
            o_g = jax.nn.sigmoid(gates[:, 3 * Hp:4 * Hp])

            c_new = f_g * c_prev + i_g * g_g
            h_new = o_g * jnp.tanh(c_new)

            if need_mask:
                valid = (cidx * Tc + i) < seq_len
                c_new = jnp.where(valid, c_new, c_prev)
                h_new = jnp.where(valid, h_new, h_prev)

            c_ref[l] = c_new
            h_ref[l] = h_new
            if l < L - 1:
                act_ref[i] = h_new   # feed next layer, stays in VMEM
            return carry

        jax.lax.fori_loop(0, Tc, step, 0, unroll=True)

    # Final FC fused in: only the last timestep of the last layer is consumed.
    @pl.when(cidx == nchunks - 1)
    def _():
        out_ref[...] = (
            jnp.dot(h_ref[L - 1], fcw_ref[...],
                    preferred_element_type=jnp.float32)
            + fcb_ref[...]
        )


# ------------------------------ param packing -------------------------------
def pack_params(params):
    """Pack PyTorch-layout params into padded, concatenated kernel operands."""
    hidden_dim = params["lstm"][0]["w_hh"].shape[1]
    input_dim = params["lstm"][0]["w_ih"].shape[1]
    output_dim = params["fc_w"].shape[0]

    Hp = _round_up(hidden_dim, 128)
    Dp = _round_up(input_dim, 128)
    In_p = max(Dp, Hp)
    Op = _round_up(output_dim, 128)

    w_list, b_list = [], []
    for layer in params["lstm"]:
        w_ih, w_hh = layer["w_ih"], layer["w_hh"]           # (4H, Din), (4H, H)
        bias = layer["b_ih"] + layer["b_hh"]                # (4H,)
        Din = w_ih.shape[1]
        H = hidden_dim
        Wc = jnp.zeros((In_p + Hp, 4 * Hp), jnp.float32)
        bc = jnp.zeros((1, 4 * Hp), jnp.float32)
        for g in range(4):
            Wc = Wc.at[:Din, g * Hp:g * Hp + H].set(w_ih[g * H:(g + 1) * H].T)
            Wc = Wc.at[In_p:In_p + H, g * Hp:g * Hp + H].set(
                w_hh[g * H:(g + 1) * H].T)
            bc = bc.at[0, g * Hp:g * Hp + H].set(bias[g * H:(g + 1) * H])
        w_list.append(Wc)
        b_list.append(bc)

    fcw = jnp.zeros((Hp, Op), jnp.float32).at[:hidden_dim, :output_dim].set(
        params["fc_w"].T)
    fcb = jnp.zeros((1, Op), jnp.float32).at[0, :output_dim].set(params["fc_b"])

    return {
        "w": jnp.stack(w_list),    # (L, In_p+Hp, 4*Hp)
        "b": jnp.stack(b_list),    # (L, 1, 4*Hp)
        "fc_w": fcw,               # (Hp, Op)
        "fc_b": fcb,               # (1, Op)
    }


# ------------------------------- forward pass --------------------------------
@functools.partial(jax.jit, static_argnames=("output_dim", "chunk"))
def lstm_classifier_forward(x, packed, output_dim, chunk=16):
    """x: (B, T, input_dim) batch_first, like the PyTorch module."""
    B, T, D = x.shape
    W, bias, fcw, fcb = packed["w"], packed["b"], packed["fc_w"], packed["fc_b"]
    L, InHp, fourHp = W.shape
    Hp = fourHp // 4
    In_p = InHp - Hp
    Op = fcw.shape[1]
    Bp = _round_up(B, 8)

    Tc = min(chunk, T)
    nchunks = pl.cdiv(T, Tc)
    T_pad = nchunks * Tc

    # Time-major, zero-padded input.  (The transpose/pad is one XLA copy of x;
    # for very long sequences it could be folded into the kernel instead.)
    x_t = jnp.transpose(x.astype(jnp.float32), (1, 0, 2))        # (T, B, D)
    x_pad = jnp.zeros((T_pad, Bp, In_p), jnp.float32).at[:T, :B, :D].set(x_t)

    kernel = functools.partial(
        _fused_lstm_fc_kernel,
        num_layers=L, hidden_pad=Hp, in_pad=In_p, seq_len=T, chunk=Tc)

    out = pl.pallas_call(
        kernel,
        out_shape=jax.ShapeDtypeStruct((Bp, Op), jnp.float32),
        grid_spec=pltpu.PrefetchScalarGridSpec(
            num_scalar_prefetch=0,
            grid=(nchunks,),
            in_specs=[
                pl.BlockSpec((Tc, Bp, In_p), lambda c: (c, 0, 0)),
                pl.BlockSpec((L, InHp, fourHp), lambda c: (0, 0, 0)),
                pl.BlockSpec((L, 1, fourHp), lambda c: (0, 0, 0)),
                pl.BlockSpec((Hp, Op), lambda c: (0, 0)),
                pl.BlockSpec((1, Op), lambda c: (0, 0)),
            ],
            out_specs=pl.BlockSpec((Bp, Op), lambda c: (0, 0)),
            scratch_shapes=[
                pltpu.VMEM((Tc, Bp, Hp), jnp.float32),      # inter-layer acts
                pltpu.VMEM((Bp, In_p + Hp), jnp.float32),   # fused [x|h] slab
                pltpu.VMEM((L, Bp, Hp), jnp.float32),       # h carries
                pltpu.VMEM((L, Bp, Hp), jnp.float32),       # c carries
            ],
        ),
        compiler_params=pltpu.CompilerParams(
            dimension_semantics=("arbitrary",),   # time is sequential
        ),
    )(x_pad, W, bias, fcw, fcb)

    return out[:B, :output_dim]


# --------------------------- deterministic params ----------------------------
def init_params(key, input_dim, hidden_dim, output_dim, num_layers):
    params = {"lstm": []}
    k = 1.0 / jnp.sqrt(hidden_dim)
    for layer in range(num_layers):
        in_dim = input_dim if layer == 0 else hidden_dim
        key, k1, k2, k3, k4 = jax.random.split(key, 5)
        params["lstm"].append({
            "w_ih": jax.random.uniform(k1, (4 * hidden_dim, in_dim),
                                       jnp.float32, -k, k),
            "w_hh": jax.random.uniform(k2, (4 * hidden_dim, hidden_dim),
                                       jnp.float32, -k, k),
            "b_ih": jax.random.uniform(k3, (4 * hidden_dim,), jnp.float32, -k, k),
            "b_hh": jax.random.uniform(k4, (4 * hidden_dim,), jnp.float32, -k, k),
        })
    key, k5, k6 = jax.random.split(key, 3)
    params["fc_w"] = jax.random.uniform(k5, (output_dim, hidden_dim),
                                        jnp.float32, -k, k)
    params["fc_b"] = jax.random.uniform(k6, (output_dim,), jnp.float32, -k, k)
    return params


# ----------------------------- pure-JAX reference ----------------------------
def reference_forward(x, params):
    B, T, _ = x.shape
    h_seq = jnp.transpose(x, (1, 0, 2)).astype(jnp.float32)
    for layer in params["lstm"]:
        H = layer["w_hh"].shape[1]
        w_ih_t, w_hh_t = layer["w_ih"].T, layer["w_hh"].T
        bias = layer["b_ih"] + layer["b_hh"]

        def step(carry, x_t, w_ih_t=w_ih_t, w_hh_t=w_hh_t, bias=bias, H=H):
            h, c = carry
            gates = x_t @ w_ih_t + h @ w_hh_t + bias
            i = jax.nn.sigmoid(gates[:, 0 * H:1 * H])
            f = jax.nn.sigmoid(gates[:, 1 * H:2 * H])
            g = jnp.tanh(gates[:, 2 * H:3 * H])
            o = jax.nn.sigmoid(gates[:, 3 * H:4 * H])
            c = f * c + i * g
            h = o * jnp.tanh(c)
            return (h, c), h

        init = (jnp.zeros((B, H), jnp.float32), jnp.zeros((B, H), jnp.float32))
        _, h_seq = jax.lax.scan(step, init, h_seq)
    return h_seq[-1] @ params["fc_w"].T + params["fc_b"]


if __name__ == "__main__":
    batch, seq_len = 2, 8
    input_dim, hidden_dim, output_dim, num_layers = 16, 32, 4, 2

    key = jax.random.PRNGKey(0)
    key, xk = jax.random.split(key)
    x = jax.random.normal(xk, (batch, seq_len, input_dim), jnp.float32)

    params = init_params(key, input_dim, hidden_dim, output_dim, num_layers)
    packed = pack_params(params)

    out = lstm_classifier_forward(x, packed, output_dim=output_dim)
    out = jax.block_until_ready(out)

    ref = reference_forward(x, params)
    assert out.shape == (batch, output_dim)
    assert jnp.allclose(out, ref, atol=1e-3, rtol=1e-3), (out, ref)

    print("KERNEL_OK")
</pallas_src>

<mosaic_0001>
module attributes {stable_mosaic.version = 11 : i64} {
  func.func @_fused_lstm_fc_kernel(%arg0: i32, %arg1: memref<8x8x128xf32, #tpu.memory_space<vmem>>, %arg2: memref<2x256x512xf32, #tpu.memory_space<vmem>>, %arg3: memref<2x1x512xf32, #tpu.memory_space<vmem>>, %arg4: memref<128x128xf32, #tpu.memory_space<vmem>>, %arg5: memref<1x128xf32, #tpu.memory_space<vmem>>, %arg6: memref<8x128xf32, #tpu.memory_space<vmem>>, %arg7: memref<8x8x128xf32, #tpu.memory_space<vmem>>, %arg8: memref<8x256xf32, #tpu.memory_space<vmem>>, %arg9: memref<2x8x128xf32, #tpu.memory_space<vmem>>, %arg10: memref<2x8x128xf32, #tpu.memory_space<vmem>>) attributes {dimension_semantics = [#tpu.dimension_semantics<arbitrary>], iteration_bounds = array<i64: 1>, scalar_prefetch = 0 : i64, scratch_operands = 4 : i64, tpu.core_type = #tpu.core_type<tc>, window_params = [{transform_indices = @transform_0, window_bounds = array<i64: 8, 8, 128>}, {pipeline_mode = #tpu.pipeline_mode<synchronous>, transform_indices = @transform_1, window_bounds = array<i64: 2, 256, 512>}, {pipeline_mode = #tpu.pipeline_mode<synchronous>, transform_indices = @transform_2, window_bounds = array<i64: 2, 1, 512>}, {pipeline_mode = #tpu.pipeline_mode<synchronous>, transform_indices = @transform_3, window_bounds = array<i64: 128, 128>}, {pipeline_mode = #tpu.pipeline_mode<synchronous>, transform_indices = @transform_4, window_bounds = array<i64: 1, 128>}, {pipeline_mode = #tpu.pipeline_mode<synchronous>, transform_indices = @transform_5, window_bounds = array<i64: 8, 128>}]} {
    %c0_i32 = arith.constant 0 : i32
    %0 = arith.cmpi eq, %arg0, %c0_i32 : i32
    %1 = arith.extui %0 : i1 to i32
    %c0_i32_0 = arith.constant 0 : i32
    %2 = arith.cmpi ne, %1, %c0_i32_0 : i32
    scf.if %2 {
      %cst_421 = arith.constant 0.000000e+00 : f32
      %738 = vector.broadcast %cst_421 : f32 to vector<2x8x128xf32>
      %c0_422 = arith.constant 0 : index
      %c0_423 = arith.constant 0 : index
      %c0_424 = arith.constant 0 : index
      %739 = vector.load %arg9[%c0_422, %c0_423, %c0_424] : memref<2x8x128xf32, #tpu.memory_space<vmem>>, vector<2x8x128xf32>
      tpu.vector_store %arg9[%c0_422, %c0_423, %c0_424], %738 {strides = array<i32>} : memref<2x8x128xf32, #tpu.memory_space<vmem>>, vector<2x8x128xf32>,
      %cst_425 = arith.constant 0.000000e+00 : f32
      %740 = vector.broadcast %cst_425 : f32 to vector<2x8x128xf32>
      %c0_426 = arith.constant 0 : index
      %c0_427 = arith.constant 0 : index
      %c0_428 = arith.constant 0 : index
      %741 = vector.load %arg10[%c0_426, %c0_427, %c0_428] : memref<2x8x128xf32, #tpu.memory_space<vmem>>, vector<2x8x128xf32>
      tpu.vector_store %arg10[%c0_426, %c0_427, %c0_428], %740 {strides = array<i32>} : memref<2x8x128xf32, #tpu.memory_space<vmem>>, vector<2x8x128xf32>,
    } else {
    }
    %c0 = arith.constant 0 : index
    %c0_1 = arith.constant 0 : index
    %c0_2 = arith.constant 0 : index
    %3 = vector.load %arg2[%c0, %c0_1, %c0_2] : memref<2x256x512xf32, #tpu.memory_space<vmem>>, vector<1x256x512xf32>
    %4 = vector.shape_cast %3 : vector<1x256x512xf32> to vector<256x512xf32>
    %c0_3 = arith.constant 0 : index
    %c0_4 = arith.constant 0 : index
    %c0_5 = arith.constant 0 : index
    %5 = vector.load %arg3[%c0_3, %c0_4, %c0_5] : memref<2x1x512xf32, #tpu.memory_space<vmem>>, vector<1x1x512xf32>
    %6 = vector.shape_cast %5 : vector<1x1x512xf32> to vector<1x512xf32>
    %7 = vector.shape_cast %6 : vector<1x512xf32> to vector<1x512xf32>
    %8 = vector.broadcast %7 : vector<1x512xf32> to vector<8x512xf32>
    %c0_i32_6 = arith.constant 0 : i32
    %c0_7 = arith.constant 0 : index
    %c0_8 = arith.constant 0 : index
    %c0_9 = arith.constant 0 : index
    %9 = vector.load %arg9[%c0_7, %c0_8, %c0_9] : memref<2x8x128xf32, #tpu.memory_space<vmem>>, vector<1x8x128xf32>
    %10 = vector.shape_cast %9 : vector<1x8x128xf32> to vector<8x128xf32>
    %c0_10 = arith.constant 0 : index
    %c0_11 = arith.constant 0 : index
    %c0_12 = arith.constant 0 : index
    %11 = vector.load %arg10[%c0_10, %c0_11, %c0_12] : memref<2x8x128xf32, #tpu.memory_space<vmem>>, vector<1x8x128xf32>
    %12 = vector.shape_cast %11 : vector<1x8x128xf32> to vector<8x128xf32>
    %13 = arith.index_cast %c0_i32_6 : i32 to index
    %c0_13 = arith.constant 0 : index
    %c0_14 = arith.constant 0 : index
    %14 = vector.load %arg1[%13, %c0_13, %c0_14] : memref<8x8x128xf32, #tpu.memory_space<vmem>>, vector<1x8x128xf32>
    %15 = vector.shape_cast %14 : vector<1x8x128xf32> to vector<8x128xf32>
    %c0_15 = arith.constant 0 : index
    %c0_16 = arith.constant 0 : index
    %16 = vector.load %arg8[%c0_15, %c0_16] : memref<8x256xf32, #tpu.memory_space<vmem>>, vector<8x128xf32>
    tpu.vector_store %arg8[%c0_15, %c0_16], %15 {strides = array<i32>} : memref<8x256xf32, #tpu.memory_space<vmem>>, vector<8x128xf32>,
    %c0_17 = arith.constant 0 : index
    %c128 = arith.constant 128 : index
    %17 = vector.load %arg8[%c0_17, %c128] : memref<8x256xf32, #tpu.memory_space<vmem>>, vector<8x128xf32>
    tpu.vector_store %arg8[%c0_17, %c128], %10 {strides = array<i32>} : memref<8x256xf32, #tpu.memory_space<vmem>>, vector<8x128xf32>,
    %c0_18 = arith.constant 0 : index
    %c0_19 = arith.constant 0 : index
    %18 = vector.load %arg8[%c0_18, %c0_19] : memref<8x256xf32, #tpu.memory_space<vmem>>, vector<8x256xf32>
    %cst = arith.constant dense<0.000000e+00> : vector<8x512xf32>
    %19 = tpu.matmul %18, %4, %cst {dimension_numbers = #tpu.dot_dimension_numbers<[1], [0], [0], [1], [0, 0, 1, 1], [], []>} : vector<8x256xf32>, vector<256x512xf32>, vector<8x512xf32> -> vector<8x512xf32>
    %20 = arith.addf %19, %8 : vector<8x512xf32>
    %21 = vector.extract_strided_slice %20 {offsets = [0, 0], sizes = [8, 128], strides = [1, 1]} : vector<8x512xf32> to vector<8x128xf32>
    %22 = arith.negf %21 : vector<8x128xf32>
    %23 = math.exp %22 : vector<8x128xf32>
    %cst_20 = arith.constant 1.000000e+00 : f32
    %24 = vector.broadcast %cst_20 : f32 to vector<8x128xf32>
    %25 = arith.addf %24, %23 : vector<8x128xf32>
    %26 = arith.divf %24, %25 : vector<8x128xf32>
    %27 = vector.extract_strided_slice %20 {offsets = [0, 128], sizes = [8, 128], strides = [1, 1]} : vector<8x512xf32> to vector<8x128xf32>
    %28 = arith.negf %27 : vector<8x128xf32>
    %29 = math.exp %28 : vector<8x128xf32>
    %cst_21 = arith.constant 1.000000e+00 : f32
    %30 = vector.broadcast %cst_21 : f32 to vector<8x128xf32>
    %31 = arith.addf %30, %29 : vector<8x128xf32>
    %32 = arith.divf %30, %31 : vector<8x128xf32>
    %33 = vector.extract_strided_slice %20 {offsets = [0, 256], sizes = [8, 128], strides = [1, 1]} : vector<8x512xf32> to vector<8x128xf32>
    %34 = math.tanh %33 : vector<8x128xf32>
    %35 = vector.extract_strided_slice %20 {offsets = [0, 384], sizes = [8, 128], strides = [1, 1]} : vector<8x512xf32> to vector<8x128xf32>
    %36 = arith.negf %35 : vector<8x128xf32>
    %37 = math.exp %36 : vector<8x128xf32>
    %cst_22 = arith.constant 1.000000e+00 : f32
    %38 = vector.broadcast %cst_22 : f32 to vector<8x128xf32>
    %39 = arith.addf %38, %37 : vector<8x128xf32>
    %40 = arith.divf %38, %39 : vector<8x128xf32>
    %41 = arith.mulf %32, %12 : vector<8x128xf32>
    %42 = arith.mulf %26, %34 : vector<8x128xf32>
    %43 = arith.addf %41, %42 : vector<8x128xf32>
    %44 = math.tanh %43 : vector<8x128xf32>
    %45 = arith.mulf %40, %44 : vector<8x128xf32>
    %c0_23 = arith.constant 0 : index
    %c0_24 = arith.constant 0 : index
    %c0_25 = arith.constant 0 : index
    %46 = vector.load %arg10[%c0_23, %c0_24, %c0_25] : memref<2x8x128xf32, #tpu.memory_space<vmem>>, vector<1x8x128xf32>
    %47 = vector.shape_cast %46 : vector<1x8x128xf32> to vector<8x128xf32>
    %48 = vector.shape_cast %43 : vector<8x128xf32> to vector<1x8x128xf32>
    tpu.vector_store %arg10[%c0_23, %c0_24, %c0_25], %48 {strides = array<i32>} : memref<2x8x128xf32, #tpu.memory_space<vmem>>, vector<1x8x128xf32>,
    %c0_26 = arith.constant 0 : index
    %c0_27 = arith.constant 0 : index
    %c0_28 = arith.constant 0 : index
    %49 = vector.load %arg9[%c0_26, %c0_27, %c0_28] : memref<2x8x128xf32, #tpu.memory_space<vmem>>, vector<1x8x128xf32>
    %50 = vector.shape_cast %49 : vector<1x8x128xf32> to vector<8x128xf32>
    %51 = vector.shape_cast %45 : vector<8x128xf32> to vector<1x8x128xf32>
    tpu.vector_store %arg9[%c0_26, %c0_27, %c0_28], %51 {strides = array<i32>} : memref<2x8x128xf32, #tpu.memory_space<vmem>>, vector<1x8x128xf32>,
    %52 = arith.index_cast %c0_i32_6 : i32 to index
    %c0_29 = arith.constant 0 : index
    %c0_30 = arith.constant 0 : index
    %53 = vector.load %arg7[%52, %c0_29, %c0_30] : memref<8x8x128xf32, #tpu.memory_space<vmem>>, vector<1x8x128xf32>
    %54 = vector.shape_cast %53 : vector<1x8x128xf32> to vector<8x128xf32>
    %55 = vector.shape_cast %45 : vector<8x128xf32> to vector<1x8x128xf32>
    tpu.vector_store %arg7[%52, %c0_29, %c0_30], %55 {strides = array<i32>} : memref<8x8x128xf32, #tpu.memory_space<vmem>>, vector<1x8x128xf32>,
    %c1_i32 = arith.constant 1 : i32
    %c0_31 = arith.constant 0 : index
    %c0_32 = arith.constant 0 : index
    %c0_33 = arith.constant 0 : index
    %56 = vector.load %arg9[%c0_31, %c0_32, %c0_33] : memref<2x8x128xf32, #tpu.memory_space<vmem>>, vector<1x8x128xf32>
    %57 = vector.shape_cast %56 : vector<1x8x128xf32> to vector<8x128xf32>
    %c0_34 = arith.constant 0 : index
    %c0_35 = arith.constant 0 : index
    %c0_36 = arith.constant 0 : index
    %58 = vector.load %arg10[%c0_34, %c0_35, %c0_36] : memref<2x8x128xf32, #tpu.memory_space<vmem>>, vector<1x8x128xf32>
    %59 = vector.shape_cast %58 : vector<1x8x128xf32> to vector<8x128xf32>
    %60 = arith.index_cast %c1_i32 : i32 to index
    %c0_37 = arith.constant 0 : index
    %c0_38 = arith.constant 0 : index
    %61 = vector.load %arg1[%60, %c0_37, %c0_38] : memref<8x8x128xf32, #tpu.memory_space<vmem>>, vector<1x8x128xf32>
    %62 = vector.shape_cast %61 : vector<1x8x128xf32> to vector<8x128xf32>
    %c0_39 = arith.constant 0 : index
    %c0_40 = arith.constant 0 : index
    %63 = vector.load %arg8[%c0_39, %c0_40] : memref<8x256xf32, #tpu.memory_space<vmem>>, vector<8x128xf32>
    tpu.vector_store %arg8[%c0_39, %c0_40], %62 {strides = array<i32>} : memref<8x256xf32, #tpu.memory_space<vmem>>, vector<8x128xf32>,
    %c0_41 = arith.constant 0 : index
    %c128_42 = arith.constant 128 : index
    %64 = vector.load %arg8[%c0_41, %c128_42] : memref<8x256xf32, #tpu.memory_space<vmem>>, vector<8x128xf32>
    tpu.vector_store %arg8[%c0_41, %c128_42], %57 {strides = array<i32>} : memref<8x256xf32, #tpu.memory_space<vmem>>, vector<8x128xf32>,
    %c0_43 = arith.constant 0 : index
    %c0_44 = arith.constant 0 : index
    %65 = vector.load %arg8[%c0_43, %c0_44] : memref<8x256xf32, #tpu.memory_space<vmem>>, vector<8x256xf32>
    %cst_45 = arith.constant dense<0.000000e+00> : vector<8x512xf32>
    %66 = tpu.matmul %65, %4, %cst_45 {dimension_numbers = #tpu.dot_dimension_numbers<[1], [0], [0], [1], [0, 0, 1, 1], [], []>} : vector<8x256xf32>, vector<256x512xf32>, vector<8x512xf32> -> vector<8x512xf32>
    %67 = arith.addf %66, %8 : vector<8x512xf32>
    %68 = vector.extract_strided_slice %67 {offsets = [0, 0], sizes = [8, 128], strides = [1, 1]} : vector<8x512xf32> to vector<8x128xf32>
    %69 = arith.negf %68 : vector<8x128xf32>
    %70 = math.exp %69 : vector<8x128xf32>
    %cst_46 = arith.constant 1.000000e+00 : f32
    %71 = vector.broadcast %cst_46 : f32 to vector<8x128xf32>
    %72 = arith.addf %71, %70 : vector<8x128xf32>
    %73 = arith.divf %71, %72 : vector<8x128xf32>
    %74 = vector.extract_strided_slice %67 {offsets = [0, 128], sizes = [8, 128], strides = [1, 1]} : vector<8x512xf32> to vector<8x128xf32>
    %75 = arith.negf %74 : vector<8x128xf32>
    %76 = math.exp %75 : vector<8x128xf32>
    %cst_47 = arith.constant 1.000000e+00 : f32
    %77 = vector.broadcast %cst_47 : f32 to vector<8x128xf32>
    %78 = arith.addf %77, %76 : vector<8x128xf32>
    %79 = arith.divf %77, %78 : vector<8x128xf32>
    %80 = vector.extract_strided_slice %67 {offsets = [0, 256], sizes = [8, 128], strides = [1, 1]} : vector<8x512xf32> to vector<8x128xf32>
    %81 = math.tanh %80 : vector<8x128xf32>
    %82 = vector.extract_strided_slice %67 {offsets = [0, 384], sizes = [8, 128], strides = [1, 1]} : vector<8x512xf32> to vector<8x128xf32>
    %83 = arith.negf %82 : vector<8x128xf32>
    %84 = math.exp %83 : vector<8x128xf32>
    %cst_48 = arith.constant 1.000000e+00 : f32
    %85 = vector.broadcast %cst_48 : f32 to vector<8x128xf32>
    %86 = arith.addf %85, %84 : vector<8x128xf32>
    %87 = arith.divf %85, %86 : vector<8x128xf32>
    %88 = arith.mulf %79, %59 : vector<8x128xf32>
    %89 = arith.mulf %73, %81 : vector<8x128xf32>
    %90 = arith.addf %88, %89 : vector<8x128xf32>
    %91 = math.tanh %90 : vector<8x128xf32>
    %92 = arith.mulf %87, %91 : vector<8x128xf32>
    %c0_49 = arith.constant 0 : index
    %c0_50 = arith.constant 0 : index
    %c0_51 = arith.constant 0 : index
    %93 = vector.load %arg10[%c0_49, %c0_50, %c0_51] : memref<2x8x128xf32, #tpu.memory_space<vmem>>, vector<1x8x128xf32>
    %94 = vector.shape_cast %93 : vector<1x8x128xf32> to vector<8x128xf32>
    %95 = vector.shape_cast %90 : vector<8x128xf32> to vector<1x8x128xf32>
    tpu.vector_store %arg10[%c0_49, %c0_50, %c0_51], %95 {strides = array<i32>} : memref<2x8x128xf32, #tpu.memory_space<vmem>>, vector<1x8x128xf32>,
    %c0_52 = arith.constant 0 : index
    %c0_53 = arith.constant 0 : index
    %c0_54 = arith.constant 0 : index
    %96 = vector.load %arg9[%c0_52, %c0_53, %c0_54] : memref<2x8x128xf32, #tpu.memory_space<vmem>>, vector<1x8x128xf32>
    %97 = vector.shape_cast %96 : vector<1x8x128xf32> to vector<8x128xf32>
    %98 = vector.shape_cast %92 : vector<8x128xf32> to vector<1x8x128xf32>
    tpu.vector_store %arg9[%c0_52, %c0_53, %c0_54], %98 {strides = array<i32>} : memref<2x8x128xf32, #tpu.memory_space<vmem>>, vector<1x8x128xf32>,
    %99 = arith.index_cast %c1_i32 : i32 to index
    %c0_55 = arith.constant 0 : index
    %c0_56 = arith.constant 0 : index
    %100 = vector.load %arg7[%99, %c0_55, %c0_56] : memref<8x8x128xf32, #tpu.memory_space<vmem>>, vector<1x8x128xf32>
    %101 = vector.shape_cast %100 : vector<1x8x128xf32> to vector<8x128xf32>
    %102 = vector.shape_cast %92 : vector<8x128xf32> to vector<1x8x128xf32>
    tpu.vector_store %arg7[%99, %c0_55, %c0_56], %102 {strides = array<i32>} : memref<8x8x128xf32, #tpu.memory_space<vmem>>, vector<1x8x128xf32>,
    %c2_i32 = arith.constant 2 : i32
    %c0_57 = arith.constant 0 : index
    %c0_58 = arith.constant 0 : index
    %c0_59 = arith.constant 0 : index
    %103 = vector.load %arg9[%c0_57, %c0_58, %c0_59] : memref<2x8x128xf32, #tpu.memory_space<vmem>>, vector<1x8x128xf32>
    %104 = vector.shape_cast %103 : vector<1x8x128xf32> to vector<8x128xf32>
    %c0_60 = arith.constant 0 : index
    %c0_61 = arith.constant 0 : index
    %c0_62 = arith.constant 0 : index
    %105 = vector.load %arg10[%c0_60, %c0_61, %c0_62] : memref<2x8x128xf32, #tpu.memory_space<vmem>>, vector<1x8x128xf32>
    %106 = vector.shape_cast %105 : vector<1x8x128xf32> to vector<8x128xf32>
    %107 = arith.index_cast %c2_i32 : i32 to index
    %c0_63 = arith.constant 0 : index
    %c0_64 = arith.constant 0 : index
    %108 = vector.load %arg1[%107, %c0_63, %c0_64] : memref<8x8x128xf32, #tpu.memory_space<vmem>>, vector<1x8x128xf32>
    %109 = vector.shape_cast %108 : vector<1x8x128xf32> to vector<8x128xf32>
    %c0_65 = arith.constant 0 : index
    %c0_66 = arith.constant 0 : index
    %110 = vector.load %arg8[%c0_65, %c0_66] : memref<8x256xf32, #tpu.memory_space<vmem>>, vector<8x128xf32>
    tpu.vector_store %arg8[%c0_65, %c0_66], %109 {strides = array<i32>} : memref<8x256xf32, #tpu.memory_space<vmem>>, vector<8x128xf32>,
    %c0_67 = arith.constant 0 : index
    %c128_68 = arith.constant 128 : index
    %111 = vector.load %arg8[%c0_67, %c128_68] : memref<8x256xf32, #tpu.memory_space<vmem>>, vector<8x128xf32>
    tpu.vector_store %arg8[%c0_67, %c128_68], %104 {strides = array<i32>} : memref<8x256xf32, #tpu.memory_space<vmem>>, vector<8x128xf32>,
    %c0_69 = arith.constant 0 : index
    %c0_70 = arith.constant 0 : index
    %112 = vector.load %arg8[%c0_69, %c0_70] : memref<8x256xf32, #tpu.memory_space<vmem>>, vector<8x256xf32>
    %cst_71 = arith.constant dense<0.000000e+00> : vector<8x512xf32>
    %113 = tpu.matmul %112, %4, %cst_71 {dimension_numbers = #tpu.dot_dimension_numbers<[1], [0], [0], [1], [0, 0, 1, 1], [], []>} : vector<8x256xf32>, vector<256x512xf32>, vector<8x512xf32> -> vector<8x512xf32>
    %114 = arith.addf %113, %8 : vector<8x512xf32>
    %115 = vector.extract_strided_slice %114 {offsets = [0, 0], sizes = [8, 128], strides = [1, 1]} : vector<8x512xf32> to vector<8x128xf32>
    %116 = arith.negf %115 : vector<8x128xf32>
    %117 = math.exp %116 : vector<8x128xf32>
    %cst_72 = arith.constant 1.000000e+00 : f32
    %118 = vector.broadcast %cst_72 : f32 to vector<8x128xf32>
    %119 = arith.addf %118, %117 : vector<8x128xf32>
    %120 = arith.divf %118, %119 : vector<8x128xf32>
    %121 = vector.extract_strided_slice %114 {offsets = [0, 128], sizes = [8, 128], strides = [1, 1]} : vector<8x512xf32> to vector<8x128xf32>
    %122 = arith.negf %121 : vector<8x128xf32>
    %123 = math.exp %122 : vector<8x128xf32>
    %cst_73 = arith.constant 1.000000e+00 : f32
    %124 = vector.broadcast %cst_73 : f32 to vector<8x128xf32>
    %125 = arith.addf %124, %123 : vector<8x128xf32>
    %126 = arith.divf %124, %125 : vector<8x128xf32>
    %127 = vector.extract_strided_slice %114 {offsets = [0, 256], sizes = [8, 128], strides = [1, 1]} : vector<8x512xf32> to vector<8x128xf32>
    %128 = math.tanh %127 : vector<8x128xf32>
    %129 = vector.extract_strided_slice %114 {offsets = [0, 384], sizes = [8, 128], strides = [1, 1]} : vector<8x512xf32> to vector<8x128xf32>
    %130 = arith.negf %129 : vector<8x128xf32>
    %131 = math.exp %130 : vector<8x128xf32>
    %cst_74 = arith.constant 1.000000e+00 : f32
    %132 = vector.broadcast %cst_74 : f32 to vector<8x128xf32>
    %133 = arith.addf %132, %131 : vector<8x128xf32>
    %134 = arith.divf %132, %133 : vector<8x128xf32>
    %135 = arith.mulf %126, %106 : vector<8x128xf32>
    %136 = arith.mulf %120, %128 : vector<8x128xf32>
    %137 = arith.addf %135, %136 : vector<8x128xf32>
    %138 = math.tanh %137 : vector<8x128xf32>
    %139 = arith.mulf %134, %138 : vector<8x128xf32>
    %c0_75 = arith.constant 0 : index
    %c0_76 = arith.constant 0 : index
    %c0_77 = arith.constant 0 : index
    %140 = vector.load %arg10[%c0_75, %c0_76, %c0_77] : memref<2x8x128xf32, #tpu.memory_space<vmem>>, vector<1x8x128xf32>
    %141 = vector.shape_cast %140 : vector<1x8x128xf32> to vector<8x128xf32>
    %142 = vector.shape_cast %137 : vector<8x128xf32> to vector<1x8x128xf32>
    tpu.vector_store %arg10[%c0_75, %c0_76, %c0_77], %142 {strides = array<i32>} : memref<2x8x128xf32, #tpu.memory_space<vmem>>, vector<1x8x128xf32>,
    %c0_78 = arith.constant 0 : index
    %c0_79 = arith.constant 0 : index
    %c0_80 = arith.constant 0 : index
    %143 = vector.load %arg9[%c0_78, %c0_79, %c0_80] : memref<2x8x128xf32, #tpu.memory_space<vmem>>, vector<1x8x128xf32>
    %144 = vector.shape_cast %143 : vector<1x8x128xf32> to vector<8x128xf32>
    %145 = vector.shape_cast %139 : vector<8x128xf32> to vector<1x8x128xf32>
    tpu.vector_store %arg9[%c0_78, %c0_79, %c0_80], %145 {strides = array<i32>} : memref<2x8x128xf32, #tpu.memory_space<vmem>>, vector<1x8x128xf32>,
    %146 = arith.index_cast %c2_i32 : i32 to index
    %c0_81 = arith.constant 0 : index
    %c0_82 = arith.constant 0 : index
    %147 = vector.load %arg7[%146, %c0_81, %c0_82] : memref<8x8x128xf32, #tpu.memory_space<vmem>>, vector<1x8x128xf32>
    %148 = vector.shape_cast %147 : vector<1x8x128xf32> to vector<8x128xf32>
    %149 = vector.shape_cast %139 : vector<8x128xf32> to vector<1x8x128xf32>
    tpu.vector_store %arg7[%146, %c0_81, %c0_82], %149 {strides = array<i32>} : memref<8x8x128xf32, #tpu.memory_space<vmem>>, vector<1x8x128xf32>,
    %c3_i32 = arith.constant 3 : i32
    %c0_83 = arith.constant 0 : index
    %c0_84 = arith.constant 0 : index
    %c0_85 = arith.constant 0 : index
    %150 = vector.load %arg9[%c0_83, %c0_84, %c0_85] : memref<2x8x128xf32, #tpu.memory_space<vmem>>, vector<1x8x128xf32>
    %151 = vector.shape_cast %150 : vector<1x8x128xf32> to vector<8x128xf32>
    %c0_86 = arith.constant 0 : index
    %c0_87 = arith.constant 0 : index
    %c0_88 = arith.constant 0 : index
    %152 = vector.load %arg10[%c0_86, %c0_87, %c0_88] : memref<2x8x128xf32, #tpu.memory_space<vmem>>, vector<1x8x128xf32>
    %153 = vector.shape_cast %152 : vector<1x8x128xf32> to vector<8x128xf32>
    %154 = arith.index_cast %c3_i32 : i32 to index
    %c0_89 = arith.constant 0 : index
    %c0_90 = arith.constant 0 : index
    %155 = vector.load %arg1[%154, %c0_89, %c0_90] : memref<8x8x128xf32, #tpu.memory_space<vmem>>, vector<1x8x128xf32>
    %156 = vector.shape_cast %155 : vector<1x8x128xf32> to vector<8x128xf32>
    %c0_91 = arith.constant 0 : index
    %c0_92 = arith.constant 0 : index
    %157 = vector.load %arg8[%c0_91, %c0_92] : memref<8x256xf32, #tpu.memory_space<vmem>>, vector<8x128xf32>
    tpu.vector_store %arg8[%c0_91, %c0_92], %156 {strides = array<i32>} : memref<8x256xf32, #tpu.memory_space<vmem>>, vector<8x128xf32>,
    %c0_93 = arith.constant 0 : index
    %c128_94 = arith.constant 128 : index
    %158 = vector.load %arg8[%c0_93, %c128_94] : memref<8x256xf32, #tpu.memory_space<vmem>>, vector<8x128xf32>
    tpu.vector_store %arg8[%c0_93, %c128_94], %151 {strides = array<i32>} : memref<8x256xf32, #tpu.memory_space<vmem>>, vector<8x128xf32>,
    %c0_95 = arith.constant 0 : index
    %c0_96 = arith.constant 0 : index
    %159 = vector.load %arg8[%c0_95, %c0_96] : memref<8x256xf32, #tpu.memory_space<vmem>>, vector<8x256xf32>
    %cst_97 = arith.constant dense<0.000000e+00> : vector<8x512xf32>
    %160 = tpu.matmul %159, %4, %cst_97 {dimension_numbers = #tpu.dot_dimension_numbers<[1], [0], [0], [1], [0, 0, 1, 1], [], []>} : vector<8x256xf32>, vector<256x512xf32>, vector<8x512xf32> -> vector<8x512xf32>
    %161 = arith.addf %160, %8 : vector<8x512xf32>
    %162 = vector.extract_strided_slice %161 {offsets = [0, 0], sizes = [8, 128], strides = [1, 1]} : vector<8x512xf32> to vector<8x128xf32>
    %163 = arith.negf %162 : vector<8x128xf32>
    %164 = math.exp %163 : vector<8x128xf32>
    %cst_98 = arith.constant 1.000000e+00 : f32
    %165 = vector.broadcast %cst_98 : f32 to vector<8x128xf32>
    %166 = arith.addf %165, %164 : vector<8x128xf32>
    %167 = arith.divf %165, %166 : vector<8x128xf32>
    %168 = vector.extract_strided_slice %161 {offsets = [0, 128], sizes = [8, 128], strides = [1, 1]} : vector<8x512xf32> to vector<8x128xf32>
    %169 = arith.negf %168 : vector<8x128xf32>
    %170 = math.exp %169 : vector<8x128xf32>
    %cst_99 = arith.constant 1.000000e+00 : f32
    %171 = vector.broadcast %cst_99 : f32 to vector<8x128xf32>
    %172 = arith.addf %171, %170 : vector<8x128xf32>
    %173 = arith.divf %171, %172 : vector<8x128xf32>
    %174 = vector.extract_strided_slice %161 {offsets = [0, 256], sizes = [8, 128], strides = [1, 1]} : vector<8x512xf32> to vector<8x128xf32>
    %175 = math.tanh %174 : vector<8x128xf32>
    %176 = vector.extract_strided_slice %161 {offsets = [0, 384], sizes = [8, 128], strides = [1, 1]} : vector<8x512xf32> to vector<8x128xf32>
    %177 = arith.negf %176 : vector<8x128xf32>
    %178 = math.exp %177 : vector<8x128xf32>
    %cst_100 = arith.constant 1.000000e+00 : f32
    %179 = vector.broadcast %cst_100 : f32 to vector<8x128xf32>
    %180 = arith.addf %179, %178 : vector<8x128xf32>
    %181 = arith.divf %179, %180 : vector<8x128xf32>
    %182 = arith.mulf %173, %153 : vector<8x128xf32>
    %183 = arith.mulf %167, %175 : vector<8x128xf32>
    %184 = arith.addf %182, %183 : vector<8x128xf32>
    %185 = math.tanh %184 : vector<8x128xf32>
    %186 = arith.mulf %181, %185 : vector<8x128xf32>
    %c0_101 = arith.constant 0 : index
    %c0_102 = arith.constant 0 : index
    %c0_103 = arith.constant 0 : index
    %187 = vector.load %arg10[%c0_101, %c0_102, %c0_103] : memref<2x8x128xf32, #tpu.memory_space<vmem>>, vector<1x8x128xf32>
    %188 = vector.shape_cast %187 : vector<1x8x128xf32> to vector<8x128xf32>
    %189 = vector.shape_cast %184 : vector<8x128xf32> to vector<1x8x128xf32>
    tpu.vector_store %arg10[%c0_101, %c0_102, %c0_103], %189 {strides = array<i32>} : memref<2x8x128xf32, #tpu.memory_space<vmem>>, vector<1x8x128xf32>,
    %c0_104 = arith.constant 0 : index
    %c0_105 = arith.constant 0 : index
    %c0_106 = arith.constant 0 : index
    %190 = vector.load %arg9[%c0_104, %c0_105, %c0_106] : memref<2x8x128xf32, #tpu.memory_space<vmem>>, vector<1x8x128xf32>
    %191 = vector.shape_cast %190 : vector<1x8x128xf32> to vector<8x128xf32>
    %192 = vector.shape_cast %186 : vector<8x128xf32> to vector<1x8x128xf32>
    tpu.vector_store %arg9[%c0_104, %c0_105, %c0_106], %192 {strides = array<i32>} : memref<2x8x128xf32, #tpu.memory_space<vmem>>, vector<1x8x128xf32>,
    %193 = arith.index_cast %c3_i32 : i32 to index
    %c0_107 = arith.constant 0 : index
    %c0_108 = arith.constant 0 : index
    %194 = vector.load %arg7[%193, %c0_107, %c0_108] : memref<8x8x128xf32, #tpu.memory_space<vmem>>, vector<1x8x128xf32>
    %195 = vector.shape_cast %194 : vector<1x8x128xf32> to vector<8x128xf32>
    %196 = vector.shape_cast %186 : vector<8x128xf32> to vector<1x8x128xf32>
    tpu.vector_store %arg7[%193, %c0_107, %c0_108], %196 {strides = array<i32>} : memref<8x8x128xf32, #tpu.memory_space<vmem>>, vector<1x8x128xf32>,
    %c4_i32 = arith.constant 4 : i32
    %c0_109 = arith.constant 0 : index
    %c0_110 = arith.constant 0 : index
    %c0_111 = arith.constant 0 : index
    %197 = vector.load %arg9[%c0_109, %c0_110, %c0_111] : memref<2x8x128xf32, #tpu.memory_space<vmem>>, vector<1x8x128xf32>
    %198 = vector.shape_cast %197 : vector<1x8x128xf32> to vector<8x128xf32>
    %c0_112 = arith.constant 0 : index
    %c0_113 = arith.constant 0 : index
    %c0_114 = arith.constant 0 : index
    %199 = vector.load %arg10[%c0_112, %c0_113, %c0_114] : memref<2x8x128xf32, #tpu.memory_space<vmem>>, vector<1x8x128xf32>
    %200 = vector.shape_cast %199 : vector<1x8x128xf32> to vector<8x128xf32>
    %201 = arith.index_cast %c4_i32 : i32 to index
    %c0_115 = arith.constant 0 : index
    %c0_116 = arith.constant 0 : index
    %202 = vector.load %arg1[%201, %c0_115, %c0_116] : memref<8x8x128xf32, #tpu.memory_space<vmem>>, vector<1x8x128xf32>
    %203 = vector.shape_cast %202 : vector<1x8x128xf32> to vector<8x128xf32>
    %c0_117 = arith.constant 0 : index
    %c0_118 = arith.constant 0 : index
    %204 = vector.load %arg8[%c0_117, %c0_118] : memref<8x256xf32, #tpu.memory_space<vmem>>, vector<8x128xf32>
    tpu.vector_store %arg8[%c0_117, %c0_118], %203 {strides = array<i32>} : memref<8x256xf32, #tpu.memory_space<vmem>>, vector<8x128xf32>,
    %c0_119 = arith.constant 0 : index
    %c128_120 = arith.constant 128 : index
    %205 = vector.load %arg8[%c0_119, %c128_120] : memref<8x256xf32, #tpu.memory_space<vmem>>, vector<8x128xf32>
    tpu.vector_store %arg8[%c0_119, %c128_120], %198 {strides = array<i32>} : memref<8x256xf32, #tpu.memory_space<vmem>>, vector<8x128xf32>,
    %c0_121 = arith.constant 0 : index
    %c0_122 = arith.constant 0 : index
    %206 = vector.load %arg8[%c0_121, %c0_122] : memref<8x256xf32, #tpu.memory_space<vmem>>, vector<8x256xf32>
    %cst_123 = arith.constant dense<0.000000e+00> : vector<8x512xf32>
    %207 = tpu.matmul %206, %4, %cst_123 {dimension_numbers = #tpu.dot_dimension_numbers<[1], [0], [0], [1], [0, 0, 1, 1], [], []>} : vector<8x256xf32>, vector<256x512xf32>, vector<8x512xf32> -> vector<8x512xf32>
    %208 = arith.addf %207, %8 : vector<8x512xf32>
    %209 = vector.extract_strided_slice %208 {offsets = [0, 0], sizes = [8, 128], strides = [1, 1]} : vector<8x512xf32> to vector<8x128xf32>
    %210 = arith.negf %209 : vector<8x128xf32>
    %211 = math.exp %210 : vector<8x128xf32>
    %cst_124 = arith.constant 1.000000e+00 : f32
    %212 = vector.broadcast %cst_124 : f32 to vector<8x128xf32>
    %213 = arith.addf %212, %211 : vector<8x128xf32>
    %214 = arith.divf %212, %213 : vector<8x128xf32>
    %215 = vector.extract_strided_slice %208 {offsets = [0, 128], sizes = [8, 128], strides = [1, 1]} : vector<8x512xf32> to vector<8x128xf32>
    %216 = arith.negf %215 : vector<8x128xf32>
    %217 = math.exp %216 : vector<8x128xf32>
    %cst_125 = arith.constant 1.000000e+00 : f32
    %218 = vector.broadcast %cst_125 : f32 to vector<8x128xf32>
    %219 = arith.addf %218, %217 : vector<8x128xf32>
    %220 = arith.divf %218, %219 : vector<8x128xf32>
    %221 = vector.extract_strided_slice %208 {offsets = [0, 256], sizes = [8, 128], strides = [1, 1]} : vector<8x512xf32> to vector<8x128xf32>
    %222 = math.tanh %221 : vector<8x128xf32>
    %223 = vector.extract_strided_slice %208 {offsets = [0, 384], sizes = [8, 128], strides = [1, 1]} : vector<8x512xf32> to vector<8x128xf32>
    %224 = arith.negf %223 : vector<8x128xf32>
    %225 = math.exp %224 : vector<8x128xf32>
    %cst_126 = arith.constant 1.000000e+00 : f32
    %226 = vector.broadcast %cst_126 : f32 to vector<8x128xf32>
    %227 = arith.addf %226, %225 : vector<8x128xf32>
    %228 = arith.divf %226, %227 : vector<8x128xf32>
    %229 = arith.mulf %220, %200 : vector<8x128xf32>
    %230 = arith.mulf %214, %222 : vector<8x128xf32>
    %231 = arith.addf %229, %230 : vector<8x128xf32>
    %232 = math.tanh %231 : vector<8x128xf32>
    %233 = arith.mulf %228, %232 : vector<8x128xf32>
    %c0_127 = arith.constant 0 : index
    %c0_128 = arith.constant 0 : index
    %c0_129 = arith.constant 0 : index
    %234 = vector.load %arg10[%c0_127, %c0_128, %c0_129] : memref<2x8x128xf32, #tpu.memory_space<vmem>>, vector<1x8x128xf32>
    %235 = vector.shape_cast %234 : vector<1x8x128xf32> to vector<8x128xf32>
    %236 = vector.shape_cast %231 : vector<8x128xf32> to vector<1x8x128xf32>
    tpu.vector_store %arg10[%c0_127, %c0_128, %c0_129], %236 {strides = array<i32>} : memref<2x8x128xf32, #tpu.memory_space<vmem>>, vector<1x8x128xf32>,
    %c0_130 = arith.constant 0 : index
    %c0_131 = arith.constant 0 : index
    %c0_132 = arith.constant 0 : index
    %237 = vector.load %arg9[%c0_130, %c0_131, %c0_132] : memref<2x8x128xf32, #tpu.memory_space<vmem>>, vector<1x8x128xf32>
    %238 = vector.shape_cast %237 : vector<1x8x128xf32> to vector<8x128xf32>
    %239 = vector.shape_cast %233 : vector<8x128xf32> to vector<1x8x128xf32>
    tpu.vector_store %arg9[%c0_130, %c0_131, %c0_132], %239 {strides = array<i32>} : memref<2x8x128xf32, #tpu.memory_space<vmem>>, vector<1x8x128xf32>,
    %240 = arith.index_cast %c4_i32 : i32 to index
    %c0_133 = arith.constant 0 : index
    %c0_134 = arith.constant 0 : index
    %241 = vector.load %arg7[%240, %c0_133, %c0_134] : memref<8x8x128xf32, #tpu.memory_space<vmem>>, vector<1x8x128xf32>
    %242 = vector.shape_cast %241 : vector<1x8x128xf32> to vector<8x128xf32>
    %243 = vector.shape_cast %233 : vector<8x128xf32> to vector<1x8x128xf32>
    tpu.vector_store %arg7[%240, %c0_133, %c0_134], %243 {strides = array<i32>} : memref<8x8x128xf32, #tpu.memory_space<vmem>>, vector<1x8x128xf32>,
    %c5_i32 = arith.constant 5 : i32
    %c0_135 = arith.constant 0 : index
    %c0_136 = arith.constant 0 : index
    %c0_137 = arith.constant 0 : index
    %244 = vector.load %arg9[%c0_135, %c0_136, %c0_137] : memref<2x8x128xf32, #tpu.memory_space<vmem>>, vector<1x8x128xf32>
    %245 = vector.shape_cast %244 : vector<1x8x128xf32> to vector<8x128xf32>
    %c0_138 = arith.constant 0 : index
    %c0_139 = arith.constant 0 : index
    %c0_140 = arith.constant 0 : index
    %246 = vector.load %arg10[%c0_138, %c0_139, %c0_140] : memref<2x8x128xf32, #tpu.memory_space<vmem>>, vector<1x8x128xf32>
    %247 = vector.shape_cast %246 : vector<1x8x128xf32> to vector<8x128xf32>
    %248 = arith.index_cast %c5_i32 : i32 to index
    %c0_141 = arith.constant 0 : index
    %c0_142 = arith.constant 0 : index
    %249 = vector.load %arg1[%248, %c0_141, %c0_142] : memref<8x8x128xf32, #tpu.memory_space<vmem>>, vector<1x8x128xf32>
    %250 = vector.shape_cast %249 : vector<1x8x128xf32> to vector<8x128xf32>
    %c0_143 = arith.constant 0 : index
    %c0_144 = arith.constant 0 : index
    %251 = vector.load %arg8[%c0_143, %c0_144] : memref<8x256xf32, #tpu.memory_space<vmem>>, vector<8x128xf32>
    tpu.vector_store %arg8[%c0_143, %c0_144], %250 {strides = array<i32>} : memref<8x256xf32, #tpu.memory_space<vmem>>, vector<8x128xf32>,
    %c0_145 = arith.constant 0 : index
    %c128_146 = arith.constant 128 : index
    %252 = vector.load %arg8[%c0_145, %c128_146] : memref<8x256xf32, #tpu.memory_space<vmem>>, vector<8x128xf32>
    tpu.vector_store %arg8[%c0_145, %c128_146], %245 {strides = array<i32>} : memref<8x256xf32, #tpu.memory_space<vmem>>, vector<8x128xf32>,
    %c0_147 = arith.constant 0 : index
    %c0_148 = arith.constant 0 : index
    %253 = vector.load %arg8[%c0_147, %c0_148] : memref<8x256xf32, #tpu.memory_space<vmem>>, vector<8x256xf32>
    %cst_149 = arith.constant dense<0.000000e+00> : vector<8x512xf32>
    %254 = tpu.matmul %253, %4, %cst_149 {dimension_numbers = #tpu.dot_dimension_numbers<[1], [0], [0], [1], [0, 0, 1, 1], [], []>} : vector<8x256xf32>, vector<256x512xf32>, vector<8x512xf32> -> vector<8x512xf32>
    %255 = arith.addf %254, %8 : vector<8x512xf32>
    %256 = vector.extract_strided_slice %255 {offsets = [0, 0], sizes = [8, 128], strides = [1, 1]} : vector<8x512xf32> to vector<8x128xf32>
    %257 = arith.negf %256 : vector<8x128xf32>
    %258 = math.exp %257 : vector<8x128xf32>
    %cst_150 = arith.constant 1.000000e+00 : f32
    %259 = vector.broadcast %cst_150 : f32 to vector<8x128xf32>
    %260 = arith.addf %259, %258 : vector<8x128xf32>
    %261 = arith.divf %259, %260 : vector<8x128xf32>
    %262 = vector.extract_strided_slice %255 {offsets = [0, 128], sizes = [8, 128], strides = [1, 1]} : vector<8x512xf32> to vector<8x128xf32>
    %263 = arith.negf %262 : vector<8x128xf32>
    %264 = math.exp %263 : vector<8x128xf32>
    %cst_151 = arith.constant 1.000000e+00 : f32
    %265 = vector.broadcast %cst_151 : f32 to vector<8x128xf32>
    %266 = arith.addf %265, %264 : vector<8x128xf32>
    %267 = arith.divf %265, %266 : vector<8x128xf32>
    %268 = vector.extract_strided_slice %255 {offsets = [0, 256], sizes = [8, 128], strides = [1, 1]} : vector<8x512xf32> to vector<8x128xf32>
    %269 = math.tanh %268 : vector<8x128xf32>
    %270 = vector.extract_strided_slice %255 {offsets = [0, 384], sizes = [8, 128], strides = [1, 1]} : vector<8x512xf32> to vector<8x128xf32>
    %271 = arith.negf %270 : vector<8x128xf32>
    %272 = math.exp %271 : vector<8x128xf32>
    %cst_152 = arith.constant 1.000000e+00 : f32
    %273 = vector.broadcast %cst_152 : f32 to vector<8x128xf32>
    %274 = arith.addf %273, %272 : vector<8x128xf32>
    %275 = arith.divf %273, %274 : vector<8x128xf32>
    %276 = arith.mulf %267, %247 : vector<8x128xf32>
    %277 = arith.mulf %261, %269 : vector<8x128xf32>
    %278 = arith.addf %276, %277 : vector<8x128xf32>
    %279 = math.tanh %278 : vector<8x128xf32>
    %280 = arith.mulf %275, %279 : vector<8x128xf32>
    %c0_153 = arith.constant 0 : index
    %c0_154 = arith.constant 0 : index
    %c0_155 = arith.constant 0 : index
    %281 = vector.load %arg10[%c0_153, %c0_154, %c0_155] : memref<2x8x128xf32, #tpu.memory_space<vmem>>, vector<1x8x128xf32>
    %282 = vector.shape_cast %281 : vector<1x8x128xf32> to vector<8x128xf32>
    %283 = vector.shape_cast %278 : vector<8x128xf32> to vector<1x8x128xf32>
    tpu.vector_store %arg10[%c0_153, %c0_154, %c0_155], %283 {strides = array<i32>} : memref<2x8x128xf32, #tpu.memory_space<vmem>>, vector<1x8x128xf32>,
    %c0_156 = arith.constant 0 : index
    %c0_157 = arith.constant 0 : index
    %c0_158 = arith.constant 0 : index
    %284 = vector.load %arg9[%c0_156, %c0_157, %c0_158] : memref<2x8x128xf32, #tpu.memory_space<vmem>>, vector<1x8x128xf32>
    %285 = vector.shape_cast %284 : vector<1x8x128xf32> to vector<8x128xf32>
    %286 = vector.shape_cast %280 : vector<8x128xf32> to vector<1x8x128xf32>
    tpu.vector_store %arg9[%c0_156, %c0_157, %c0_158], %286 {strides = array<i32>} : memref<2x8x128xf32, #tpu.memory_space<vmem>>, vector<1x8x128xf32>,
    %287 = arith.index_cast %c5_i32 : i32 to index
    %c0_159 = arith.constant 0 : index
    %c0_160 = arith.constant 0 : index
    %288 = vector.load %arg7[%287, %c0_159, %c0_160] : memref<8x8x128xf32, #tpu.memory_space<vmem>>, vector<1x8x128xf32>
    %289 = vector.shape_cast %288 : vector<1x8x128xf32> to vector<8x128xf32>
    %290 = vector.shape_cast %280 : vector<8x128xf32> to vector<1x8x128xf32>
    tpu.vector_store %arg7[%287, %c0_159, %c0_160], %290 {strides = array<i32>} : memref<8x8x128xf32, #tpu.memory_space<vmem>>, vector<1x8x128xf32>,
    %c6_i32 = arith.constant 6 : i32
    %c0_161 = arith.constant 0 : index
    %c0_162 = arith.constant 0 : index
    %c0_163 = arith.constant 0 : index
    %291 = vector.load %arg9[%c0_161, %c0_162, %c0_163] : memref<2x8x128xf32, #tpu.memory_space<vmem>>, vector<1x8x128xf32>
    %292 = vector.shape_cast %291 : vector<1x8x128xf32> to vector<8x128xf32>
    %c0_164 = arith.constant 0 : index
    %c0_165 = arith.constant 0 : index
    %c0_166 = arith.constant 0 : index
    %293 = vector.load %arg10[%c0_164, %c0_165, %c0_166] : memref<2x8x128xf32, #tpu.memory_space<vmem>>, vector<1x8x128xf32>
    %294 = vector.shape_cast %293 : vector<1x8x128xf32> to vector<8x128xf32>
    %295 = arith.index_cast %c6_i32 : i32 to index
    %c0_167 = arith.constant 0 : index
    %c0_168 = arith.constant 0 : index
    %296 = vector.load %arg1[%295, %c0_167, %c0_168] : memref<8x8x128xf32, #tpu.memory_space<vmem>>, vector<1x8x128xf32>
    %297 = vector.shape_cast %296 : vector<1x8x128xf32> to vector<8x128xf32>
    %c0_169 = arith.constant 0 : index
    %c0_170 = arith.constant 0 : index
    %298 = vector.load %arg8[%c0_169, %c0_170] : memref<8x256xf32, #tpu.memory_space<vmem>>, vector<8x128xf32>
    tpu.vector_store %arg8[%c0_169, %c0_170], %297 {strides = array<i32>} : memref<8x256xf32, #tpu.memory_space<vmem>>, vector<8x128xf32>,
    %c0_171 = arith.constant 0 : index
    %c128_172 = arith.constant 128 : index
    %299 = vector.load %arg8[%c0_171, %c128_172] : memref<8x256xf32, #tpu.memory_space<vmem>>, vector<8x128xf32>
    tpu.vector_store %arg8[%c0_171, %c128_172], %292 {strides = array<i32>} : memref<8x256xf32, #tpu.memory_space<vmem>>, vector<8x128xf32>,
    %c0_173 = arith.constant 0 : index
    %c0_174 = arith.constant 0 : index
    %300 = vector.load %arg8[%c0_173, %c0_174] : memref<8x256xf32, #tpu.memory_space<vmem>>, vector<8x256xf32>
    %cst_175 = arith.constant dense<0.000000e+00> : vector<8x512xf32>
    %301 = tpu.matmul %300, %4, %cst_175 {dimension_numbers = #tpu.dot_dimension_numbers<[1], [0], [0], [1], [0, 0, 1, 1], [], []>} : vector<8x256xf32>, vector<256x512xf32>, vector<8x512xf32> -> vector<8x512xf32>
    %302 = arith.addf %301, %8 : vector<8x512xf32>
    %303 = vector.extract_strided_slice %302 {offsets = [0, 0], sizes = [8, 128], strides = [1, 1]} : vector<8x512xf32> to vector<8x128xf32>
    %304 = arith.negf %303 : vector<8x128xf32>
    %305 = math.exp %304 : vector<8x128xf32>
    %cst_176 = arith.constant 1.000000e+00 : f32
    %306 = vector.broadcast %cst_176 : f32 to vector<8x128xf32>
    %307 = arith.addf %306, %305 : vector<8x128xf32>
    %308 = arith.divf %306, %307 : vector<8x128xf32>
    %309 = vector.extract_strided_slice %302 {offsets = [0, 128], sizes = [8, 128], strides = [1, 1]} : vector<8x512xf32> to vector<8x128xf32>
    %310 = arith.negf %309 : vector<8x128xf32>
    %311 = math.exp %310 : vector<8x128xf32>
    %cst_177 = arith.constant 1.000000e+00 : f32
    %312 = vector.broadcast %cst_177 : f32 to vector<8x128xf32>
    %313 = arith.addf %312, %311 : vector<8x128xf32>
    %314 = arith.divf %312, %313 : vector<8x128xf32>
    %315 = vector.extract_strided_slice %302 {offsets = [0, 256], sizes = [8, 128], strides = [1, 1]} : vector<8x512xf32> to vector<8x128xf32>
    %316 = math.tanh %315 : vector<8x128xf32>
    %317 = vector.extract_strided_slice %302 {offsets = [0, 384], sizes = [8, 128], strides = [1, 1]} : vector<8x512xf32> to vector<8x128xf32>
    %318 = arith.negf %317 : vector<8x128xf32>
    %319 = math.exp %318 : vector<8x128xf32>
    %cst_178 = arith.constant 1.000000e+00 : f32
    %320 = vector.broadcast %cst_178 : f32 to vector<8x128xf32>
    %321 = arith.addf %320, %319 : vector<8x128xf32>
    %322 = arith.divf %320, %321 : vector<8x128xf32>
    %323 = arith.mulf %314, %294 : vector<8x128xf32>
    %324 = arith.mulf %308, %316 : vector<8x128xf32>
    %325 = arith.addf %323, %324 : vector<8x128xf32>
    %326 = math.tanh %325 : vector<8x128xf32>
    %327 = arith.mulf %322, %326 : vector<8x128xf32>
    %c0_179 = arith.constant 0 : index
    %c0_180 = arith.constant 0 : index
    %c0_181 = arith.constant 0 : index
    %328 = vector.load %arg10[%c0_179, %c0_180, %c0_181] : memref<2x8x128xf32, #tpu.memory_space<vmem>>, vector<1x8x128xf32>
    %329 = vector.shape_cast %328 : vector<1x8x128xf32> to vector<8x128xf32>
    %330 = vector.shape_cast %325 : vector<8x128xf32> to vector<1x8x128xf32>
    tpu.vector_store %arg10[%c0_179, %c0_180, %c0_181], %330 {strides = array<i32>} : memref<2x8x128xf32, #tpu.memory_space<vmem>>, vector<1x8x128xf32>,
    %c0_182 = arith.constant 0 : index
    %c0_183 = arith.constant 0 : index
    %c0_184 = arith.constant 0 : index
    %331 = vector.load %arg9[%c0_182, %c0_183, %c0_184] : memref<2x8x128xf32, #tpu.memory_space<vmem>>, vector<1x8x128xf32>
    %332 = vector.shape_cast %331 : vector<1x8x128xf32> to vector<8x128xf32>
    %333 = vector.shape_cast %327 : vector<8x128xf32> to vector<1x8x128xf32>
    tpu.vector_store %arg9[%c0_182, %c0_183, %c0_184], %333 {strides = array<i32>} : memref<2x8x128xf32, #tpu.memory_space<vmem>>, vector<1x8x128xf32>,
    %334 = arith.index_cast %c6_i32 : i32 to index
    %c0_185 = arith.constant 0 : index
    %c0_186 = arith.constant 0 : index
    %335 = vector.load %arg7[%334, %c0_185, %c0_186] : memref<8x8x128xf32, #tpu.memory_space<vmem>>, vector<1x8x128xf32>
    %336 = vector.shape_cast %335 : vector<1x8x128xf32> to vector<8x128xf32>
    %337 = vector.shape_cast %327 : vector<8x128xf32> to vector<1x8x128xf32>
    tpu.vector_store %arg7[%334, %c0_185, %c0_186], %337 {strides = array<i32>} : memref<8x8x128xf32, #tpu.memory_space<vmem>>, vector<1x8x128xf32>,
    %c7_i32 = arith.constant 7 : i32
    %c0_187 = arith.constant 0 : index
    %c0_188 = arith.constant 0 : index
    %c0_189 = arith.constant 0 : index
    %338 = vector.load %arg9[%c0_187, %c0_188, %c0_189] : memref<2x8x128xf32, #tpu.memory_space<vmem>>, vector<1x8x128xf32>
    %339 = vector.shape_cast %338 : vector<1x8x128xf32> to vector<8x128xf32>
    %c0_190 = arith.constant 0 : index
    %c0_191 = arith.constant 0 : index
    %c0_192 = arith.constant 0 : index
    %340 = vector.load %arg10[%c0_190, %c0_191, %c0_192] : memref<2x8x128xf32, #tpu.memory_space<vmem>>, vector<1x8x128xf32>
    %341 = vector.shape_cast %340 : vector<1x8x128xf32> to vector<8x128xf32>
    %342 = arith.index_cast %c7_i32 : i32 to index
    %c0_193 = arith.constant 0 : index
    %c0_194 = arith.constant 0 : index
    %343 = vector.load %arg1[%342, %c0_193, %c0_194] : memref<8x8x128xf32, #tpu.memory_space<vmem>>, vector<1x8x128xf32>
    %344 = vector.shape_cast %343 : vector<1x8x128xf32> to vector<8x128xf32>
    %c0_195 = arith.constant 0 : index
    %c0_196 = arith.constant 0 : index
    %345 = vector.load %arg8[%c0_195, %c0_196] : memref<8x256xf32, #tpu.memory_space<vmem>>, vector<8x128xf32>
    tpu.vector_store %arg8[%c0_195, %c0_196], %344 {strides = array<i32>} : memref<8x256xf32, #tpu.memory_space<vmem>>, vector<8x128xf32>,
    %c0_197 = arith.constant 0 : index
    %c128_198 = arith.constant 128 : index
    %346 = vector.load %arg8[%c0_197, %c128_198] : memref<8x256xf32, #tpu.memory_space<vmem>>, vector<8x128xf32>
    tpu.vector_store %arg8[%c0_197, %c128_198], %339 {strides = array<i32>} : memref<8x256xf32, #tpu.memory_space<vmem>>, vector<8x128xf32>,
    %c0_199 = arith.constant 0 : index
    %c0_200 = arith.constant 0 : index
    %347 = vector.load %arg8[%c0_199, %c0_200] : memref<8x256xf32, #tpu.memory_space<vmem>>, vector<8x256xf32>
    %cst_201 = arith.constant dense<0.000000e+00> : vector<8x512xf32>
    %348 = tpu.matmul %347, %4, %cst_201 {dimension_numbers = #tpu.dot_dimension_numbers<[1], [0], [0], [1], [0, 0, 1, 1], [], []>} : vector<8x256xf32>, vector<256x512xf32>, vector<8x512xf32> -> vector<8x512xf32>
    %349 = arith.addf %348, %8 : vector<8x512xf32>
    %350 = vector.extract_strided_slice %349 {offsets = [0, 0], sizes = [8, 128], strides = [1, 1]} : vector<8x512xf32> to vector<8x128xf32>
    %351 = arith.negf %350 : vector<8x128xf32>
    %352 = math.exp %351 : vector<8x128xf32>
    %cst_202 = arith.constant 1.000000e+00 : f32
    %353 = vector.broadcast %cst_202 : f32 to vector<8x128xf32>
    %354 = arith.addf %353, %352 : vector<8x128xf32>
    %355 = arith.divf %353, %354 : vector<8x128xf32>
    %356 = vector.extract_strided_slice %349 {offsets = [0, 128], sizes = [8, 128], strides = [1, 1]} : vector<8x512xf32> to vector<8x128xf32>
    %357 = arith.negf %356 : vector<8x128xf32>
    %358 = math.exp %357 : vector<8x128xf32>
    %cst_203 = arith.constant 1.000000e+00 : f32
    %359 = vector.broadcast %cst_203 : f32 to vector<8x128xf32>
    %360 = arith.addf %359, %358 : vector<8x128xf32>
    %361 = arith.divf %359, %360 : vector<8x128xf32>
    %362 = vector.extract_strided_slice %349 {offsets = [0, 256], sizes = [8, 128], strides = [1, 1]} : vector<8x512xf32> to vector<8x128xf32>
    %363 = math.tanh %362 : vector<8x128xf32>
    %364 = vector.extract_strided_slice %349 {offsets = [0, 384], sizes = [8, 128], strides = [1, 1]} : vector<8x512xf32> to vector<8x128xf32>
    %365 = arith.negf %364 : vector<8x128xf32>
    %366 = math.exp %365 : vector<8x128xf32>
    %cst_204 = arith.constant 1.000000e+00 : f32
    %367 = vector.broadcast %cst_204 : f32 to vector<8x128xf32>
    %368 = arith.addf %367, %366 : vector<8x128xf32>
    %369 = arith.divf %367, %368 : vector<8x128xf32>
    %370 = arith.mulf %361, %341 : vector<8x128xf32>
    %371 = arith.mulf %355, %363 : vector<8x128xf32>
    %372 = arith.addf %370, %371 : vector<8x128xf32>
    %373 = math.tanh %372 : vector<8x128xf32>
    %374 = arith.mulf %369, %373 : vector<8x128xf32>
    %c0_205 = arith.constant 0 : index
    %c0_206 = arith.constant 0 : index
    %c0_207 = arith.constant 0 : index
    %375 = vector.load %arg10[%c0_205, %c0_206, %c0_207] : memref<2x8x128xf32, #tpu.memory_space<vmem>>, vector<1x8x128xf32>
    %376 = vector.shape_cast %375 : vector<1x8x128xf32> to vector<8x128xf32>
    %377 = vector.shape_cast %372 : vector<8x128xf32> to vector<1x8x128xf32>
    tpu.vector_store %arg10[%c0_205, %c0_206, %c0_207], %377 {strides = array<i32>} : memref<2x8x128xf32, #tpu.memory_space<vmem>>, vector<1x8x128xf32>,
    %c0_208 = arith.constant 0 : index
    %c0_209 = arith.constant 0 : index
    %c0_210 = arith.constant 0 : index
    %378 = vector.load %arg9[%c0_208, %c0_209, %c0_210] : memref<2x8x128xf32, #tpu.memory_space<vmem>>, vector<1x8x128xf32>
    %379 = vector.shape_cast %378 : vector<1x8x128xf32> to vector<8x128xf32>
    %380 = vector.shape_cast %374 : vector<8x128xf32> to vector<1x8x128xf32>
    tpu.vector_store %arg9[%c0_208, %c0_209, %c0_210], %380 {strides = array<i32>} : memref<2x8x128xf32, #tpu.memory_space<vmem>>, vector<1x8x128xf32>,
    %381 = arith.index_cast %c7_i32 : i32 to index
    %c0_211 = arith.constant 0 : index
    %c0_212 = arith.constant 0 : index
    %382 = vector.load %arg7[%381, %c0_211, %c0_212] : memref<8x8x128xf32, #tpu.memory_space<vmem>>, vector<1x8x128xf32>
    %383 = vector.shape_cast %382 : vector<1x8x128xf32> to vector<8x128xf32>
    %384 = vector.shape_cast %374 : vector<8x128xf32> to vector<1x8x128xf32>
    tpu.vector_store %arg7[%381, %c0_211, %c0_212], %384 {strides = array<i32>} : memref<8x8x128xf32, #tpu.memory_space<vmem>>, vector<1x8x128xf32>,
    %c8_i32 = arith.constant 8 : i32
    %c1 = arith.constant 1 : index
    %c0_213 = arith.constant 0 : index
    %c0_214 = arith.constant 0 : index
    %385 = vector.load %arg2[%c1, %c0_213, %c0_214] : memref<2x256x512xf32, #tpu.memory_space<vmem>>, vector<1x256x512xf32>
    %386 = vector.shape_cast %385 : vector<1x256x512xf32> to vector<256x512xf32>
    %c1_215 = arith.constant 1 : index
    %c0_216 = arith.constant 0 : index
    %c0_217 = arith.constant 0 : index
    %387 = vector.load %arg3[%c1_215, %c0_216, %c0_217] : memref<2x1x512xf32, #tpu.memory_space<vmem>>, vector<1x1x512xf32>
    %388 = vector.shape_cast %387 : vector<1x1x512xf32> to vector<1x512xf32>
    %389 = vector.shape_cast %388 : vector<1x512xf32> to vector<1x512xf32>
    %390 = vector.broadcast %389 : vector<1x512xf32> to vector<8x512xf32>
    %c0_i32_218 = arith.constant 0 : i32
    %c1_219 = arith.constant 1 : index
    %c0_220 = arith.constant 0 : index
    %c0_221 = arith.constant 0 : index
    %391 = vector.load %arg9[%c1_219, %c0_220, %c0_221] : memref<2x8x128xf32, #tpu.memory_space<vmem>>, vector<1x8x128xf32>
    %392 = vector.shape_cast %391 : vector<1x8x128xf32> to vector<8x128xf32>
    %c1_222 = arith.constant 1 : index
    %c0_223 = arith.constant 0 : index
    %c0_224 = arith.constant 0 : index
    %393 = vector.load %arg10[%c1_222, %c0_223, %c0_224] : memref<2x8x128xf32, #tpu.memory_space<vmem>>, vector<1x8x128xf32>
    %394 = vector.shape_cast %393 : vector<1x8x128xf32> to vector<8x128xf32>
    %395 = arith.index_cast %c0_i32_218 : i32 to index
    %c0_225 = arith.constant 0 : index
    %c0_226 = arith.constant 0 : index
    %396 = vector.load %arg7[%395, %c0_225, %c0_226] : memref<8x8x128xf32, #tpu.memory_space<vmem>>, vector<1x8x128xf32>
    %397 = vector.shape_cast %396 : vector<1x8x128xf32> to vector<8x128xf32>
    %c0_227 = arith.constant 0 : index
    %c0_228 = arith.constant 0 : index
    %398 = vector.load %arg8[%c0_227, %c0_228] : memref<8x256xf32, #tpu.memory_space<vmem>>, vector<8x128xf32>
    tpu.vector_store %arg8[%c0_227, %c0_228], %397 {strides = array<i32>} : memref<8x256xf32, #tpu.memory_space<vmem>>, vector<8x128xf32>,
    %c0_229 = arith.constant 0 : index
    %c128_230 = arith.constant 128 : index
    %399 = vector.load %arg8[%c0_229, %c128_230] : memref<8x256xf32, #tpu.memory_space<vmem>>, vector<8x128xf32>
    tpu.vector_store %arg8[%c0_229, %c128_230], %392 {strides = array<i32>} : memref<8x256xf32, #tpu.memory_space<vmem>>, vector<8x128xf32>,
    %c0_231 = arith.constant 0 : index
    %c0_232 = arith.constant 0 : index
    %400 = vector.load %arg8[%c0_231, %c0_232] : memref<8x256xf32, #tpu.memory_space<vmem>>, vector<8x256xf32>
    %cst_233 = arith.constant dense<0.000000e+00> : vector<8x512xf32>
    %401 = tpu.matmul %400, %386, %cst_233 {dimension_numbers = #tpu.dot_dimension_numbers<[1], [0], [0], [1], [0, 0, 1, 1], [], []>} : vector<8x256xf32>, vector<256x512xf32>, vector<8x512xf32> -> vector<8x512xf32>
    %402 = arith.addf %401, %390 : vector<8x512xf32>
    %403 = vector.extract_strided_slice %402 {offsets = [0, 0], sizes = [8, 128], strides = [1, 1]} : vector<8x512xf32> to vector<8x128xf32>
    %404 = arith.negf %403 : vector<8x128xf32>
    %405 = math.exp %404 : vector<8x128xf32>
    %cst_234 = arith.constant 1.000000e+00 : f32
    %406 = vector.broadcast %cst_234 : f32 to vector<8x128xf32>
    %407 = arith.addf %406, %405 : vector<8x128xf32>
    %408 = arith.divf %406, %407 : vector<8x128xf32>
    %409 = vector.extract_strided_slice %402 {offsets = [0, 128], sizes = [8, 128], strides = [1, 1]} : vector<8x512xf32> to vector<8x128xf32>
    %410 = arith.negf %409 : vector<8x128xf32>
    %411 = math.exp %410 : vector<8x128xf32>
    %cst_235 = arith.constant 1.000000e+00 : f32
    %412 = vector.broadcast %cst_235 : f32 to vector<8x128xf32>
    %413 = arith.addf %412, %411 : vector<8x128xf32>
    %414 = arith.divf %412, %413 : vector<8x128xf32>
    %415 = vector.extract_strided_slice %402 {offsets = [0, 256], sizes = [8, 128], strides = [1, 1]} : vector<8x512xf32> to vector<8x128xf32>
    %416 = math.tanh %415 : vector<8x128xf32>
    %417 = vector.extract_strided_slice %402 {offsets = [0, 384], sizes = [8, 128], strides = [1, 1]} : vector<8x512xf32> to vector<8x128xf32>
    %418 = arith.negf %417 : vector<8x128xf32>
    %419 = math.exp %418 : vector<8x128xf32>
    %cst_236 = arith.constant 1.000000e+00 : f32
    %420 = vector.broadcast %cst_236 : f32 to vector<8x128xf32>
    %421 = arith.addf %420, %419 : vector<8x128xf32>
    %422 = arith.divf %420, %421 : vector<8x128xf32>
    %423 = arith.mulf %414, %394 : vector<8x128xf32>
    %424 = arith.mulf %408, %416 : vector<8x128xf32>
    %425 = arith.addf %423, %424 : vector<8x128xf32>
    %426 = math.tanh %425 : vector<8x128xf32>
    %427 = arith.mulf %422, %426 : vector<8x128xf32>
    %c1_237 = arith.constant 1 : index
    %c0_238 = arith.constant 0 : index
    %c0_239 = arith.constant 0 : index
    %428 = vector.load %arg10[%c1_237, %c0_238, %c0_239] : memref<2x8x128xf32, #tpu.memory_space<vmem>>, vector<1x8x128xf32>
    %429 = vector.shape_cast %428 : vector<1x8x128xf32> to vector<8x128xf32>
    %430 = vector.shape_cast %425 : vector<8x128xf32> to vector<1x8x128xf32>
    tpu.vector_store %arg10[%c1_237, %c0_238, %c0_239], %430 {strides = array<i32>} : memref<2x8x128xf32, #tpu.memory_space<vmem>>, vector<1x8x128xf32>,
    %c1_240 = arith.constant 1 : index
    %c0_241 = arith.constant 0 : index
    %c0_242 = arith.constant 0 : index
    %431 = vector.load %arg9[%c1_240, %c0_241, %c0_242] : memref<2x8x128xf32, #tpu.memory_space<vmem>>, vector<1x8x128xf32>
    %432 = vector.shape_cast %431 : vector<1x8x128xf32> to vector<8x128xf32>
    %433 = vector.shape_cast %427 : vector<8x128xf32> to vector<1x8x128xf32>
    tpu.vector_store %arg9[%c1_240, %c0_241, %c0_242], %433 {strides = array<i32>} : memref<2x8x128xf32, #tpu.memory_space<vmem>>, vector<1x8x128xf32>,
    %c1_i32_243 = arith.constant 1 : i32
    %c1_244 = arith.constant 1 : index
    %c0_245 = arith.constant 0 : index
    %c0_246 = arith.constant 0 : index
    %434 = vector.load %arg9[%c1_244, %c0_245, %c0_246] : memref<2x8x128xf32, #tpu.memory_space<vmem>>, vector<1x8x128xf32>
    %435 = vector.shape_cast %434 : vector<1x8x128xf32> to vector<8x128xf32>
    %c1_247 = arith.constant 1 : index
    %c0_248 = arith.constant 0 : index
    %c0_249 = arith.constant 0 : index
    %436 = vector.load %arg10[%c1_247, %c0_248, %c0_249] : memref<2x8x128xf32, #tpu.memory_space<vmem>>, vector<1x8x128xf32>
    %437 = vector.shape_cast %436 : vector<1x8x128xf32> to vector<8x128xf32>
    %438 = arith.index_cast %c1_i32_243 : i32 to index
    %c0_250 = arith.constant 0 : index
    %c0_251 = arith.constant 0 : index
    %439 = vector.load %arg7[%438, %c0_250, %c0_251] : memref<8x8x128xf32, #tpu.memory_space<vmem>>, vector<1x8x128xf32>
    %440 = vector.shape_cast %439 : vector<1x8x128xf32> to vector<8x128xf32>
    %c0_252 = arith.constant 0 : index
    %c0_253 = arith.constant 0 : index
    %441 = vector.load %arg8[%c0_252, %c0_253] : memref<8x256xf32, #tpu.memory_space<vmem>>, vector<8x128xf32>
    tpu.vector_store %arg8[%c0_252, %c0_253], %440 {strides = array<i32>} : memref<8x256xf32, #tpu.memory_space<vmem>>, vector<8x128xf32>,
    %c0_254 = arith.constant 0 : index
    %c128_255 = arith.constant 128 : index
    %442 = vector.load %arg8[%c0_254, %c128_255] : memref<8x256xf32, #tpu.memory_space<vmem>>, vector<8x128xf32>
    tpu.vector_store %arg8[%c0_254, %c128_255], %435 {strides = array<i32>} : memref<8x256xf32, #tpu.memory_space<vmem>>, vector<8x128xf32>,
    %c0_256 = arith.constant 0 : index
    %c0_257 = arith.constant 0 : index
    %443 = vector.load %arg8[%c0_256, %c0_257] : memref<8x256xf32, #tpu.memory_space<vmem>>, vector<8x256xf32>
    %cst_258 = arith.constant dense<0.000000e+00> : vector<8x512xf32>
    %444 = tpu.matmul %443, %386, %cst_258 {dimension_numbers = #tpu.dot_dimension_numbers<[1], [0], [0], [1], [0, 0, 1, 1], [], []>} : vector<8x256xf32>, vector<256x512xf32>, vector<8x512xf32> -> vector<8x512xf32>
    %445 = arith.addf %444, %390 : vector<8x512xf32>
    %446 = vector.extract_strided_slice %445 {offsets = [0, 0], sizes = [8, 128], strides = [1, 1]} : vector<8x512xf32> to vector<8x128xf32>
    %447 = arith.negf %446 : vector<8x128xf32>
    %448 = math.exp %447 : vector<8x128xf32>
    %cst_259 = arith.constant 1.000000e+00 : f32
    %449 = vector.broadcast %cst_259 : f32 to vector<8x128xf32>
    %450 = arith.addf %449, %448 : vector<8x128xf32>
    %451 = arith.divf %449, %450 : vector<8x128xf32>
    %452 = vector.extract_strided_slice %445 {offsets = [0, 128], sizes = [8, 128], strides = [1, 1]} : vector<8x512xf32> to vector<8x128xf32>
    %453 = arith.negf %452 : vector<8x128xf32>
    %454 = math.exp %453 : vector<8x128xf32>
    %cst_260 = arith.constant 1.000000e+00 : f32
    %455 = vector.broadcast %cst_260 : f32 to vector<8x128xf32>
    %456 = arith.addf %455, %454 : vector<8x128xf32>
    %457 = arith.divf %455, %456 : vector<8x128xf32>
    %458 = vector.extract_strided_slice %445 {offsets = [0, 256], sizes = [8, 128], strides = [1, 1]} : vector<8x512xf32> to vector<8x128xf32>
    %459 = math.tanh %458 : vector<8x128xf32>
    %460 = vector.extract_strided_slice %445 {offsets = [0, 384], sizes = [8, 128], strides = [1, 1]} : vector<8x512xf32> to vector<8x128xf32>
    %461 = arith.negf %460 : vector<8x128xf32>
    %462 = math.exp %461 : vector<8x128xf32>
    %cst_261 = arith.constant 1.000000e+00 : f32
    %463 = vector.broadcast %cst_261 : f32 to vector<8x128xf32>
    %464 = arith.addf %463, %462 : vector<8x128xf32>
    %465 = arith.divf %463, %464 : vector<8x128xf32>
    %466 = arith.mulf %457, %437 : vector<8x128xf32>
    %467 = arith.mulf %451, %459 : vector<8x128xf32>
    %468 = arith.addf %466, %467 : vector<8x128xf32>
    %469 = math.tanh %468 : vector<8x128xf32>
    %470 = arith.mulf %465, %469 : vector<8x128xf32>
    %c1_262 = arith.constant 1 : index
    %c0_263 = arith.constant 0 : index
    %c0_264 = arith.constant 0 : index
    %471 = vector.load %arg10[%c1_262, %c0_263, %c0_264] : memref<2x8x128xf32, #tpu.memory_space<vmem>>, vector<1x8x128xf32>
    %472 = vector.shape_cast %471 : vector<1x8x128xf32> to vector<8x128xf32>
    %473 = vector.shape_cast %468 : vector<8x128xf32> to vector<1x8x128xf32>
    tpu.vector_store %arg10[%c1_262, %c0_263, %c0_264], %473 {strides = array<i32>} : memref<2x8x128xf32, #tpu.memory_space<vmem>>, vector<1x8x128xf32>,
    %c1_265 = arith.constant 1 : index
    %c0_266 = arith.constant 0 : index
    %c0_267 = arith.constant 0 : index
    %474 = vector.load %arg9[%c1_265, %c0_266, %c0_267] : memref<2x8x128xf32, #tpu.memory_space<vmem>>, vector<1x8x128xf32>
    %475 = vector.shape_cast %474 : vector<1x8x128xf32> to vector<8x128xf32>
    %476 = vector.shape_cast %470 : vector<8x128xf32> to vector<1x8x128xf32>
    tpu.vector_store %arg9[%c1_265, %c0_266, %c0_267], %476 {strides = array<i32>} : memref<2x8x128xf32, #tpu.memory_space<vmem>>, vector<1x8x128xf32>,
    %c2_i32_268 = arith.constant 2 : i32
    %c1_269 = arith.constant 1 : index
    %c0_270 = arith.constant 0 : index
    %c0_271 = arith.constant 0 : index
    %477 = vector.load %arg9[%c1_269, %c0_270, %c0_271] : memref<2x8x128xf32, #tpu.memory_space<vmem>>, vector<1x8x128xf32>
    %478 = vector.shape_cast %477 : vector<1x8x128xf32> to vector<8x128xf32>
    %c1_272 = arith.constant 1 : index
    %c0_273 = arith.constant 0 : index
    %c0_274 = arith.constant 0 : index
    %479 = vector.load %arg10[%c1_272, %c0_273, %c0_274] : memref<2x8x128xf32, #tpu.memory_space<vmem>>, vector<1x8x128xf32>
    %480 = vector.shape_cast %479 : vector<1x8x128xf32> to vector<8x128xf32>
    %481 = arith.index_cast %c2_i32_268 : i32 to index
    %c0_275 = arith.constant 0 : index
    %c0_276 = arith.constant 0 : index
    %482 = vector.load %arg7[%481, %c0_275, %c0_276] : memref<8x8x128xf32, #tpu.memory_space<vmem>>, vector<1x8x128xf32>
    %483 = vector.shape_cast %482 : vector<1x8x128xf32> to vector<8x128xf32>
    %c0_277 = arith.constant 0 : index
    %c0_278 = arith.constant 0 : index
    %484 = vector.load %arg8[%c0_277, %c0_278] : memref<8x256xf32, #tpu.memory_space<vmem>>, vector<8x128xf32>
    tpu.vector_store %arg8[%c0_277, %c0_278], %483 {strides = array<i32>} : memref<8x256xf32, #tpu.memory_space<vmem>>, vector<8x128xf32>,
    %c0_279 = arith.constant 0 : index
    %c128_280 = arith.constant 128 : index
    %485 = vector.load %arg8[%c0_279, %c128_280] : memref<8x256xf32, #tpu.memory_space<vmem>>, vector<8x128xf32>
    tpu.vector_store %arg8[%c0_279, %c128_280], %478 {strides = array<i32>} : memref<8x256xf32, #tpu.memory_space<vmem>>, vector<8x128xf32>,
    %c0_281 = arith.constant 0 : index
    %c0_282 = arith.constant 0 : index
    %486 = vector.load %arg8[%c0_281, %c0_282] : memref<8x256xf32, #tpu.memory_space<vmem>>, vector<8x256xf32>
    %cst_283 = arith.constant dense<0.000000e+00> : vector<8x512xf32>
    %487 = tpu.matmul %486, %386, %cst_283 {dimension_numbers = #tpu.dot_dimension_numbers<[1], [0], [0], [1], [0, 0, 1, 1], [], []>} : vector<8x256xf32>, vector<256x512xf32>, vector<8x512xf32> -> vector<8x512xf32>
    %488 = arith.addf %487, %390 : vector<8x512xf32>
    %489 = vector.extract_strided_slice %488 {offsets = [0, 0], sizes = [8, 128], strides = [1, 1]} : vector<8x512xf32> to vector<8x128xf32>
    %490 = arith.negf %489 : vector<8x128xf32>
    %491 = math.exp %490 : vector<8x128xf32>
    %cst_284 = arith.constant 1.000000e+00 : f32
    %492 = vector.broadcast %cst_284 : f32 to vector<8x128xf32>
    %493 = arith.addf %492, %491 : vector<8x128xf32>
    %494 = arith.divf %492, %493 : vector<8x128xf32>
    %495 = vector.extract_strided_slice %488 {offsets = [0, 128], sizes = [8, 128], strides = [1, 1]} : vector<8x512xf32> to vector<8x128xf32>
    %496 = arith.negf %495 : vector<8x128xf32>
    %497 = math.exp %496 : vector<8x128xf32>
    %cst_285 = arith.constant 1.000000e+00 : f32
    %498 = vector.broadcast %cst_285 : f32 to vector<8x128xf32>
    %499 = arith.addf %498, %497 : vector<8x128xf32>
    %500 = arith.divf %498, %499 : vector<8x128xf32>
    %501 = vector.extract_strided_slice %488 {offsets = [0, 256], sizes = [8, 128], strides = [1, 1]} : vector<8x512xf32> to vector<8x128xf32>
    %502 = math.tanh %501 : vector<8x128xf32>
    %503 = vector.extract_strided_slice %488 {offsets = [0, 384], sizes = [8, 128], strides = [1, 1]} : vector<8x512xf32> to vector<8x128xf32>
    %504 = arith.negf %503 : vector<8x128xf32>
    %505 = math.exp %504 : vector<8x128xf32>
    %cst_286 = arith.constant 1.000000e+00 : f32
    %506 = vector.broadcast %cst_286 : f32 to vector<8x128xf32>
    %507 = arith.addf %506, %505 : vector<8x128xf32>
    %508 = arith.divf %506, %507 : vector<8x128xf32>
    %509 = arith.mulf %500, %480 : vector<8x128xf32>
    %510 = arith.mulf %494, %502 : vector<8x128xf32>
    %511 = arith.addf %509, %510 : vector<8x128xf32>
    %512 = math.tanh %511 : vector<8x128xf32>
    %513 = arith.mulf %508, %512 : vector<8x128xf32>
    %c1_287 = arith.constant 1 : index
    %c0_288 = arith.constant 0 : index
    %c0_289 = arith.constant 0 : index
    %514 = vector.load %arg10[%c1_287, %c0_288, %c0_289] : memref<2x8x128xf32, #tpu.memory_space<vmem>>, vector<1x8x128xf32>
    %515 = vector.shape_cast %514 : vector<1x8x128xf32> to vector<8x128xf32>
    %516 = vector.shape_cast %511 : vector<8x128xf32> to vector<1x8x128xf32>
    tpu.vector_store %arg10[%c1_287, %c0_288, %c0_289], %516 {strides = array<i32>} : memref<2x8x128xf32, #tpu.memory_space<vmem>>, vector<1x8x128xf32>,
    %c1_290 = arith.constant 1 : index
    %c0_291 = arith.constant 0 : index
    %c0_292 = arith.constant 0 : index
    %517 = vector.load %arg9[%c1_290, %c0_291, %c0_292] : memref<2x8x128xf32, #tpu.memory_space<vmem>>, vector<1x8x128xf32>
    %518 = vector.shape_cast %517 : vector<1x8x128xf32> to vector<8x128xf32>
    %519 = vector.shape_cast %513 : vector<8x128xf32> to vector<1x8x128xf32>
    tpu.vector_store %arg9[%c1_290, %c0_291, %c0_292], %519 {strides = array<i32>} : memref<2x8x128xf32, #tpu.memory_space<vmem>>, vector<1x8x128xf32>,
    %c3_i32_293 = arith.constant 3 : i32
    %c1_294 = arith.constant 1 : index
    %c0_295 = arith.constant 0 : index
    %c0_296 = arith.constant 0 : index
    %520 = vector.load %arg9[%c1_294, %c0_295, %c0_296] : memref<2x8x128xf32, #tpu.memory_space<vmem>>, vector<1x8x128xf32>
    %521 = vector.shape_cast %520 : vector<1x8x128xf32> to vector<8x128xf32>
    %c1_297 = arith.constant 1 : index
    %c0_298 = arith.constant 0 : index
    %c0_299 = arith.constant 0 : index
    %522 = vector.load %arg10[%c1_297, %c0_298, %c0_299] : memref<2x8x128xf32, #tpu.memory_space<vmem>>, vector<1x8x128xf32>
    %523 = vector.shape_cast %522 : vector<1x8x128xf32> to vector<8x128xf32>
    %524 = arith.index_cast %c3_i32_293 : i32 to index
    %c0_300 = arith.constant 0 : index
    %c0_301 = arith.constant 0 : index
    %525 = vector.load %arg7[%524, %c0_300, %c0_301] : memref<8x8x128xf32, #tpu.memory_space<vmem>>, vector<1x8x128xf32>
    %526 = vector.shape_cast %525 : vector<1x8x128xf32> to vector<8x128xf32>
    %c0_302 = arith.constant 0 : index
    %c0_303 = arith.constant 0 : index
    %527 = vector.load %arg8[%c0_302, %c0_303] : memref<8x256xf32, #tpu.memory_space<vmem>>, vector<8x128xf32>
    tpu.vector_store %arg8[%c0_302, %c0_303], %526 {strides = array<i32>} : memref<8x256xf32, #tpu.memory_space<vmem>>, vector<8x128xf32>,
    %c0_304 = arith.constant 0 : index
    %c128_305 = arith.constant 128 : index
    %528 = vector.load %arg8[%c0_304, %c128_305] : memref<8x256xf32, #tpu.memory_space<vmem>>, vector<8x128xf32>
    tpu.vector_store %arg8[%c0_304, %c128_305], %521 {strides = array<i32>} : memref<8x256xf32, #tpu.memory_space<vmem>>, vector<8x128xf32>,
    %c0_306 = arith.constant 0 : index
    %c0_307 = arith.constant 0 : index
    %529 = vector.load %arg8[%c0_306, %c0_307] : memref<8x256xf32, #tpu.memory_space<vmem>>, vector<8x256xf32>
    %cst_308 = arith.constant dense<0.000000e+00> : vector<8x512xf32>
    %530 = tpu.matmul %529, %386, %cst_308 {dimension_numbers = #tpu.dot_dimension_numbers<[1], [0], [0], [1], [0, 0, 1, 1], [], []>} : vector<8x256xf32>, vector<256x512xf32>, vector<8x512xf32> -> vector<8x512xf32>
    %531 = arith.addf %530, %390 : vector<8x512xf32>
    %532 = vector.extract_strided_slice %531 {offsets = [0, 0], sizes = [8, 128], strides = [1, 1]} : vector<8x512xf32> to vector<8x128xf32>
    %533 = arith.negf %532 : vector<8x128xf32>
    %534 = math.exp %533 : vector<8x128xf32>
    %cst_309 = arith.constant 1.000000e+00 : f32
    %535 = vector.broadcast %cst_309 : f32 to vector<8x128xf32>
    %536 = arith.addf %535, %534 : vector<8x128xf32>
    %537 = arith.divf %535, %536 : vector<8x128xf32>
    %538 = vector.extract_strided_slice %531 {offsets = [0, 128], sizes = [8, 128], strides = [1, 1]} : vector<8x512xf32> to vector<8x128xf32>
    %539 = arith.negf %538 : vector<8x128xf32>
    %540 = math.exp %539 : vector<8x128xf32>
    %cst_310 = arith.constant 1.000000e+00 : f32
    %541 = vector.broadcast %cst_310 : f32 to vector<8x128xf32>
    %542 = arith.addf %541, %540 : vector<8x128xf32>
    %543 = arith.divf %541, %542 : vector<8x128xf32>
    %544 = vector.extract_strided_slice %531 {offsets = [0, 256], sizes = [8, 128], strides = [1, 1]} : vector<8x512xf32> to vector<8x128xf32>
    %545 = math.tanh %544 : vector<8x128xf32>
    %546 = vector.extract_strided_slice %531 {offsets = [0, 384], sizes = [8, 128], strides = [1, 1]} : vector<8x512xf32> to vector<8x128xf32>
    %547 = arith.negf %546 : vector<8x128xf32>
    %548 = math.exp %547 : vector<8x128xf32>
    %cst_311 = arith.constant 1.000000e+00 : f32
    %549 = vector.broadcast %cst_311 : f32 to vector<8x128xf32>
    %550 = arith.addf %549, %548 : vector<8x128xf32>
    %551 = arith.divf %549, %550 : vector<8x128xf32>
    %552 = arith.mulf %543, %523 : vector<8x128xf32>
    %553 = arith.mulf %537, %545 : vector<8x128xf32>
    %554 = arith.addf %552, %553 : vector<8x128xf32>
    %555 = math.tanh %554 : vector<8x128xf32>
    %556 = arith.mulf %551, %555 : vector<8x128xf32>
    %c1_312 = arith.constant 1 : index
    %c0_313 = arith.constant 0 : index
    %c0_314 = arith.constant 0 : index
    %557 = vector.load %arg10[%c1_312, %c0_313, %c0_314] : memref<2x8x128xf32, #tpu.memory_space<vmem>>, vector<1x8x128xf32>
    %558 = vector.shape_cast %557 : vector<1x8x128xf32> to vector<8x128xf32>
    %559 = vector.shape_cast %554 : vector<8x128xf32> to vector<1x8x128xf32>
    tpu.vector_store %arg10[%c1_312, %c0_313, %c0_314], %559 {strides = array<i32>} : memref<2x8x128xf32, #tpu.memory_space<vmem>>, vector<1x8x128xf32>,
    %c1_315 = arith.constant 1 : index
    %c0_316 = arith.constant 0 : index
    %c0_317 = arith.constant 0 : index
    %560 = vector.load %arg9[%c1_315, %c0_316, %c0_317] : memref<2x8x128xf32, #tpu.memory_space<vmem>>, vector<1x8x128xf32>
    %561 = vector.shape_cast %560 : vector<1x8x128xf32> to vector<8x128xf32>
    %562 = vector.shape_cast %556 : vector<8x128xf32> to vector<1x8x128xf32>
    tpu.vector_store %arg9[%c1_315, %c0_316, %c0_317], %562 {strides = array<i32>} : memref<2x8x128xf32, #tpu.memory_space<vmem>>, vector<1x8x128xf32>,
    %c4_i32_318 = arith.constant 4 : i32
    %c1_319 = arith.constant 1 : index
    %c0_320 = arith.constant 0 : index
    %c0_321 = arith.constant 0 : index
    %563 = vector.load %arg9[%c1_319, %c0_320, %c0_321] : memref<2x8x128xf32, #tpu.memory_space<vmem>>, vector<1x8x128xf32>
    %564 = vector.shape_cast %563 : vector<1x8x128xf32> to vector<8x128xf32>
    %c1_322 = arith.constant 1 : index
    %c0_323 = arith.constant 0 : index
    %c0_324 = arith.constant 0 : index
    %565 = vector.load %arg10[%c1_322, %c0_323, %c0_324] : memref<2x8x128xf32, #tpu.memory_space<vmem>>, vector<1x8x128xf32>
    %566 = vector.shape_cast %565 : vector<1x8x128xf32> to vector<8x128xf32>
    %567 = arith.index_cast %c4_i32_318 : i32 to index
    %c0_325 = arith.constant 0 : index
    %c0_326 = arith.constant 0 : index
    %568 = vector.load %arg7[%567, %c0_325, %c0_326] : memref<8x8x128xf32, #tpu.memory_space<vmem>>, vector<1x8x128xf32>
    %569 = vector.shape_cast %568 : vector<1x8x128xf32> to vector<8x128xf32>
    %c0_327 = arith.constant 0 : index
    %c0_328 = arith.constant 0 : index
    %570 = vector.load %arg8[%c0_327, %c0_328] : memref<8x256xf32, #tpu.memory_space<vmem>>, vector<8x128xf32>
    tpu.vector_store %arg8[%c0_327, %c0_328], %569 {strides = array<i32>} : memref<8x256xf32, #tpu.memory_space<vmem>>, vector<8x128xf32>,
    %c0_329 = arith.constant 0 : index
    %c128_330 = arith.constant 128 : index
    %571 = vector.load %arg8[%c0_329, %c128_330] : memref<8x256xf32, #tpu.memory_space<vmem>>, vector<8x128xf32>
    tpu.vector_store %arg8[%c0_329, %c128_330], %564 {strides = array<i32>} : memref<8x256xf32, #tpu.memory_space<vmem>>, vector<8x128xf32>,
    %c0_331 = arith.constant 0 : index
    %c0_332 = arith.constant 0 : index
    %572 = vector.load %arg8[%c0_331, %c0_332] : memref<8x256xf32, #tpu.memory_space<vmem>>, vector<8x256xf32>
    %cst_333 = arith.constant dense<0.000000e+00> : vector<8x512xf32>
    %573 = tpu.matmul %572, %386, %cst_333 {dimension_numbers = #tpu.dot_dimension_numbers<[1], [0], [0], [1], [0, 0, 1, 1], [], []>} : vector<8x256xf32>, vector<256x512xf32>, vector<8x512xf32> -> vector<8x512xf32>
    %574 = arith.addf %573, %390 : vector<8x512xf32>
    %575 = vector.extract_strided_slice %574 {offsets = [0, 0], sizes = [8, 128], strides = [1, 1]} : vector<8x512xf32> to vector<8x128xf32>
    %576 = arith.negf %575 : vector<8x128xf32>
    %577 = math.exp %576 : vector<8x128xf32>
    %cst_334 = arith.constant 1.000000e+00 : f32
    %578 = vector.broadcast %cst_334 : f32 to vector<8x128xf32>
    %579 = arith.addf %578, %577 : vector<8x128xf32>
    %580 = arith.divf %578, %579 : vector<8x128xf32>
    %581 = vector.extract_strided_slice %574 {offsets = [0, 128], sizes = [8, 128], strides = [1, 1]} : vector<8x512xf32> to vector<8x128xf32>
    %582 = arith.negf %581 : vector<8x128xf32>
    %583 = math.exp %582 : vector<8x128xf32>
    %cst_335 = arith.constant 1.000000e+00 : f32
    %584 = vector.broadcast %cst_335 : f32 to vector<8x128xf32>
    %585 = arith.addf %584, %583 : vector<8x128xf32>
    %586 = arith.divf %584, %585 : vector<8x128xf32>
    %587 = vector.extract_strided_slice %574 {offsets = [0, 256], sizes = [8, 128], strides = [1, 1]} : vector<8x512xf32> to vector<8x128xf32>
    %588 = math.tanh %587 : vector<8x128xf32>
    %589 = vector.extract_strided_slice %574 {offsets = [0, 384], sizes = [8, 128], strides = [1, 1]} : vector<8x512xf32> to vector<8x128xf32>
    %590 = arith.negf %589 : vector<8x128xf32>
    %591 = math.exp %590 : vector<8x128xf32>
    %cst_336 = arith.constant 1.000000e+00 : f32
    %592 = vector.broadcast %cst_336 : f32 to vector<8x128xf32>
    %593 = arith.addf %592, %591 : vector<8x128xf32>
    %594 = arith.divf %592, %593 : vector<8x128xf32>
    %595 = arith.mulf %586, %566 : vector<8x128xf32>
    %596 = arith.mulf %580, %588 : vector<8x128xf32>
    %597 = arith.addf %595, %596 : vector<8x128xf32>
    %598 = math.tanh %597 : vector<8x128xf32>
    %599 = arith.mulf %594, %598 : vector<8x128xf32>
    %c1_337 = arith.constant 1 : index
    %c0_338 = arith.constant 0 : index
    %c0_339 = arith.constant 0 : index
    %600 = vector.load %arg10[%c1_337, %c0_338, %c0_339] : memref<2x8x128xf32, #tpu.memory_space<vmem>>, vector<1x8x128xf32>
    %601 = vector.shape_cast %600 : vector<1x8x128xf32> to vector<8x128xf32>
    %602 = vector.shape_cast %597 : vector<8x128xf32> to vector<1x8x128xf32>
    tpu.vector_store %arg10[%c1_337, %c0_338, %c0_339], %602 {strides = array<i32>} : memref<2x8x128xf32, #tpu.memory_space<vmem>>, vector<1x8x128xf32>,
    %c1_340 = arith.constant 1 : index
    %c0_341 = arith.constant 0 : index
    %c0_342 = arith.constant 0 : index
    %603 = vector.load %arg9[%c1_340, %c0_341, %c0_342] : memref<2x8x128xf32, #tpu.memory_space<vmem>>, vector<1x8x128xf32>
    %604 = vector.shape_cast %603 : vector<1x8x128xf32> to vector<8x128xf32>
    %605 = vector.shape_cast %599 : vector<8x128xf32> to vector<1x8x128xf32>
    tpu.vector_store %arg9[%c1_340, %c0_341, %c0_342], %605 {strides = array<i32>} : memref<2x8x128xf32, #tpu.memory_space<vmem>>, vector<1x8x128xf32>,
    %c5_i32_343 = arith.constant 5 : i32
    %c1_344 = arith.constant 1 : index
    %c0_345 = arith.constant 0 : index
    %c0_346 = arith.constant 0 : index
    %606 = vector.load %arg9[%c1_344, %c0_345, %c0_346] : memref<2x8x128xf32, #tpu.memory_space<vmem>>, vector<1x8x128xf32>
    %607 = vector.shape_cast %606 : vector<1x8x128xf32> to vector<8x128xf32>
    %c1_347 = arith.constant 1 : index
    %c0_348 = arith.constant 0 : index
    %c0_349 = arith.constant 0 : index
    %608 = vector.load %arg10[%c1_347, %c0_348, %c0_349] : memref<2x8x128xf32, #tpu.memory_space<vmem>>, vector<1x8x128xf32>
    %609 = vector.shape_cast %608 : vector<1x8x128xf32> to vector<8x128xf32>
    %610 = arith.index_cast %c5_i32_343 : i32 to index
    %c0_350 = arith.constant 0 : index
    %c0_351 = arith.constant 0 : index
    %611 = vector.load %arg7[%610, %c0_350, %c0_351] : memref<8x8x128xf32, #tpu.memory_space<vmem>>, vector<1x8x128xf32>
    %612 = vector.shape_cast %611 : vector<1x8x128xf32> to vector<8x128xf32>
    %c0_352 = arith.constant 0 : index
    %c0_353 = arith.constant 0 : index
    %613 = vector.load %arg8[%c0_352, %c0_353] : memref<8x256xf32, #tpu.memory_space<vmem>>, vector<8x128xf32>
    tpu.vector_store %arg8[%c0_352, %c0_353], %612 {strides = array<i32>} : memref<8x256xf32, #tpu.memory_space<vmem>>, vector<8x128xf32>,
    %c0_354 = arith.constant 0 : index
    %c128_355 = arith.constant 128 : index
    %614 = vector.load %arg8[%c0_354, %c128_355] : memref<8x256xf32, #tpu.memory_space<vmem>>, vector<8x128xf32>
    tpu.vector_store %arg8[%c0_354, %c128_355], %607 {strides = array<i32>} : memref<8x256xf32, #tpu.memory_space<vmem>>, vector<8x128xf32>,
    %c0_356 = arith.constant 0 : index
    %c0_357 = arith.constant 0 : index
    %615 = vector.load %arg8[%c0_356, %c0_357] : memref<8x256xf32, #tpu.memory_space<vmem>>, vector<8x256xf32>
    %cst_358 = arith.constant dense<0.000000e+00> : vector<8x512xf32>
    %616 = tpu.matmul %615, %386, %cst_358 {dimension_numbers = #tpu.dot_dimension_numbers<[1], [0], [0], [1], [0, 0, 1, 1], [], []>} : vector<8x256xf32>, vector<256x512xf32>, vector<8x512xf32> -> vector<8x512xf32>
    %617 = arith.addf %616, %390 : vector<8x512xf32>
    %618 = vector.extract_strided_slice %617 {offsets = [0, 0], sizes = [8, 128], strides = [1, 1]} : vector<8x512xf32> to vector<8x128xf32>
    %619 = arith.negf %618 : vector<8x128xf32>
    %620 = math.exp %619 : vector<8x128xf32>
    %cst_359 = arith.constant 1.000000e+00 : f32
    %621 = vector.broadcast %cst_359 : f32 to vector<8x128xf32>
    %622 = arith.addf %621, %620 : vector<8x128xf32>
    %623 = arith.divf %621, %622 : vector<8x128xf32>
    %624 = vector.extract_strided_slice %617 {offsets = [0, 128], sizes = [8, 128], strides = [1, 1]} : vector<8x512xf32> to vector<8x128xf32>
    %625 = arith.negf %624 : vector<8x128xf32>
    %626 = math.exp %625 : vector<8x128xf32>
    %cst_360 = arith.constant 1.000000e+00 : f32
    %627 = vector.broadcast %cst_360 : f32 to vector<8x128xf32>
    %628 = arith.addf %627, %626 : vector<8x128xf32>
    %629 = arith.divf %627, %628 : vector<8x128xf32>
    %630 = vector.extract_strided_slice %617 {offsets = [0, 256], sizes = [8, 128], strides = [1, 1]} : vector<8x512xf32> to vector<8x128xf32>
    %631 = math.tanh %630 : vector<8x128xf32>
    %632 = vector.extract_strided_slice %617 {offsets = [0, 384], sizes = [8, 128], strides = [1, 1]} : vector<8x512xf32> to vector<8x128xf32>
    %633 = arith.negf %632 : vector<8x128xf32>
    %634 = math.exp %633 : vector<8x128xf32>
    %cst_361 = arith.constant 1.000000e+00 : f32
    %635 = vector.broadcast %cst_361 : f32 to vector<8x128xf32>
    %636 = arith.addf %635, %634 : vector<8x128xf32>
    %637 = arith.divf %635, %636 : vector<8x128xf32>
    %638 = arith.mulf %629, %609 : vector<8x128xf32>
    %639 = arith.mulf %623, %631 : vector<8x128xf32>
    %640 = arith.addf %638, %639 : vector<8x128xf32>
    %641 = math.tanh %640 : vector<8x128xf32>
    %642 = arith.mulf %637, %641 : vector<8x128xf32>
    %c1_362 = arith.constant 1 : index
    %c0_363 = arith.constant 0 : index
    %c0_364 = arith.constant 0 : index
    %643 = vector.load %arg10[%c1_362, %c0_363, %c0_364] : memref<2x8x128xf32, #tpu.memory_space<vmem>>, vector<1x8x128xf32>
    %644 = vector.shape_cast %643 : vector<1x8x128xf32> to vector<8x128xf32>
    %645 = vector.shape_cast %640 : vector<8x128xf32> to vector<1x8x128xf32>
    tpu.vector_store %arg10[%c1_362, %c0_363, %c0_364], %645 {strides = array<i32>} : memref<2x8x128xf32, #tpu.memory_space<vmem>>, vector<1x8x128xf32>,
    %c1_365 = arith.constant 1 : index
    %c0_366 = arith.constant 0 : index
    %c0_367 = arith.constant 0 : index
    %646 = vector.load %arg9[%c1_365, %c0_366, %c0_367] : memref<2x8x128xf32, #tpu.memory_space<vmem>>, vector<1x8x128xf32>
    %647 = vector.shape_cast %646 : vector<1x8x128xf32> to vector<8x128xf32>
    %648 = vector.shape_cast %642 : vector<8x128xf32> to vector<1x8x128xf32>
    tpu.vector_store %arg9[%c1_365, %c0_366, %c0_367], %648 {strides = array<i32>} : memref<2x8x128xf32, #tpu.memory_space<vmem>>, vector<1x8x128xf32>,
    %c6_i32_368 = arith.constant 6 : i32
    %c1_369 = arith.constant 1 : index
    %c0_370 = arith.constant 0 : index
    %c0_371 = arith.constant 0 : index
    %649 = vector.load %arg9[%c1_369, %c0_370, %c0_371] : memref<2x8x128xf32, #tpu.memory_space<vmem>>, vector<1x8x128xf32>
    %650 = vector.shape_cast %649 : vector<1x8x128xf32> to vector<8x128xf32>
    %c1_372 = arith.constant 1 : index
    %c0_373 = arith.constant 0 : index
    %c0_374 = arith.constant 0 : index
    %651 = vector.load %arg10[%c1_372, %c0_373, %c0_374] : memref<2x8x128xf32, #tpu.memory_space<vmem>>, vector<1x8x128xf32>
    %652 = vector.shape_cast %651 : vector<1x8x128xf32> to vector<8x128xf32>
    %653 = arith.index_cast %c6_i32_368 : i32 to index
    %c0_375 = arith.constant 0 : index
    %c0_376 = arith.constant 0 : index
    %654 = vector.load %arg7[%653, %c0_375, %c0_376] : memref<8x8x128xf32, #tpu.memory_space<vmem>>, vector<1x8x128xf32>
    %655 = vector.shape_cast %654 : vector<1x8x128xf32> to vector<8x128xf32>
    %c0_377 = arith.constant 0 : index
    %c0_378 = arith.constant 0 : index
    %656 = vector.load %arg8[%c0_377, %c0_378] : memref<8x256xf32, #tpu.memory_space<vmem>>, vector<8x128xf32>
    tpu.vector_store %arg8[%c0_377, %c0_378], %655 {strides = array<i32>} : memref<8x256xf32, #tpu.memory_space<vmem>>, vector<8x128xf32>,
    %c0_379 = arith.constant 0 : index
    %c128_380 = arith.constant 128 : index
    %657 = vector.load %arg8[%c0_379, %c128_380] : memref<8x256xf32, #tpu.memory_space<vmem>>, vector<8x128xf32>
    tpu.vector_store %arg8[%c0_379, %c128_380], %650 {strides = array<i32>} : memref<8x256xf32, #tpu.memory_space<vmem>>, vector<8x128xf32>,
    %c0_381 = arith.constant 0 : index
    %c0_382 = arith.constant 0 : index
    %658 = vector.load %arg8[%c0_381, %c0_382] : memref<8x256xf32, #tpu.memory_space<vmem>>, vector<8x256xf32>
    %cst_383 = arith.constant dense<0.000000e+00> : vector<8x512xf32>
    %659 = tpu.matmul %658, %386, %cst_383 {dimension_numbers = #tpu.dot_dimension_numbers<[1], [0], [0], [1], [0, 0, 1, 1], [], []>} : vector<8x256xf32>, vector<256x512xf32>, vector<8x512xf32> -> vector<8x512xf32>
    %660 = arith.addf %659, %390 : vector<8x512xf32>
    %661 = vector.extract_strided_slice %660 {offsets = [0, 0], sizes = [8, 128], strides = [1, 1]} : vector<8x512xf32> to vector<8x128xf32>
    %662 = arith.negf %661 : vector<8x128xf32>
    %663 = math.exp %662 : vector<8x128xf32>
    %cst_384 = arith.constant 1.000000e+00 : f32
    %664 = vector.broadcast %cst_384 : f32 to vector<8x128xf32>
    %665 = arith.addf %664, %663 : vector<8x128xf32>
    %666 = arith.divf %664, %665 : vector<8x128xf32>
    %667 = vector.extract_strided_slice %660 {offsets = [0, 128], sizes = [8, 128], strides = [1, 1]} : vector<8x512xf32> to vector<8x128xf32>
    %668 = arith.negf %667 : vector<8x128xf32>
    %669 = math.exp %668 : vector<8x128xf32>
    %cst_385 = arith.constant 1.000000e+00 : f32
    %670 = vector.broadcast %cst_385 : f32 to vector<8x128xf32>
    %671 = arith.addf %670, %669 : vector<8x128xf32>
    %672 = arith.divf %670, %671 : vector<8x128xf32>
    %673 = vector.extract_strided_slice %660 {offsets = [0, 256], sizes = [8, 128], strides = [1, 1]} : vector<8x512xf32> to vector<8x128xf32>
    %674 = math.tanh %673 : vector<8x128xf32>
    %675 = vector.extract_strided_slice %660 {offsets = [0, 384], sizes = [8, 128], strides = [1, 1]} : vector<8x512xf32> to vector<8x128xf32>
    %676 = arith.negf %675 : vector<8x128xf32>
    %677 = math.exp %676 : vector<8x128xf32>
    %cst_386 = arith.constant 1.000000e+00 : f32
    %678 = vector.broadcast %cst_386 : f32 to vector<8x128xf32>
    %679 = arith.addf %678, %677 : vector<8x128xf32>
    %680 = arith.divf %678, %679 : vector<8x128xf32>
    %681 = arith.mulf %672, %652 : vector<8x128xf32>
    %682 = arith.mulf %666, %674 : vector<8x128xf32>
    %683 = arith.addf %681, %682 : vector<8x128xf32>
    %684 = math.tanh %683 : vector<8x128xf32>
    %685 = arith.mulf %680, %684 : vector<8x128xf32>
    %c1_387 = arith.constant 1 : index
    %c0_388 = arith.constant 0 : index
    %c0_389 = arith.constant 0 : index
    %686 = vector.load %arg10[%c1_387, %c0_388, %c0_389] : memref<2x8x128xf32, #tpu.memory_space<vmem>>, vector<1x8x128xf32>
    %687 = vector.shape_cast %686 : vector<1x8x128xf32> to vector<8x128xf32>
    %688 = vector.shape_cast %683 : vector<8x128xf32> to vector<1x8x128xf32>
    tpu.vector_store %arg10[%c1_387, %c0_388, %c0_389], %688 {strides = array<i32>} : memref<2x8x128xf32, #tpu.memory_space<vmem>>, vector<1x8x128xf32>,
    %c1_390 = arith.constant 1 : index
    %c0_391 = arith.constant 0 : index
    %c0_392 = arith.constant 0 : index
    %689 = vector.load %arg9[%c1_390, %c0_391, %c0_392] : memref<2x8x128xf32, #tpu.memory_space<vmem>>, vector<1x8x128xf32>
    %690 = vector.shape_cast %689 : vector<1x8x128xf32> to vector<8x128xf32>
    %691 = vector.shape_cast %685 : vector<8x128xf32> to vector<1x8x128xf32>
    tpu.vector_store %arg9[%c1_390, %c0_391, %c0_392], %691 {strides = array<i32>} : memref<2x8x128xf32, #tpu.memory_space<vmem>>, vector<1x8x128xf32>,
    %c7_i32_393 = arith.constant 7 : i32
    %c1_394 = arith.constant 1 : index
    %c0_395 = arith.constant 0 : index
    %c0_396 = arith.constant 0 : index
    %692 = vector.load %arg9[%c1_394, %c0_395, %c0_396] : memref<2x8x128xf32, #tpu.memory_space<vmem>>, vector<1x8x128xf32>
    %693 = vector.shape_cast %692 : vector<1x8x128xf32> to vector<8x128xf32>
    %c1_397 = arith.constant 1 : index
    %c0_398 = arith.constant 0 : index
    %c0_399 = arith.constant 0 : index
    %694 = vector.load %arg10[%c1_397, %c0_398, %c0_399] : memref<2x8x128xf32, #tpu.memory_space<vmem>>, vector<1x8x128xf32>
    %695 = vector.shape_cast %694 : vector<1x8x128xf32> to vector<8x128xf32>
    %696 = arith.index_cast %c7_i32_393 : i32 to index
    %c0_400 = arith.constant 0 : index
    %c0_401 = arith.constant 0 : index
    %697 = vector.load %arg7[%696, %c0_400, %c0_401] : memref<8x8x128xf32, #tpu.memory_space<vmem>>, vector<1x8x128xf32>
    %698 = vector.shape_cast %697 : vector<1x8x128xf32> to vector<8x128xf32>
    %c0_402 = arith.constant 0 : index
    %c0_403 = arith.constant 0 : index
    %699 = vector.load %arg8[%c0_402, %c0_403] : memref<8x256xf32, #tpu.memory_space<vmem>>, vector<8x128xf32>
    tpu.vector_store %arg8[%c0_402, %c0_403], %698 {strides = array<i32>} : memref<8x256xf32, #tpu.memory_space<vmem>>, vector<8x128xf32>,
    %c0_404 = arith.constant 0 : index
    %c128_405 = arith.constant 128 : index
    %700 = vector.load %arg8[%c0_404, %c128_405] : memref<8x256xf32, #tpu.memory_space<vmem>>, vector<8x128xf32>
    tpu.vector_store %arg8[%c0_404, %c128_405], %693 {strides = array<i32>} : memref<8x256xf32, #tpu.memory_space<vmem>>, vector<8x128xf32>,
    %c0_406 = arith.constant 0 : index
    %c0_407 = arith.constant 0 : index
    %701 = vector.load %arg8[%c0_406, %c0_407] : memref<8x256xf32, #tpu.memory_space<vmem>>, vector<8x256xf32>
    %cst_408 = arith.constant dense<0.000000e+00> : vector<8x512xf32>
    %702 = tpu.matmul %701, %386, %cst_408 {dimension_numbers = #tpu.dot_dimension_numbers<[1], [0], [0], [1], [0, 0, 1, 1], [], []>} : vector<8x256xf32>, vector<256x512xf32>, vector<8x512xf32> -> vector<8x512xf32>
    %703 = arith.addf %702, %390 : vector<8x512xf32>
    %704 = vector.extract_strided_slice %703 {offsets = [0, 0], sizes = [8, 128], strides = [1, 1]} : vector<8x512xf32> to vector<8x128xf32>
    %705 = arith.negf %704 : vector<8x128xf32>
    %706 = math.exp %705 : vector<8x128xf32>
    %cst_409 = arith.constant 1.000000e+00 : f32
    %707 = vector.broadcast %cst_409 : f32 to vector<8x128xf32>
    %708 = arith.addf %707, %706 : vector<8x128xf32>
    %709 = arith.divf %707, %708 : vector<8x128xf32>
    %710 = vector.extract_strided_slice %703 {offsets = [0, 128], sizes = [8, 128], strides = [1, 1]} : vector<8x512xf32> to vector<8x128xf32>
    %711 = arith.negf %710 : vector<8x128xf32>
    %712 = math.exp %711 : vector<8x128xf32>
    %cst_410 = arith.constant 1.000000e+00 : f32
    %713 = vector.broadcast %cst_410 : f32 to vector<8x128xf32>
    %714 = arith.addf %713, %712 : vector<8x128xf32>
    %715 = arith.divf %713, %714 : vector<8x128xf32>
    %716 = vector.extract_strided_slice %703 {offsets = [0, 256], sizes = [8, 128], strides = [1, 1]} : vector<8x512xf32> to vector<8x128xf32>
    %717 = math.tanh %716 : vector<8x128xf32>
    %718 = vector.extract_strided_slice %703 {offsets = [0, 384], sizes = [8, 128], strides = [1, 1]} : vector<8x512xf32> to vector<8x128xf32>
    %719 = arith.negf %718 : vector<8x128xf32>
    %720 = math.exp %719 : vector<8x128xf32>
    %cst_411 = arith.constant 1.000000e+00 : f32
    %721 = vector.broadcast %cst_411 : f32 to vector<8x128xf32>
    %722 = arith.addf %721, %720 : vector<8x128xf32>
    %723 = arith.divf %721, %722 : vector<8x128xf32>
    %724 = arith.mulf %715, %695 : vector<8x128xf32>
    %725 = arith.mulf %709, %717 : vector<8x128xf32>
    %726 = arith.addf %724, %725 : vector<8x128xf32>
    %727 = math.tanh %726 : vector<8x128xf32>
    %728 = arith.mulf %723, %727 : vector<8x128xf32>
    %c1_412 = arith.constant 1 : index
    %c0_413 = arith.constant 0 : index
    %c0_414 = arith.constant 0 : index
    %729 = vector.load %arg10[%c1_412, %c0_413, %c0_414] : memref<2x8x128xf32, #tpu.memory_space<vmem>>, vector<1x8x128xf32>
    %730 = vector.shape_cast %729 : vector<1x8x128xf32> to vector<8x128xf32>
    %731 = vector.shape_cast %726 : vector<8x128xf32> to vector<1x8x128xf32>
    tpu.vector_store %arg10[%c1_412, %c0_413, %c0_414], %731 {strides = array<i32>} : memref<2x8x128xf32, #tpu.memory_space<vmem>>, vector<1x8x128xf32>,
    %c1_415 = arith.constant 1 : index
    %c0_416 = arith.constant 0 : index
    %c0_417 = arith.constant 0 : index
    %732 = vector.load %arg9[%c1_415, %c0_416, %c0_417] : memref<2x8x128xf32, #tpu.memory_space<vmem>>, vector<1x8x128xf32>
    %733 = vector.shape_cast %732 : vector<1x8x128xf32> to vector<8x128xf32>
    %734 = vector.shape_cast %728 : vector<8x128xf32> to vector<1x8x128xf32>
    tpu.vector_store %arg9[%c1_415, %c0_416, %c0_417], %734 {strides = array<i32>} : memref<2x8x128xf32, #tpu.memory_space<vmem>>, vector<1x8x128xf32>,
    %c8_i32_418 = arith.constant 8 : i32
    %c0_i32_419 = arith.constant 0 : i32
    %735 = arith.cmpi eq, %arg0, %c0_i32_419 : i32
    %736 = arith.extui %735 : i1 to i32
    %c0_i32_420 = arith.constant 0 : i32
    %737 = arith.cmpi ne, %736, %c0_i32_420 : i32
    scf.if %737 {
      %c1_421 = arith.constant 1 : index
      %c0_422 = arith.constant 0 : index
      %c0_423 = arith.constant 0 : index
      %738 = vector.load %arg9[%c1_421, %c0_422, %c0_423] : memref<2x8x128xf32, #tpu.memory_space<vmem>>, vector<1x8x128xf32>
      %739 = vector.shape_cast %738 : vector<1x8x128xf32> to vector<8x128xf32>
      %c0_424 = arith.constant 0 : index
      %c0_425 = arith.constant 0 : index
      %740 = vector.load %arg4[%c0_424, %c0_425] : memref<128x128xf32, #tpu.memory_space<vmem>>, vector<128x128xf32>
      %cst_426 = arith.constant dense<0.000000e+00> : vector<8x128xf32>
      %741 = tpu.matmul %739, %740, %cst_426 {dimension_numbers = #tpu.dot_dimension_numbers<[1], [0], [0], [1], [0, 0, 1, 1], [], []>} : vector<8x128xf32>, vector<128x128xf32>, vector<8x128xf32> -> vector<8x128xf32>
      %c0_427 = arith.constant 0 : index
      %c0_428 = arith.constant 0 : index
      %742 = vector.load %arg5[%c0_427, %c0_428] : memref<1x128xf32, #tpu.memory_space<vmem>>, vector<1x128xf32>
      %743 = vector.broadcast %742 : vector<1x128xf32> to vector<8x128xf32>
      %744 = arith.addf %741, %743 : vector<8x128xf32>
      %c0_429 = arith.constant 0 : index
      %c0_430 = arith.constant 0 : index
      %745 = vector.load %arg6[%c0_429, %c0_430] : memref<8x128xf32, #tpu.memory_space<vmem>>, vector<8x128xf32>
      tpu.vector_store %arg6[%c0_429, %c0_430], %744 {strides = array<i32>} : memref<8x128xf32, #tpu.memory_space<vmem>>, vector<8x128xf32>,
    } else {
    }
    return
  }
  func.func @transform_0(%arg0: i32) -> (i32, i32, i32) {
    %c0_i32 = arith.constant 0 : i32
    %c0_i32_0 = arith.constant 0 : i32
    %c0_i32_1 = arith.constant 0 : i32
    return %arg0, %c0_i32, %c0_i32_0 : i32, i32, i32
  }
  func.func @transform_1(%arg0: i32) -> (i32, i32, i32) {
    %c0_i32 = arith.constant 0 : i32
    %c0_i32_0 = arith.constant 0 : i32
    %c0_i32_1 = arith.constant 0 : i32
    %c0_i32_2 = arith.constant 0 : i32
    return %c0_i32, %c0_i32_0, %c0_i32_1 : i32, i32, i32
  }
  func.func @transform_2(%arg0: i32) -> (i32, i32, i32) {
    %c0_i32 = arith.constant 0 : i32
    %c0_i32_0 = arith.constant 0 : i32
    %c0_i32_1 = arith.constant 0 : i32
    %c0_i32_2 = arith.constant 0 : i32
    return %c0_i32, %c0_i32_0, %c0_i32_1 : i32, i32, i32
  }
  func.func @transform_3(%arg0: i32) -> (i32, i32) {
    %c0_i32 = arith.constant 0 : i32
    %c0_i32_0 = arith.constant 0 : i32
    %c0_i32_1 = arith.constant 0 : i32
    return %c0_i32, %c0_i32_0 : i32, i32
  }
  func.func @transform_4(%arg0: i32) -> (i32, i32) {
    %c0_i32 = arith.constant 0 : i32
    %c0_i32_0 = arith.constant 0 : i32
    %c0_i32_1 = arith.constant 0 : i32
    return %c0_i32, %c0_i32_0 : i32, i32
  }
  func.func @transform_5(%arg0: i32) -> (i32, i32) {
    %c0_i32 = arith.constant 0 : i32
    %c0_i32_0 = arith.constant 0 : i32
    %c0_i32_1 = arith.constant 0 : i32
    return %c0_i32, %c0_i32_0 : i32, i32
  }
}

</mosaic_0001>

<llo_original>
// kernel: lstm_classifier_forward.1
$region0: #{lstm_classifier_forward.1}
  #allocation0 [shape = 'u32[]', space=smem, size = 0x4, offset = 0x4, fixed_abs, tag = 'smem constant byte address 0x4 - core index']
  #allocation1 [shape = 'u32[144,128]{1,0:T(1,128)}', space=vmem, size = 0x12000, scoped, tag = 'internal scratch']
  #allocation2 [shape = 'f32[8,8,128]{2,1,0:T(8,128)}', space=vmem, size = 0x8000, scoped, tag = 'scratch operand']
  #allocation3 [shape = 'f32[8,256]{1,0:T(8,128)}', space=vmem, size = 0x2000, scoped, tag = 'scratch operand']
  #allocation4 [shape = 'f32[2,8,128]{2,1,0:T(8,128)}', space=vmem, size = 0x2000, scoped, tag = 'scratch operand']
  #allocation5 [shape = 'f32[2,8,128]{2,1,0:T(8,128)}', space=vmem, size = 0x2000, scoped, tag = 'scratch operand']
  %s0 = inlined_call_operand.vmem [shape: f32[8,8,128], index: 0, kind: input, shape index: {}]
  %s1 = inlined_call_operand.hbm [shape: f32[2,256,512], index: 1, kind: input, shape index: {}]
  %s2 = inlined_call_operand.vmem [shape: f32[2,1,512], index: 2, kind: input, shape index: {}]
  %s3 = inlined_call_operand.hbm [shape: f32[128,128], index: 3, kind: input, shape index: {}]
  %s4 = inlined_call_operand.vmem [shape: f32[1,128], index: 4, kind: input, shape index: {}]
  %s5 = inlined_call_operand.vmem [shape: f32[8,128], index: 5, kind: output, shape index: {}]
  %s6 = sld [smem:[#allocation0]]
  $region46: #{lstm_classifier_forward.1} parent=0
    _
  %s8 = ssub.s32 1, %s6
  %s9 = scalar_select 0, %s8, %s6
  $region1: #{lstm_classifier_forward.1} parent=0
    #allocation6 [shape = 'u8[1048576]{0}', space=vmem, size = 0x100000, scoped, tag = 'input window, operand 1, single buffered']
    #allocation7 [shape = 's32[1]{0}', space=sflag, size = 0x4, scoped, tag = 'scoped memory for lstm_classifier_forward.1']
    #allocation8 [shape = 'u8[65536]{0}', space=vmem, size = 0x10000, scoped, tag = 'input window, operand 3, single buffered']
    #allocation9 [shape = 's32[1]{0}', space=sflag, size = 0x4, scoped, tag = 'scoped memory for lstm_classifier_forward.1']
    %10 = vsyncpa [#allocation7], 0
    %11 = vsyncpa [#allocation9], 0
    // Predicated region
    $region2: #{lstm_classifier_forward.1} parent=1 // pred_check
      _
    $region3: #{lstm_classifier_forward.1} parent=1 // pred_check_branch
      %13 = sbr.rel (0) target = $region5
    $region4: #{lstm_classifier_forward.1} parent=1 // pred_region
      _
    $region5: #{lstm_classifier_forward.1} parent=1 // pred_fallthru
      _
    // Predicated region
    $region6: #{lstm_classifier_forward.1} parent=1 // pred_check
      _
    $region7: #{lstm_classifier_forward.1} parent=1 // pred_check_branch
      %15 = sbr.rel (0) target = $region9
    $region8: #{lstm_classifier_forward.1} parent=1 // pred_region
      %s17 = ssub.s32 32768, 32768
      %18 = vsyncadd [#allocation7], %s17
      %s19 = sshll.u32 [#allocation6], 4
      %s20 = int_to_ptr.vmem [resolvable:$true] %s19
      %25 = dma.hbm_to_vmem [thread:$0]  %s1, 32768, %s20, [#allocation7], 512, 512, 32
    $region9: #{lstm_classifier_forward.1} parent=1 // pred_fallthru
      _
    // Predicated region
    $region10: #{lstm_classifier_forward.1} parent=1 // pred_check
      _
    $region11: #{lstm_classifier_forward.1} parent=1 // pred_check_branch
      %27 = sbr.rel (0) target = $region13
    $region12: #{lstm_classifier_forward.1} parent=1 // pred_region
      _
    $region13: #{lstm_classifier_forward.1} parent=1 // pred_fallthru
      _
    // Predicated region
    $region14: #{lstm_classifier_forward.1} parent=1 // pred_check
      _
    $region15: #{lstm_classifier_forward.1} parent=1 // pred_check_branch
      %29 = sbr.rel (0) target = $region17
    $region16: #{lstm_classifier_forward.1} parent=1 // pred_region
      %s31 = ssub.s32 2048, 2048
      %32 = vsyncadd [#allocation9], %s31
      %s33 = sshll.u32 [#allocation8], 4
      %s34 = int_to_ptr.vmem [resolvable:$true] %s33
      %39 = dma.hbm_to_vmem [thread:$0]  %s3, 2048, %s34, [#allocation9], 128, 128, 8
    $region17: #{lstm_classifier_forward.1} parent=1 // pred_fallthru
      _
    // Predicated region
    $region18: #{lstm_classifier_forward.1} parent=1 // pred_check
      _
    $region19: #{lstm_classifier_forward.1} parent=1 // pred_check_branch
      %41 = sbr.rel (0) target = $region21
    $region20: #{lstm_classifier_forward.1} parent=1 // pred_region
      _
    $region21: #{lstm_classifier_forward.1} parent=1 // pred_fallthru
      _
    // Predicated region
    $region22: #{lstm_classifier_forward.1} parent=1 // pred_check
      _
    $region23: #{lstm_classifier_forward.1} parent=1 // pred_check_branch
      %43 = sbr.rel (0) target = $region25
    $region24: #{lstm_classifier_forward.1} parent=1 // pred_region
      %44 = dma.done [#allocation7], 32768
    $region25: #{lstm_classifier_forward.1} parent=1 // pred_fallthru
      _
    // Predicated region
    $region26: #{lstm_classifier_forward.1} parent=1 // pred_check
      _
    $region27: #{lstm_classifier_forward.1} parent=1 // pred_check_branch
      %46 = sbr.rel (0) target = $region29
    $region28: #{lstm_classifier_forward.1} parent=1 // pred_region
      %47 = dma.done [#allocation9], 2048
    $region29: #{lstm_classifier_forward.1} parent=1 // pred_fallthru
      _
    %p48 = scmp.eq.s32.totalorder 0, 0
    // Predicated region
    $region30: #{lstm_classifier_forward.1} parent=1 // pred_check
      %p49 = pneg %p48
    $region31: #{lstm_classifier_forward.1} parent=1 // pred_check_branch
      %51 = sbr.rel (%p49) target = $region33
    $region32: #{lstm_classifier_forward.1} parent=1 // pred_region
      %52 = vst [vmem:[#allocation4] sm:$0xff] 0.0
      %53 = vst [vmem:[#allocation4 + $0x8] sm:$0xff] 0.0
      %54 = vst [vmem:[#allocation5] sm:$0xff] 0.0
      %55 = vst [vmem:[#allocation5 + $0x8] sm:$0xff] 0.0
    $region33: #{lstm_classifier_forward.1} parent=1 // pred_fallthru
      _
    %v56 = vld [vmem:[#allocation6] sm:$0xff]
    %v57 = vld [vmem:[#allocation6 + $0x8] sm:$0xff]
    %v58 = vld [vmem:[#allocation6 + $0x10] sm:$0xff]
    %v59 = vld [vmem:[#allocation6 + $0x18] sm:$0xff]
    %v60 = vld [vmem:[#allocation6 + $0x20] sm:$0xff]
    %v61 = vld [vmem:[#allocation6 + $0x28] sm:$0xff]
    %v62 = vld [vmem:[#allocation6 + $0x30] sm:$0xff]
    %v63 = vld [vmem:[#allocation6 + $0x38] sm:$0xff]
    %v64 = vld [vmem:[#allocation6 + $0x40] sm:$0xff]
    %v65 = vld [vmem:[#allocation6 + $0x48] sm:$0xff]
    %v66 = vld [vmem:[#allocation6 + $0x50] sm:$0xff]
    %v67 = vld [vmem:[#allocation6 + $0x58] sm:$0xff]
    %v68 = vld [vmem:[#allocation6 + $0x60] sm:$0xff]
    %v69 = vld [vmem:[#allocation6 + $0x68] sm:$0xff]
    %v70 = vld [vmem:[#allocation6 + $0x70] sm:$0xff]
    %v71 = vld [vmem:[#allocation6 + $0x78] sm:$0xff]
    %v72 = vld [vmem:[#allocation6 + $0x80] sm:$0xff]
    %v73 = vld [vmem:[#allocation6 + $0x88] sm:$0xff]
    %v74 = vld [vmem:[#allocation6 + $0x90] sm:$0xff]
    %v75 = vld [vmem:[#allocation6 + $0x98] sm:$0xff]
    %v76 = vld [vmem:[#allocation6 + $0xa0] sm:$0xff]
    %v77 = vld [vmem:[#allocation6 + $0xa8] sm:$0xff]
    %v78 = vld [vmem:[#allocation6 + $0xb0] sm:$0xff]
    %v79 = vld [vmem:[#allocation6 + $0xb8] sm:$0xff]
    %v80 = vld [vmem:[#allocation6 + $0xc0] sm:$0xff]
    %v81 = vld [vmem:[#allocation6 + $0xc8] sm:$0xff]
    %v82 = vld [vmem:[#allocation6 + $0xd0] sm:$0xff]
    %v83 = vld [vmem:[#allocation6 + $0xd8] sm:$0xff]
    %v84 = vld [vmem:[#allocation6 + $0xe0] sm:$0xff]
    %v85 = vld [vmem:[#allocation6 + $0xe8] sm:$0xff]
    %v86 = vld [vmem:[#allocation6 + $0xf0] sm:$0xff]
    %v87 = vld [vmem:[#allocation6 + $0xf8] sm:$0xff]
    %v88 = vld [vmem:[#allocation6 + $0x100] sm:$0xff]
    %v89 = vld [vmem:[#allocation6 + $0x108] sm:$0xff]
    %v90 = vld [vmem:[#allocation6 + $0x110] sm:$0xff]
    %v91 = vld [vmem:[#allocation6 + $0x118] sm:$0xff]
    %v92 = vld [vmem:[#allocation6 + $0x120] sm:$0xff]
    %v93 = vld [vmem:[#allocation6 + $0x128] sm:$0xff]
    %v94 = vld [vmem:[#allocation6 + $0x130] sm:$0xff]
    %v95 = vld [vmem:[#allocation6 + $0x138] sm:$0xff]
    %v96 = vld [vmem:[#allocation6 + $0x140] sm:$0xff]
    %v97 = vld [vmem:[#allocation6 + $0x148] sm:$0xff]
    %v98 = vld [vmem:[#allocation6 + $0x150] sm:$0xff]
    %v99 = vld [vmem:[#allocation6 + $0x158] sm:$0xff]
    %v100 = vld [vmem:[#allocation6 + $0x160] sm:$0xff]
    %v101 = vld [vmem:[#allocation6 + $0x168] sm:$0xff]
    %v102 = vld [vmem:[#allocation6 + $0x170] sm:$0xff]
    %v103 = vld [vmem:[#allocation6 + $0x178] sm:$0xff]
    %v104 = vld [vmem:[#allocation6 + $0x180] sm:$0xff]
    %v105 = vld [vmem:[#allocation6 + $0x188] sm:$0xff]
    %v106 = vld [vmem:[#allocation6 + $0x190] sm:$0xff]
    %v107 = vld [vmem:[#allocation6 + $0x198] sm:$0xff]
    %v108 = vld [vmem:[#allocation6 + $0x1a0] sm:$0xff]
    %v109 = vld [vmem:[#allocation6 + $0x1a8] sm:$0xff]
    %v110 = vld [vmem:[#allocation6 + $0x1b0] sm:$0xff]
    %v111 = vld [vmem:[#allocation6 + $0x1b8] sm:$0xff]
    %v112 = vld [vmem:[#allocation6 + $0x1c0] sm:$0xff]
    %v113 = vld [vmem:[#allocation6 + $0x1c8] sm:$0xff]
    %v114 = vld [vmem:[#allocation6 + $0x1d0] sm:$0xff]
    %v115 = vld [vmem:[#allocation6 + $0x1d8] sm:$0xff]
    %v116 = vld [vmem:[#allocation6 + $0x1e0] sm:$0xff]
    %v117 = vld [vmem:[#allocation6 + $0x1e8] sm:$0xff]
    %v118 = vld [vmem:[#allocation6 + $0x1f0] sm:$0xff]
    %v119 = vld [vmem:[#allocation6 + $0x1f8] sm:$0xff]
    %v120 = vld [vmem:[#allocation6 + $0x200] sm:$0xff]
    %v121 = vld [vmem:[#allocation6 + $0x208] sm:$0xff]
    %v122 = vld [vmem:[#allocation6 + $0x210] sm:$0xff]
    %v123 = vld [vmem:[#allocation6 + $0x218] sm:$0xff]
    %v124 = vld [vmem:[#allocation6 + $0x220] sm:$0xff]
    %v125 = vld [vmem:[#allocation6 + $0x228] sm:$0xff]
    %v126 = vld [vmem:[#allocation6 + $0x230] sm:$0xff]
    %v127 = vld [vmem:[#allocation6 + $0x238] sm:$0xff]
    %v128 = vld [vmem:[#allocation6 + $0x240] sm:$0xff]
    %v129 = vld [vmem:[#allocation6 + $0x248] sm:$0xff]
    %v130 = vld [vmem:[#allocation6 + $0x250] sm:$0xff]
    %v131 = vld [vmem:[#allocation6 + $0x258] sm:$0xff]
    %v132 = vld [vmem:[#allocation6 + $0x260] sm:$0xff]
    %v133 = vld [vmem:[#allocation6 + $0x268] sm:$0xff]
    %v134 = vld [vmem:[#allocation6 + $0x270] sm:$0xff]
    %v135 = vld [vmem:[#allocation6 + $0x278] sm:$0xff]
    %v136 = vld [vmem:[#allocation6 + $0x280] sm:$0xff]
    %v137 = vld [vmem:[#allocation6 + $0x288] sm:$0xff]
    %v138 = vld [vmem:[#allocation6 + $0x290] sm:$0xff]
    %v139 = vld [vmem:[#allocation6 + $0x298] sm:$0xff]
    %v140 = vld [vmem:[#allocation6 + $0x2a0] sm:$0xff]
    %v141 = vld [vmem:[#allocation6 + $0x2a8] sm:$0xff]
    %v142 = vld [vmem:[#allocation6 + $0x2b0] sm:$0xff]
    %v143 = vld [vmem:[#allocation6 + $0x2b8] sm:$0xff]
    %v144 = vld [vmem:[#allocation6 + $0x2c0] sm:$0xff]
    %v145 = vld [vmem:[#allocation6 + $0x2c8] sm:$0xff]
    %v146 = vld [vmem:[#allocation6 + $0x2d0] sm:$0xff]
    %v147 = vld [vmem:[#allocation6 + $0x2d8] sm:$0xff]
    %v148 = vld [vmem:[#allocation6 + $0x2e0] sm:$0xff]
    %v149 = vld [vmem:[#allocation6 + $0x2e8] sm:$0xff]
    %v150 = vld [vmem:[#allocation6 + $0x2f0] sm:$0xff]
    %v151 = vld [vmem:[#allocation6 + $0x2f8] sm:$0xff]
    %v152 = vld [vmem:[#allocation6 + $0x300] sm:$0xff]
    %v153 = vld [vmem:[#allocation6 + $0x308] sm:$0xff]
    %v154 = vld [vmem:[#allocation6 + $0x310] sm:$0xff]
    %v155 = vld [vmem:[#allocation6 + $0x318] sm:$0xff]
    %v156 = vld [vmem:[#allocation6 + $0x320] sm:$0xff]
    %v157 = vld [vmem:[#allocation6 + $0x328] sm:$0xff]
    %v158 = vld [vmem:[#allocation6 + $0x330] sm:$0xff]
    %v159 = vld [vmem:[#allocation6 + $0x338] sm:$0xff]
    %v160 = vld [vmem:[#allocation6 + $0x340] sm:$0xff]
    %v161 = vld [vmem:[#allocation6 + $0x348] sm:$0xff]
    %v162 = vld [vmem:[#allocation6 + $0x350] sm:$0xff]
    %v163 = vld [vmem:[#allocation6 + $0x358] sm:$0xff]
    %v164 = vld [vmem:[#allocation6 + $0x360] sm:$0xff]
    %v165 = vld [vmem:[#allocation6 + $0x368] sm:$0xff]
    %v166 = vld [vmem:[#allocation6 + $0x370] sm:$0xff]
    %v167 = vld [vmem:[#allocation6 + $0x378] sm:$0xff]
    %v168 = vld [vmem:[#allocation6 + $0x380] sm:$0xff]
    %v169 = vld [vmem:[#allocation6 + $0x388] sm:$0xff]
    %v170 = vld [vmem:[#allocation6 + $0x390] sm:$0xff]
    %v171 = vld [vmem:[#allocation6 + $0x398] sm:$0xff]
    %v172 = vld [vmem:[#allocation6 + $0x3a0] sm:$0xff]
    %v173 = vld [vmem:[#allocation6 + $0x3a8] sm:$0xff]
    %v174 = vld [vmem:[#allocation6 + $0x3b0] sm:$0xff]
    %v175 = vld [vmem:[#allocation6 + $0x3b8] sm:$0xff]
    %v176 = vld [vmem:[#allocation6 + $0x3c0] sm:$0xff]
    %v177 = vld [vmem:[#allocation6 + $0x3c8] sm:$0xff]
    %v178 = vld [vmem:[#allocation6 + $0x3d0] sm:$0xff]
    %v179 = vld [vmem:[#allocation6 + $0x3d8] sm:$0xff]
    %v180 = vld [vmem:[#allocation6 + $0x3e0] sm:$0xff]
    %v181 = vld [vmem:[#allocation6 + $0x3e8] sm:$0xff]
    %v182 = vld [vmem:[#allocation6 + $0x3f0] sm:$0xff]
    %v183 = vld [vmem:[#allocation6 + $0x3f8] sm:$0xff]
    %v184 = vld [vmem:[%s2] sm:$0xf]
    %v186 = vlaneseq
    %v187 = vshrl.u32 %v186, 7
    %v188 = vsub.s32 0, %v187
    %v189 = vrot.slane %v184, %v188
    %v190 = vlaneseq
    %v191 = vshrl.u32 %v190, 7
    %v192 = vsub.s32 1, %v191
    %v193 = vrot.slane %v184, %v192
    %v194 = vlaneseq
    %v195 = vshrl.u32 %v194, 7
    %v196 = vsub.s32 2, %v195
    %v197 = vrot.slane %v184, %v196
    %v198 = vlaneseq
    %v199 = vshrl.u32 %v198, 7
    %v200 = vsub.s32 3, %v199
    %v201 = vrot.slane %v184, %v200
    %v206 = vld [vmem:[#allocation4] sm:$0xff]
    %v207 = vld [vmem:[#allocation5] sm:$0xff]
    %v208 = vld [vmem:[%s0] sm:$0xff]
    %209 = vst [vmem:[#allocation3] sm:$0xff] %v208
    %210 = vst [vmem:[#allocation3 + $0x8] sm:$0xff] %v206
    %v211 = vld [vmem:[#allocation3] sm:$0xff]
    %v212 = vld [vmem:[#allocation3 + $0x8] sm:$0xff]
    %213 = vmatprep.subr.mxu0 %v57
    %214 = vmatpush1.msra.mxu0 %v56
    %215 = vmatprep.subr.mxu0 %v61
    %216 = vmatpush1.msra.mxu0 %v60
    %217 = vmatprep.subr.mxu0 %v65
    %218 = vmatpush1.msra.mxu0 %v64
    %219 = vmatprep.subr.mxu0 %v69
    %220 = vmatpush1.msra.mxu0 %v68
    %221 = vmatprep.subr.mxu0 %v73
    %222 = vmatpush1.msra.mxu0 %v72
    %223 = vmatprep.subr.mxu0 %v77
    %224 = vmatpush1.msra.mxu0 %v76
    %225 = vmatprep.subr.mxu0 %v81
    %226 = vmatpush1.msra.mxu0 %v80
    %227 = vmatprep.subr.mxu0 %v85
    %228 = vmatpush1.msra.mxu0 %v84
    %229 = vmatprep.subr.mxu0 %v89
    %230 = vmatpush1.msra.mxu0 %v88
    %231 = vmatprep.subr.mxu0 %v93
    %232 = vmatpush1.msra.mxu0 %v92
    %233 = vmatprep.subr.mxu0 %v97
    %234 = vmatpush1.msra.mxu0 %v96
    %235 = vmatprep.subr.mxu0 %v101
    %236 = vmatpush1.msra.mxu0 %v100
    %237 = vmatprep.subr.mxu0 %v105
    %238 = vmatpush1.msra.mxu0 %v104
    %239 = vmatprep.subr.mxu0 %v109
    %240 = vmatpush1.msra.mxu0 %v108
    %241 = vmatprep.subr.mxu0 %v113
    %242 = vmatpush1.msra.mxu0 %v112
    %243 = vmatprep.subr.mxu0 %v117
    %244 = vmatpush1.msra.mxu0 %v116
    %245 = vmatprep.subr.mxu0 %v121
    %246 = vmatpush1.msra.mxu0 %v120
    %247 = vmatprep.subr.mxu0 %v125
    %248 = vmatpush1.msra.mxu0 %v124
    %249 = vmatprep.subr.mxu0 %v129
    %250 = vmatpush1.msra.mxu0 %v128
    %251 = vmatprep.subr.mxu0 %v133
    %252 = vmatpush1.msra.mxu0 %v132
    %253 = vmatprep.subr.mxu0 %v137
    %254 = vmatpush1.msra.mxu0 %v136
    %255 = vmatprep.subr.mxu0 %v141
    %256 = vmatpush1.msra.mxu0 %v140
    %257 = vmatprep.subr.mxu0 %v145
    %258 = vmatpush1.msra.mxu0 %v144
    %259 = vmatprep.subr.mxu0 %v149
    %260 = vmatpush1.msra.mxu0 %v148
    %261 = vmatprep.subr.mxu0 %v153
    %262 = vmatpush1.msra.mxu0 %v152
    %263 = vmatprep.subr.mxu0 %v157
    %264 = vmatpush1.msra.mxu0 %v156
    %265 = vmatprep.subr.mxu0 %v161
    %266 = vmatpush1.msra.mxu0 %v160
    %267 = vmatprep.subr.mxu0 %v165
    %268 = vmatpush1.msra.mxu0 %v164
    %269 = vmatprep.subr.mxu0 %v169
    %270 = vmatpush1.msra.mxu0 %v168
    %271 = vmatprep.subr.mxu0 %v173
    %272 = vmatpush1.msra.mxu0 %v172
    %273 = vmatprep.subr.mxu0 %v177
    %274 = vmatpush1.msra.mxu0 %v176
    %275 = vmatprep.subr.mxu0 %v181
    %276 = vmatpush1.msra.mxu0 %v180
    %277 = vmatprep.mubr.f32.mxu0 %v212
    %278 = vmatmul.mubr.f32.gmra.mrb[0].mxu0 %v211
    %v279 = vpop.f32.mrb[0].mxu0
    %v280 = vadd.f32 %v189, %v279
    %v281 = vpop.f32.mrb[0].mxu0
    %v282 = vadd.f32 %v193, %v281
    %283 = vdwg.mxu0
    %284 = vmatprep.subr.mxu0 %v59
    %285 = vmatpush1.msra.mxu0 %v58
    %286 = vmatprep.subr.mxu0 %v63
    %287 = vmatpush1.msra.mxu0 %v62
    %288 = vmatprep.subr.mxu0 %v67
    %289 = vmatpush1.msra.mxu0 %v66
    %290 = vmatprep.subr.mxu0 %v71
    %291 = vmatpush1.msra.mxu0 %v70
    %292 = vmatprep.subr.mxu0 %v75
    %293 = vmatpush1.msra.mxu0 %v74
    %294 = vmatprep.subr.mxu0 %v79
    %295 = vmatpush1.msra.mxu0 %v78
    %296 = vmatprep.subr.mxu0 %v83
    %297 = vmatpush1.msra.mxu0 %v82
    %298 = vmatprep.subr.mxu0 %v87
    %299 = vmatpush1.msra.mxu0 %v86
    %300 = vmatprep.subr.mxu0 %v91
    %301 = vmatpush1.msra.mxu0 %v90
    %302 = vmatprep.subr.mxu0 %v95
    %303 = vmatpush1.msra.mxu0 %v94
    %304 = vmatprep.subr.mxu0 %v99
    %305 = vmatpush1.msra.mxu0 %v98
    %306 = vmatprep.subr.mxu0 %v103
    %307 = vmatpush1.msra.mxu0 %v102
    %308 = vmatprep.subr.mxu0 %v107
    %309 = vmatpush1.msra.mxu0 %v106
    %310 = vmatprep.subr.mxu0 %v111
    %311 = vmatpush1.msra.mxu0 %v110
    %312 = vmatprep.subr.mxu0 %v115
    %313 = vmatpush1.msra.mxu0 %v114
    %314 = vmatprep.subr.mxu0 %v119
    %315 = vmatpush1.msra.mxu0 %v118
    %316 = vmatprep.subr.mxu0 %v123
    %317 = vmatpush1.msra.mxu0 %v122
    %318 = vmatprep.subr.mxu0 %v127
    %319 = vmatpush1.msra.mxu0 %v126
    %320 = vmatprep.subr.mxu0 %v131
    %321 = vmatpush1.msra.mxu0 %v130
    %322 = vmatprep.subr.mxu0 %v135
    %323 = vmatpush1.msra.mxu0 %v134
    %324 = vmatprep.subr.mxu0 %v139
    %325 = vmatpush1.msra.mxu0 %v138
    %326 = vmatprep.subr.mxu0 %v143
    %327 = vmatpush1.msra.mxu0 %v142
    %328 = vmatprep.subr.mxu0 %v147
    %329 = vmatpush1.msra.mxu0 %v146
    %330 = vmatprep.subr.mxu0 %v151
    %331 = vmatpush1.msra.mxu0 %v150
    %332 = vmatprep.subr.mxu0 %v155
    %333 = vmatpush1.msra.mxu0 %v154
    %334 = vmatprep.subr.mxu0 %v159
    %335 = vmatpush1.msra.mxu0 %v158
    %336 = vmatprep.subr.mxu0 %v163
    %337 = vmatpush1.msra.mxu0 %v162
    %338 = vmatprep.subr.mxu0 %v167
    %339 = vmatpush1.msra.mxu0 %v166
    %340 = vmatprep.subr.mxu0 %v171
    %341 = vmatpush1.msra.mxu0 %v170
    %342 = vmatprep.subr.mxu0 %v175
    %343 = vmatpush1.msra.mxu0 %v174
    %344 = vmatprep.subr.mxu0 %v179
    %345 = vmatpush1.msra.mxu0 %v178
    %346 = vmatprep.subr.mxu0 %v183
    %347 = vmatpush1.msra.mxu0 %v182
    %348 = vmatprep.mubr.f32.mxu0 %v212
    %349 = vmatmul.mubr.f32.gmra.mrb[0].mxu0 %v211
    %v350 = vpop.f32.mrb[0].mxu0
    %v351 = vadd.f32 %v197, %v350
    %v352 = vpop.f32.mrb[0].mxu0
    %v353 = vadd.f32 %v201, %v352
    %354 = vdwg.mxu0
    %v355 = vxor.u32 %v280, 2147483648
    %v356 = vmul.f32 %v355, 1.442695
    %v357 = vpow.pop %v356
    %v358 = vadd.f32 %v357, 1.0
    %v359 = vrcp.pop %v358
    %v360 = vmul.f32 1.0, %v359
    %v361 = vxor.u32 %v282, 2147483648
    %v362 = vmul.f32 %v361, 1.442695
    %v363 = vpow.pop %v362
    %v364 = vadd.f32 %v363, 1.0
    %v365 = vrcp.pop %v364
    %v366 = vmul.f32 1.0, %v365
    %v367 = vtanh.pop %v351
    %v368 = vxor.u32 %v353, 2147483648
    %v369 = vmul.f32 %v368, 1.442695
    %v370 = vpow.pop %v369
    %v371 = vadd.f32 %v370, 1.0
    %v372 = vrcp.pop %v371
    %v373 = vmul.f32 1.0, %v372
    %v374 = vmul.f32 %v366, %v207
    %v375 = vmul.f32 %v360, %v367
    %v376 = vadd.f32 %v374, %v375
    %v377 = vtanh.pop %v376
    %v378 = vmul.f32 %v373, %v377
    %379 = vst [vmem:[#allocation5] sm:$0xff] %v376
    %380 = vst [vmem:[#allocation4] sm:$0xff] %v378
    %381 = vst [vmem:[#allocation2] sm:$0xff] %v378
    %v382 = vld [vmem:[#allocation4] sm:$0xff]
    %v383 = vld [vmem:[#allocation5] sm:$0xff]
    %s384 = scalar_lea.vmem %s0, 8
    %v385 = vld [vmem:[%s384] sm:$0xff]
    %386 = vst [vmem:[#allocation3] sm:$0xff] %v385
    %387 = vst [vmem:[#allocation3 + $0x8] sm:$0xff] %v382
    %v388 = vld [vmem:[#allocation3] sm:$0xff]
    %v389 = vld [vmem:[#allocation3 + $0x8] sm:$0xff]
    %390 = vmatprep.subr.mxu0 %v57
    %391 = vmatpush1.msra.mxu0 %v56
    %392 = vmatprep.subr.mxu0 %v61
    %393 = vmatpush1.msra.mxu0 %v60
    %394 = vmatprep.subr.mxu0 %v65
    %395 = vmatpush1.msra.mxu0 %v64
    %396 = vmatprep.subr.mxu0 %v69
    %397 = vmatpush1.msra.mxu0 %v68
    %398 = vmatprep.subr.mxu0 %v73
    %399 = vmatpush1.msra.mxu0 %v72
    %400 = vmatprep.subr.mxu0 %v77
    %401 = vmatpush1.msra.mxu0 %v76
    %402 = vmatprep.subr.mxu0 %v81
    %403 = vmatpush1.msra.mxu0 %v80
    %404 = vmatprep.subr.mxu0 %v85
    %405 = vmatpush1.msra.mxu0 %v84
    %406 = vmatprep.subr.mxu0 %v89
    %407 = vmatpush1.msra.mxu0 %v88
    %408 = vmatprep.subr.mxu0 %v93
    %409 = vmatpush1.msra.mxu0 %v92
    %410 = vmatprep.subr.mxu0 %v97
    %411 = vmatpush1.msra.mxu0 %v96
    %412 = vmatprep.subr.mxu0 %v101
    %413 = vmatpush1.msra.mxu0 %v100
    %414 = vmatprep.subr.mxu0 %v105
    %415 = vmatpush1.msra.mxu0 %v104
    %416 = vmatprep.subr.mxu0 %v109
    %417 = vmatpush1.msra.mxu0 %v108
    %418 = vmatprep.subr.mxu0 %v113
    %419 = vmatpush1.msra.mxu0 %v112
    %420 = vmatprep.subr.mxu0 %v117
    %421 = vmatpush1.msra.mxu0 %v116
    %422 = vmatprep.subr.mxu0 %v121
    %423 = vmatpush1.msra.mxu0 %v120
    %424 = vmatprep.subr.mxu0 %v125
    %425 = vmatpush1.msra.mxu0 %v124
    %426 = vmatprep.subr.mxu0 %v129
    %427 = vmatpush1.msra.mxu0 %v128
    %428 = vmatprep.subr.mxu0 %v133
    %429 = vmatpush1.msra.mxu0 %v132
    %430 = vmatprep.subr.mxu0 %v137
    %431 = vmatpush1.msra.mxu0 %v136
    %432 = vmatprep.subr.mxu0 %v141
    %433 = vmatpush1.msra.mxu0 %v140
    %434 = vmatprep.subr.mxu0 %v145
    %435 = vmatpush1.msra.mxu0 %v144
    %436 = vmatprep.subr.mxu0 %v149
    %437 = vmatpush1.msra.mxu0 %v148
    %438 = vmatprep.subr.mxu0 %v153
    %439 = vmatpush1.msra.mxu0 %v152
    %440 = vmatprep.subr.mxu0 %v157
    %441 = vmatpush1.msra.mxu0 %v156
    %442 = vmatprep.subr.mxu0 %v161
    %443 = vmatpush1.msra.mxu0 %v160
    %444 = vmatprep.subr.mxu0 %v165
    %445 = vmatpush1.msra.mxu0 %v164
    %446 = vmatprep.subr.mxu0 %v169
    %447 = vmatpush1.msra.mxu0 %v168
    %448 = vmatprep.subr.mxu0 %v173
    %449 = vmatpush1.msra.mxu0 %v172
    %450 = vmatprep.subr.mxu0 %v177
    %451 = vmatpush1.msra.mxu0 %v176
    %452 = vmatprep.subr.mxu0 %v181
    %453 = vmatpush1.msra.mxu0 %v180
    %454 = vmatprep.mubr.f32.mxu0 %v389
    %455 = vmatmul.mubr.f32.gmra.mrb[0].mxu0 %v388
    %v456 = vpop.f32.mrb[0].mxu0
    %v457 = vadd.f32 %v189, %v456
    %v458 = vpop.f32.mrb[0].mxu0
    %v459 = vadd.f32 %v193, %v458
    %460 = vdwg.mxu0
    %461 = vmatprep.subr.mxu0 %v59
    %462 = vmatpush1.msra.mxu0 %v58
    %463 = vmatprep.subr.mxu0 %v63
    %464 = vmatpush1.msra.mxu0 %v62
    %465 = vmatprep.subr.mxu0 %v67
    %466 = vmatpush1.msra.mxu0 %v66
    %467 = vmatprep.subr.mxu0 %v71
    %468 = vmatpush1.msra.mxu0 %v70
    %469 = vmatprep.subr.mxu0 %v75
    %470 = vmatpush1.msra.mxu0 %v74
    %471 = vmatprep.subr.mxu0 %v79
    %472 = vmatpush1.msra.mxu0 %v78
    %473 = vmatprep.subr.mxu0 %v83
    %474 = vmatpush1.msra.mxu0 %v82
    %475 = vmatprep.subr.mxu0 %v87
    %476 = vmatpush1.msra.mxu0 %v86
    %477 = vmatprep.subr.mxu0 %v91
    %478 = vmatpush1.msra.mxu0 %v90
    %479 = vmatprep.subr.mxu0 %v95
    %480 = vmatpush1.msra.mxu0 %v94
    %481 = vmatprep.subr.mxu0 %v99
    %482 = vmatpush1.msra.mxu0 %v98
    %483 = vmatprep.subr.mxu0 %v103
    %484 = vmatpush1.msra.mxu0 %v102
    %485 = vmatprep.subr.mxu0 %v107
    %486 = vmatpush1.msra.mxu0 %v106
    %487 = vmatprep.subr.mxu0 %v111
    %488 = vmatpush1.msra.mxu0 %v110
    %489 = vmatprep.subr.mxu0 %v115
    %490 = vmatpush1.msra.mxu0 %v114
    %491 = vmatprep.subr.mxu0 %v119
    %492 = vmatpush1.msra.mxu0 %v118
    %493 = vmatprep.subr.mxu0 %v123
    %494 = vmatpush1.msra.mxu0 %v122
    %495 = vmatprep.subr.mxu0 %v127
    %496 = vmatpush1.msra.mxu0 %v126
    %497 = vmatprep.subr.mxu0 %v131
    %498 = vmatpush1.msra.mxu0 %v130
    %499 = vmatprep.subr.mxu0 %v135
    %500 = vmatpush1.msra.mxu0 %v134
    %501 = vmatprep.subr.mxu0 %v139
    %502 = vmatpush1.msra.mxu0 %v138
    %503 = vmatprep.subr.mxu0 %v143
    %504 = vmatpush1.msra.mxu0 %v142
    %505 = vmatprep.subr.mxu0 %v147
    %506 = vmatpush1.msra.mxu0 %v146
    %507 = vmatprep.subr.mxu0 %v151
    %508 = vmatpush1.msra.mxu0 %v150
    %509 = vmatprep.subr.mxu0 %v155
    %510 = vmatpush1.msra.mxu0 %v154
    %511 = vmatprep.subr.mxu0 %v159
    %512 = vmatpush1.msra.mxu0 %v158
    %513 = vmatprep.subr.mxu0 %v163
    %514 = vmatpush1.msra.mxu0 %v162
    %515 = vmatprep.subr.mxu0 %v167
    %516 = vmatpush1.msra.mxu0 %v166
    %517 = vmatprep.subr.mxu0 %v171
    %518 = vmatpush1.msra.mxu0 %v170
    %519 = vmatprep.subr.mxu0 %v175
    %520 = vmatpush1.msra.mxu0 %v174
    %521 = vmatprep.subr.mxu0 %v179
    %522 = vmatpush1.msra.mxu0 %v178
    %523 = vmatprep.subr.mxu0 %v183
    %524 = vmatpush1.msra.mxu0 %v182
    %525 = vmatprep.mubr.f32.mxu0 %v389
    %526 = vmatmul.mubr.f32.gmra.mrb[0].mxu0 %v388
    %v527 = vpop.f32.mrb[0].mxu0
    %v528 = vadd.f32 %v197, %v527
    %v529 = vpop.f32.mrb[0].mxu0
    %v530 = vadd.f32 %v201, %v529
    %531 = vdwg.mxu0
    %v532 = vxor.u32 %v457, 2147483648
    %v533 = vmul.f32 %v532, 1.442695
    %v534 = vpow.pop %v533
    %v535 = vadd.f32 %v534, 1.0
    %v536 = vrcp.pop %v535
    %v537 = vmul.f32 1.0, %v536
    %v538 = vxor.u32 %v459, 2147483648
    %v539 = vmul.f32 %v538, 1.442695
    %v540 = vpow.pop %v539
    %v541 = vadd.f32 %v540, 1.0
    %v542 = vrcp.pop %v541
    %v543 = vmul.f32 1.0, %v542
    %v544 = vtanh.pop %v528
    %v545 = vxor.u32 %v530, 2147483648
    %v546 = vmul.f32 %v545, 1.442695
    %v547 = vpow.pop %v546
    %v548 = vadd.f32 %v547, 1.0
    %v549 = vrcp.pop %v548
    %v550 = vmul.f32 1.0, %v549
    %v551 = vmul.f32 %v543, %v383
    %v552 = vmul.f32 %v537, %v544
    %v553 = vadd.f32 %v551, %v552
    %v554 = vtanh.pop %v553
    %v555 = vmul.f32 %v550, %v554
    %556 = vst [vmem:[#allocation5] sm:$0xff] %v553
    %557 = vst [vmem:[#allocation4] sm:$0xff] %v555
    %s558 = scalar_lea.vmem [#allocation2], 8
    %559 = vst [vmem:[%s558] sm:$0xff] %v555
    %v560 = vld [vmem:[#allocation4] sm:$0xff]
    %v561 = vld [vmem:[#allocation5] sm:$0xff]
    %s562 = scalar_lea.vmem %s0, 16
    %v563 = vld [vmem:[%s562] sm:$0xff]
    %564 = vst [vmem:[#allocation3] sm:$0xff] %v563
    %565 = vst [vmem:[#allocation3 + $0x8] sm:$0xff] %v560
    %v566 = vld [vmem:[#allocation3] sm:$0xff]
    %v567 = vld [vmem:[#allocation3 + $0x8] sm:$0xff]
    %568 = vmatprep.subr.mxu0 %v57
    %569 = vmatpush1.msra.mxu0 %v56
    %570 = vmatprep.subr.mxu0 %v61
    %571 = vmatpush1.msra.mxu0 %v60
    %572 = vmatprep.subr.mxu0 %v65
    %573 = vmatpush1.msra.mxu0 %v64
    %574 = vmatprep.subr.mxu0 %v69
    %575 = vmatpush1.msra.mxu0 %v68
    %576 = vmatprep.subr.mxu0 %v73
    %577 = vmatpush1.msra.mxu0 %v72
    %578 = vmatprep.subr.mxu0 %v77
    %579 = vmatpush1.msra.mxu0 %v76
    %580 = vmatprep.subr.mxu0 %v81
    %581 = vmatpush1.msra.mxu0 %v80
    %582 = vmatprep.subr.mxu0 %v85
    %583 = vmatpush1.msra.mxu0 %v84
    %584 = vmatprep.subr.mxu0 %v89
    %585 = vmatpush1.msra.mxu0 %v88
    %586 = vmatprep.subr.mxu0 %v93
    %587 = vmatpush1.msra.mxu0 %v92
    %588 = vmatprep.subr.mxu0 %v97
    %589 = vmatpush1.msra.mxu0 %v96
    %590 = vmatprep.subr.mxu0 %v101
    %591 = vmatpush1.msra.mxu0 %v100
    %592 = vmatprep.subr.mxu0 %v105
    %593 = vmatpush1.msra.mxu0 %v104
    %594 = vmatprep.subr.mxu0 %v109
    %595 = vmatpush1.msra.mxu0 %v108
    %596 = vmatprep.subr.mxu0 %v113
    %597 = vmatpush1.msra.mxu0 %v112
    %598 = vmatprep.subr.mxu0 %v117
    %599 = vmatpush1.msra.mxu0 %v116
    %600 = vmatprep.subr.mxu0 %v121
    %601 = vmatpush1.msra.mxu0 %v120
    %602 = vmatprep.subr.mxu0 %v125
    %603 = vmatpush1.msra.mxu0 %v124
    %604 = vmatprep.subr.mxu0 %v129
    %605 = vmatpush1.msra.mxu0 %v128
    %606 = vmatprep.subr.mxu0 %v133
    %607 = vmatpush1.msra.mxu0 %v132
    %608 = vmatprep.subr.mxu0 %v137
    %609 = vmatpush1.msra.mxu0 %v136
    %610 = vmatprep.subr.mxu0 %v141
    %611 = vmatpush1.msra.mxu0 %v140
    %612 = vmatprep.subr.mxu0 %v145
    %613 = vmatpush1.msra.mxu0 %v144
    %614 = vmatprep.subr.mxu0 %v149
    %615 = vmatpush1.msra.mxu0 %v148
    %616 = vmatprep.subr.mxu0 %v153
    %617 = vmatpush1.msra.mxu0 %v152
    %618 = vmatprep.subr.mxu0 %v157
    %619 = vmatpush1.msra.mxu0 %v156
    %620 = vmatprep.subr.mxu0 %v161
    %621 = vmatpush1.msra.mxu0 %v160
    %622 = vmatprep.subr.mxu0 %v165
    %623 = vmatpush1.msra.mxu0 %v164
    %624 = vmatprep.subr.mxu0 %v169
    %625 = vmatpush1.msra.mxu0 %v168
    %626 = vmatprep.subr.mxu0 %v173
    %627 = vmatpush1.msra.mxu0 %v172
    %628 = vmatprep.subr.mxu0 %v177
    %629 = vmatpush1.msra.mxu0 %v176
    %630 = vmatprep.subr.mxu0 %v181
    %631 = vmatpush1.msra.mxu0 %v180
    %632 = vmatprep.mubr.f32.mxu0 %v567
    %633 = vmatmul.mubr.f32.gmra.mrb[0].mxu0 %v566
    %v634 = vpop.f32.mrb[0].mxu0
    %v635 = vadd.f32 %v189, %v634
    %v636 = vpop.f32.mrb[0].mxu0
    %v637 = vadd.f32 %v193, %v636
    %638 = vdwg.mxu0
    %639 = vmatprep.subr.mxu0 %v59
    %640 = vmatpush1.msra.mxu0 %v58
    %641 = vmatprep.subr.mxu0 %v63
    %642 = vmatpush1.msra.mxu0 %v62
    %643 = vmatprep.subr.mxu0 %v67
    %644 = vmatpush1.msra.mxu0 %v66
    %645 = vmatprep.subr.mxu0 %v71
    %646 = vmatpush1.msra.mxu0 %v70
    %647 = vmatprep.subr.mxu0 %v75
    %648 = vmatpush1.msra.mxu0 %v74
    %649 = vmatprep.subr.mxu0 %v79
    %650 = vmatpush1.msra.mxu0 %v78
    %651 = vmatprep.subr.mxu0 %v83
    %652 = vmatpush1.msra.mxu0 %v82
    %653 = vmatprep.subr.mxu0 %v87
    %654 = vmatpush1.msra.mxu0 %v86
    %655 = vmatprep.subr.mxu0 %v91
    %656 = vmatpush1.msra.mxu0 %v90
    %657 = vmatprep.subr.mxu0 %v95
    %658 = vmatpush1.msra.mxu0 %v94
    %659 = vmatprep.subr.mxu0 %v99
    %660 = vmatpush1.msra.mxu0 %v98
    %661 = vmatprep.subr.mxu0 %v103
    %662 = vmatpush1.msra.mxu0 %v102
    %663 = vmatprep.subr.mxu0 %v107
    %664 = vmatpush1.msra.mxu0 %v106
    %665 = vmatprep.subr.mxu0 %v111
    %666 = vmatpush1.msra.mxu0 %v110
    %667 = vmatprep.subr.mxu0 %v115
    %668 = vmatpush1.msra.mxu0 %v114
    %669 = vmatprep.subr.mxu0 %v119
    %670 = vmatpush1.msra.mxu0 %v118
    %671 = vmatprep.subr.mxu0 %v123
    %672 = vmatpush1.msra.mxu0 %v122
    %673 = vmatprep.subr.mxu0 %v127
    %674 = vmatpush1.msra.mxu0 %v126
    %675 = vmatprep.subr.mxu0 %v131
    %676 = vmatpush1.msra.mxu0 %v130
    %677 = vmatprep.subr.mxu0 %v135
    %678 = vmatpush1.msra.mxu0 %v134
    %679 = vmatprep.subr.mxu0 %v139
    %680 = vmatpush1.msra.mxu0 %v138
    %681 = vmatprep.subr.mxu0 %v143
    %682 = vmatpush1.msra.mxu0 %v142
    %683 = vmatprep.subr.mxu0 %v147
    %684 = vmatpush1.msra.mxu0 %v146
    %685 = vmatprep.subr.mxu0 %v151
    %686 = vmatpush1.msra.mxu0 %v150
    %687 = vmatprep.subr.mxu0 %v155
    %688 = vmatpush1.msra.mxu0 %v154
    %689 = vmatprep.subr.mxu0 %v159
    %690 = vmatpush1.msra.mxu0 %v158
    %691 = vmatprep.subr.mxu0 %v163
    %692 = vmatpush1.msra.mxu0 %v162
    %693 = vmatprep.subr.mxu0 %v167
    %694 = vmatpush1.msra.mxu0 %v166
    %695 = vmatprep.subr.mxu0 %v171
    %696 = vmatpush1.msra.mxu0 %v170
    %697 = vmatprep.subr.mxu0 %v175
    %698 = vmatpush1.msra.mxu0 %v174
    %699 = vmatprep.subr.mxu0 %v179
    %700 = vmatpush1.msra.mxu0 %v178
    %701 = vmatprep.subr.mxu0 %v183
    %702 = vmatpush1.msra.mxu0 %v182
    %703 = vmatprep.mubr.f32.mxu0 %v567
    %704 = vmatmul.mubr.f32.gmra.mrb[0].mxu0 %v566
    %v705 = vpop.f32.mrb[0].mxu0
    %v706 = vadd.f32 %v197, %v705
    %v707 = vpop.f32.mrb[0].mxu0
    %v708 = vadd.f32 %v201, %v707
    %709 = vdwg.mxu0
    %v710 = vxor.u32 %v635, 2147483648
    %v711 = vmul.f32 %v710, 1.442695
    %v712 = vpow.pop %v711
    %v713 = vadd.f32 %v712, 1.0
    %v714 = vrcp.pop %v713
    %v715 = vmul.f32 1.0, %v714
    %v716 = vxor.u32 %v637, 2147483648
    %v717 = vmul.f32 %v716, 1.442695
    %v718 = vpow.pop %v717
    %v719 = vadd.f32 %v718, 1.0
    %v720 = vrcp.pop %v719
    %v721 = vmul.f32 1.0, %v720
    %v722 = vtanh.pop %v706
    %v723 = vxor.u32 %v708, 2147483648
    %v724 = vmul.f32 %v723, 1.442695
    %v725 = vpow.pop %v724
    %v726 = vadd.f32 %v725, 1.0
    %v727 = vrcp.pop %v726
    %v728 = vmul.f32 1.0, %v727
    %v729 = vmul.f32 %v721, %v561
    %v730 = vmul.f32 %v715, %v722
    %v731 = vadd.f32 %v729, %v730
    %v732 = vtanh.pop %v731
    %v733 = vmul.f32 %v728, %v732
    %734 = vst [vmem:[#allocation5] sm:$0xff] %v731
    %735 = vst [vmem:[#allocation4] sm:$0xff] %v733
    %s736 = scalar_lea.vmem [#allocation2], 16
    %737 = vst [vmem:[%s736] sm:$0xff] %v733
    %v738 = vld [vmem:[#allocation4] sm:$0xff]
    %v739 = vld [vmem:[#allocation5] sm:$0xff]
    %s740 = scalar_lea.vmem %s0, 24
    %v741 = vld [vmem:[%s740] sm:$0xff]
    %742 = vst [vmem:[#allocation3] sm:$0xff] %v741
    %743 = vst [vmem:[#allocation3 + $0x8] sm:$0xff] %v738
    %v744 = vld [vmem:[#allocation3] sm:$0xff]
    %v745 = vld [vmem:[#allocation3 + $0x8] sm:$0xff]
    %746 = vmatprep.subr.mxu0 %v57
    %747 = vmatpush1.msra.mxu0 %v56
    %748 = vmatprep.subr.mxu0 %v61
    %749 = vmatpush1.msra.mxu0 %v60
    %750 = vmatprep.subr.mxu0 %v65
    %751 = vmatpush1.msra.mxu0 %v64
    %752 = vmatprep.subr.mxu0 %v69
    %753 = vmatpush1.msra.mxu0 %v68
    %754 = vmatprep.subr.mxu0 %v73
    %755 = vmatpush1.msra.mxu0 %v72
    %756 = vmatprep.subr.mxu0 %v77
    %757 = vmatpush1.msra.mxu0 %v76
    %758 = vmatprep.subr.mxu0 %v81
    %759 = vmatpush1.msra.mxu0 %v80
    %760 = vmatprep.subr.mxu0 %v85
    %761 = vmatpush1.msra.mxu0 %v84
    %762 = vmatprep.subr.mxu0 %v89
    %763 = vmatpush1.msra.mxu0 %v88
    %764 = vmatprep.subr.mxu0 %v93
    %765 = vmatpush1.msra.mxu0 %v92
    %766 = vmatprep.subr.mxu0 %v97
    %767 = vmatpush1.msra.mxu0 %v96
    %768 = vmatprep.subr.mxu0 %v101
    %769 = vmatpush1.msra.mxu0 %v100
    %770 = vmatprep.subr.mxu0 %v105
    %771 = vmatpush1.msra.mxu0 %v104
    %772 = vmatprep.subr.mxu0 %v109
    %773 = vmatpush1.msra.mxu0 %v108
    %774 = vmatprep.subr.mxu0 %v113
    %775 = vmatpush1.msra.mxu0 %v112
    %776 = vmatprep.subr.mxu0 %v117
    %777 = vmatpush1.msra.mxu0 %v116
    %778 = vmatprep.subr.mxu0 %v121
    %779 = vmatpush1.msra.mxu0 %v120
    %780 = vmatprep.subr.mxu0 %v125
    %781 = vmatpush1.msra.mxu0 %v124
    %782 = vmatprep.subr.mxu0 %v129
    %783 = vmatpush1.msra.mxu0 %v128
    %784 = vmatprep.subr.mxu0 %v133
    %785 = vmatpush1.msra.mxu0 %v132
    %786 = vmatprep.subr.mxu0 %v137
    %787 = vmatpush1.msra.mxu0 %v136
    %788 = vmatprep.subr.mxu0 %v141
    %789 = vmatpush1.msra.mxu0 %v140
    %790 = vmatprep.subr.mxu0 %v145
    %791 = vmatpush1.msra.mxu0 %v144
    %792 = vmatprep.subr.mxu0 %v149
    %793 = vmatpush1.msra.mxu0 %v148
    %794 = vmatprep.subr.mxu0 %v153
    %795 = vmatpush1.msra.mxu0 %v152
    %796 = vmatprep.subr.mxu0 %v157
    %797 = vmatpush1.msra.mxu0 %v156
    %798 = vmatprep.subr.mxu0 %v161
    %799 = vmatpush1.msra.mxu0 %v160
    %800 = vmatprep.subr.mxu0 %v165
    %801 = vmatpush1.msra.mxu0 %v164
    %802 = vmatprep.subr.mxu0 %v169
    %803 = vmatpush1.msra.mxu0 %v168
    %804 = vmatprep.subr.mxu0 %v173
    %805 = vmatpush1.msra.mxu0 %v172
    %806 = vmatprep.subr.mxu0 %v177
    %807 = vmatpush1.msra.mxu0 %v176
    %808 = vmatprep.subr.mxu0 %v181
    %809 = vmatpush1.msra.mxu0 %v180
    %810 = vmatprep.mubr.f32.mxu0 %v745
    %811 = vmatmul.mubr.f32.gmra.mrb[0].mxu0 %v744
    %v812 = vpop.f32.mrb[0].mxu0
    %v813 = vadd.f32 %v189, %v812
    %v814 = vpop.f32.mrb[0].mxu0
    %v815 = vadd.f32 %v193, %v814
    %816 = vdwg.mxu0
    %817 = vmatprep.subr.mxu0 %v59
    %818 = vmatpush1.msra.mxu0 %v58
    %819 = vmatprep.subr.mxu0 %v63
    %820 = vmatpush1.msra.mxu0 %v62
    %821 = vmatprep.subr.mxu0 %v67
    %822 = vmatpush1.msra.mxu0 %v66
    %823 = vmatprep.subr.mxu0 %v71
    %824 = vmatpush1.msra.mxu0 %v70
    %825 = vmatprep.subr.mxu0 %v75
    %826 = vmatpush1.msra.mxu0 %v74
    %827 = vmatprep.subr.mxu0 %v79
    %828 = vmatpush1.msra.mxu0 %v78
    %829 = vmatprep.subr.mxu0 %v83
    %830 = vmatpush1.msra.mxu0 %v82
    %831 = vmatprep.subr.mxu0 %v87
    %832 = vmatpush1.msra.mxu0 %v86
    %833 = vmatprep.subr.mxu0 %v91
    %834 = vmatpush1.msra.mxu0 %v90
    %835 = vmatprep.subr.mxu0 %v95
    %836 = vmatpush1.msra.mxu0 %v94
    %837 = vmatprep.subr.mxu0 %v99
    %838 = vmatpush1.msra.mxu0 %v98
    %839 = vmatprep.subr.mxu0 %v103
    %840 = vmatpush1.msra.mxu0 %v102
    %841 = vmatprep.subr.mxu0 %v107
    %842 = vmatpush1.msra.mxu0 %v106
    %843 = vmatprep.subr.mxu0 %v111
    %844 = vmatpush1.msra.mxu0 %v110
    %845 = vmatprep.subr.mxu0 %v115
    %846 = vmatpush1.msra.mxu0 %v114
    %847 = vmatprep.subr.mxu0 %v119
    %848 = vmatpush1.msra.mxu0 %v118
    %849 = vmatprep.subr.mxu0 %v123
    %850 = vmatpush1.msra.mxu0 %v122
    %851 = vmatprep.subr.mxu0 %v127
    %852 = vmatpush1.msra.mxu0 %v126
    %853 = vmatprep.subr.mxu0 %v131
    %854 = vmatpush1.msra.mxu0 %v130
    %855 = vmatprep.subr.mxu0 %v135
    %856 = vmatpush1.msra.mxu0 %v134
    %857 = vmatprep.subr.mxu0 %v139
    %858 = vmatpush1.msra.mxu0 %v138
    %859 = vmatprep.subr.mxu0 %v143
    %860 = vmatpush1.msra.mxu0 %v142
    %861 = vmatprep.subr.mxu0 %v147
    %862 = vmatpush1.msra.mxu0 %v146
    %863 = vmatprep.subr.mxu0 %v151
    %864 = vmatpush1.msra.mxu0 %v150
    %865 = vmatprep.subr.mxu0 %v155
    %866 = vmatpush1.msra.mxu0 %v154
    %867 = vmatprep.subr.mxu0 %v159
    %868 = vmatpush1.msra.mxu0 %v158
    %869 = vmatprep.subr.mxu0 %v163
    %870 = vmatpush1.msra.mxu0 %v162
    %871 = vmatprep.subr.mxu0 %v167
    %872 = vmatpush1.msra.mxu0 %v166
    %873 = vmatprep.subr.mxu0 %v171
    %874 = vmatpush1.msra.mxu0 %v170
    %875 = vmatprep.subr.mxu0 %v175
    %876 = vmatpush1.msra.mxu0 %v174
    %877 = vmatprep.subr.mxu0 %v179
    %878 = vmatpush1.msra.mxu0 %v178
    %879 = vmatprep.subr.mxu0 %v183
    %880 = vmatpush1.msra.mxu0 %v182
    %881 = vmatprep.mubr.f32.mxu0 %v745
    %882 = vmatmul.mubr.f32.gmra.mrb[0].mxu0 %v744
    %v883 = vpop.f32.mrb[0].mxu0
    %v884 = vadd.f32 %v197, %v883
    %v885 = vpop.f32.mrb[0].mxu0
    %v886 = vadd.f32 %v201, %v885
    %887 = vdwg.mxu0
    %v888 = vxor.u32 %v813, 2147483648
    %v889 = vmul.f32 %v888, 1.442695
    %v890 = vpow.pop %v889
    %v891 = vadd.f32 %v890, 1.0
    %v892 = vrcp.pop %v891
    %v893 = vmul.f32 1.0, %v892
    %v894 = vxor.u32 %v815, 2147483648
    %v895 = vmul.f32 %v894, 1.442695
    %v896 = vpow.pop %v895
    %v897 = vadd.f32 %v896, 1.0
    %v898 = vrcp.pop %v897
    %v899 = vmul.f32 1.0, %v898
    %v900 = vtanh.pop %v884
    %v901 = vxor.u32 %v886, 2147483648
    %v902 = vmul.f32 %v901, 1.442695
    %v903 = vpow.pop %v902
    %v904 = vadd.f32 %v903, 1.0
    %v905 = vrcp.pop %v904
    %v906 = vmul.f32 1.0, %v905
    %v907 = vmul.f32 %v899, %v739
    %v908 = vmul.f32 %v893, %v900
    %v909 = vadd.f32 %v907, %v908
    %v910 = vtanh.pop %v909
    %v911 = vmul.f32 %v906, %v910
    %912 = vst [vmem:[#allocation5] sm:$0xff] %v909
    %913 = vst [vmem:[#allocation4] sm:$0xff] %v911
    %s914 = scalar_lea.vmem [#allocation2], 24
    %915 = vst [vmem:[%s914] sm:$0xff] %v911
    %v916 = vld [vmem:[#allocation4] sm:$0xff]
    %v917 = vld [vmem:[#allocation5] sm:$0xff]
    %s918 = scalar_lea.vmem %s0, 32
    %v919 = vld [vmem:[%s918] sm:$0xff]
    %920 = vst [vmem:[#allocation3] sm:$0xff] %v919
    %921 = vst [vmem:[#allocation3 + $0x8] sm:$0xff] %v916
    %v922 = vld [vmem:[#allocation3] sm:$0xff]
    %v923 = vld [vmem:[#allocation3 + $0x8] sm:$0xff]
    %924 = vmatprep.subr.mxu0 %v57
    %925 = vmatpush1.msra.mxu0 %v56
    %926 = vmatprep.subr.mxu0 %v61
    %927 = vmatpush1.msra.mxu0 %v60
    %928 = vmatprep.subr.mxu0 %v65
    %929 = vmatpush1.msra.mxu0 %v64
    %930 = vmatprep.subr.mxu0 %v69
    %931 = vmatpush1.msra.mxu0 %v68
    %932 = vmatprep.subr.mxu0 %v73
    %933 = vmatpush1.msra.mxu0 %v72
    %934 = vmatprep.subr.mxu0 %v77
    %935 = vmatpush1.msra.mxu0 %v76
    %936 = vmatprep.subr.mxu0 %v81
    %937 = vmatpush1.msra.mxu0 %v80
    %938 = vmatprep.subr.mxu0 %v85
    %939 = vmatpush1.msra.mxu0 %v84
    %940 = vmatprep.subr.mxu0 %v89
    %941 = vmatpush1.msra.mxu0 %v88
    %942 = vmatprep.subr.mxu0 %v93
    %943 = vmatpush1.msra.mxu0 %v92
    %944 = vmatprep.subr.mxu0 %v97
    %945 = vmatpush1.msra.mxu0 %v96
    %946 = vmatprep.subr.mxu0 %v101
    %947 = vmatpush1.msra.mxu0 %v100
    %948 = vmatprep.subr.mxu0 %v105
    %949 = vmatpush1.msra.mxu0 %v104
    %950 = vmatprep.subr.mxu0 %v109
    %951 = vmatpush1.msra.mxu0 %v108
    %952 = vmatprep.subr.mxu0 %v113
    %953 = vmatpush1.msra.mxu0 %v112
    %954 = vmatprep.subr.mxu0 %v117
    %955 = vmatpush1.msra.mxu0 %v116
    %956 = vmatprep.subr.mxu0 %v121
    %957 = vmatpush1.msra.mxu0 %v120
    %958 = vmatprep.subr.mxu0 %v125
    %959 = vmatpush1.msra.mxu0 %v124
    %960 = vmatprep.subr.mxu0 %v129
    %961 = vmatpush1.msra.mxu0 %v128
    %962 = vmatprep.subr.mxu0 %v133
    %963 = vmatpush1.msra.mxu0 %v132
    %964 = vmatprep.subr.mxu0 %v137
    %965 = vmatpush1.msra.mxu0 %v136
    %966 = vmatprep.subr.mxu0 %v141
    %967 = vmatpush1.msra.mxu0 %v140
    %968 = vmatprep.subr.mxu0 %v145
    %969 = vmatpush1.msra.mxu0 %v144
    %970 = vmatprep.subr.mxu0 %v149
    %971 = vmatpush1.msra.mxu0 %v148
    %972 = vmatprep.subr.mxu0 %v153
    %973 = vmatpush1.msra.mxu0 %v152
    %974 = vmatprep.subr.mxu0 %v157
    %975 = vmatpush1.msra.mxu0 %v156
    %976 = vmatprep.subr.mxu0 %v161
    %977 = vmatpush1.msra.mxu0 %v160
    %978 = vmatprep.subr.mxu0 %v165
    %979 = vmatpush1.msra.mxu0 %v164
    %980 = vmatprep.subr.mxu0 %v169
    %981 = vmatpush1.msra.mxu0 %v168
    %982 = vmatprep.subr.mxu0 %v173
    %983 = vmatpush1.msra.mxu0 %v172
    %984 = vmatprep.subr.mxu0 %v177
    %985 = vmatpush1.msra.mxu0 %v176
    %986 = vmatprep.subr.mxu0 %v181
    %987 = vmatpush1.msra.mxu0 %v180
    %988 = vmatprep.mubr.f32.mxu0 %v923
    %989 = vmatmul.mubr.f32.gmra.mrb[0].mxu0 %v922
    %v990 = vpop.f32.mrb[0].mxu0
    %v991 = vadd.f32 %v189, %v990
    %v992 = vpop.f32.mrb[0].mxu0
    %v993 = vadd.f32 %v193, %v992
    %994 = vdwg.mxu0
    %995 = vmatprep.subr.mxu0 %v59
    %996 = vmatpush1.msra.mxu0 %v58
    %997 = vmatprep.subr.mxu0 %v63
    %998 = vmatpush1.msra.mxu0 %v62
    %999 = vmatprep.subr.mxu0 %v67
    %1000 = vmatpush1.msra.mxu0 %v66
    %1001 = vmatprep.subr.mxu0 %v71
    %1002 = vmatpush1.msra.mxu0 %v70
    %1003 = vmatprep.subr.mxu0 %v75
    %1004 = vmatpush1.msra.mxu0 %v74
    %1005 = vmatprep.subr.mxu0 %v79
    %1006 = vmatpush1.msra.mxu0 %v78
    %1007 = vmatprep.subr.mxu0 %v83
    %1008 = vmatpush1.msra.mxu0 %v82
    %1009 = vmatprep.subr.mxu0 %v87
    %1010 = vmatpush1.msra.mxu0 %v86
    %1011 = vmatprep.subr.mxu0 %v91
    %1012 = vmatpush1.msra.mxu0 %v90
    %1013 = vmatprep.subr.mxu0 %v95
    %1014 = vmatpush1.msra.mxu0 %v94
    %1015 = vmatprep.subr.mxu0 %v99
    %1016 = vmatpush1.msra.mxu0 %v98
    %1017 = vmatprep.subr.mxu0 %v103
    %1018 = vmatpush1.msra.mxu0 %v102
    %1019 = vmatprep.subr.mxu0 %v107
    %1020 = vmatpush1.msra.mxu0 %v106
    %1021 = vmatprep.subr.mxu0 %v111
    %1022 = vmatpush1.msra.mxu0 %v110
    %1023 = vmatprep.subr.mxu0 %v115
    %1024 = vmatpush1.msra.mxu0 %v114
    %1025 = vmatprep.subr.mxu0 %v119
    %1026 = vmatpush1.msra.mxu0 %v118
    %1027 = vmatprep.subr.mxu0 %v123
    %1028 = vmatpush1.msra.mxu0 %v122
    %1029 = vmatprep.subr.mxu0 %v127
    %1030 = vmatpush1.msra.mxu0 %v126
    %1031 = vmatprep.subr.mxu0 %v131
    %1032 = vmatpush1.msra.mxu0 %v130
    %1033 = vmatprep.subr.mxu0 %v135
    %1034 = vmatpush1.msra.mxu0 %v134
    %1035 = vmatprep.subr.mxu0 %v139
    %1036 = vmatpush1.msra.mxu0 %v138
    %1037 = vmatprep.subr.mxu0 %v143
    %1038 = vmatpush1.msra.mxu0 %v142
    %1039 = vmatprep.subr.mxu0 %v147
    %1040 = vmatpush1.msra.mxu0 %v146
    %1041 = vmatprep.subr.mxu0 %v151
    %1042 = vmatpush1.msra.mxu0 %v150
    %1043 = vmatprep.subr.mxu0 %v155
    %1044 = vmatpush1.msra.mxu0 %v154
    %1045 = vmatprep.subr.mxu0 %v159
    %1046 = vmatpush1.msra.mxu0 %v158
    %1047 = vmatprep.subr.mxu0 %v163
    %1048 = vmatpush1.msra.mxu0 %v162
    %1049 = vmatprep.subr.mxu0 %v167
    %1050 = vmatpush1.msra.mxu0 %v166
    %1051 = vmatprep.subr.mxu0 %v171
    %1052 = vmatpush1.msra.mxu0 %v170
    %1053 = vmatprep.subr.mxu0 %v175
    %1054 = vmatpush1.msra.mxu0 %v174
    %1055 = vmatprep.subr.mxu0 %v179
    %1056 = vmatpush1.msra.mxu0 %v178
    %1057 = vmatprep.subr.mxu0 %v183
    %1058 = vmatpush1.msra.mxu0 %v182
    %1059 = vmatprep.mubr.f32.mxu0 %v923
    %1060 = vmatmul.mubr.f32.gmra.mrb[0].mxu0 %v922
    %v1061 = vpop.f32.mrb[0].mxu0
    %v1062 = vadd.f32 %v197, %v1061
    %v1063 = vpop.f32.mrb[0].mxu0
    %v1064 = vadd.f32 %v201, %v1063
    %1065 = vdwg.mxu0
    %v1066 = vxor.u32 %v991, 2147483648
    %v1067 = vmul.f32 %v1066, 1.442695
    %v1068 = vpow.pop %v1067
    %v1069 = vadd.f32 %v1068, 1.0
    %v1070 = vrcp.pop %v1069
    %v1071 = vmul.f32 1.0, %v1070
    %v1072 = vxor.u32 %v993, 2147483648
    %v1073 = vmul.f32 %v1072, 1.442695
    %v1074 = vpow.pop %v1073
    %v1075 = vadd.f32 %v1074, 1.0
    %v1076 = vrcp.pop %v1075
    %v1077 = vmul.f32 1.0, %v1076
    %v1078 = vtanh.pop %v1062
    %v1079 = vxor.u32 %v1064, 2147483648
    %v1080 = vmul.f32 %v1079, 1.442695
    %v1081 = vpow.pop %v1080
    %v1082 = vadd.f32 %v1081, 1.0
    %v1083 = vrcp.pop %v1082
    %v1084 = vmul.f32 1.0, %v1083
    %v1085 = vmul.f32 %v1077, %v917
    %v1086 = vmul.f32 %v1071, %v1078
    %v1087 = vadd.f32 %v1085, %v1086
    %v1088 = vtanh.pop %v1087
    %v1089 = vmul.f32 %v1084, %v1088
    %1090 = vst [vmem:[#allocation5] sm:$0xff] %v1087
    %1091 = vst [vmem:[#allocation4] sm:$0xff] %v1089
    %s1092 = scalar_lea.vmem [#allocation2], 32
    %1093 = vst [vmem:[%s1092] sm:$0xff] %v1089
    %v1094 = vld [vmem:[#allocation4] sm:$0xff]
    %v1095 = vld [vmem:[#allocation5] sm:$0xff]
    %s1096 = scalar_lea.vmem %s0, 40
    %v1097 = vld [vmem:[%s1096] sm:$0xff]
    %1098 = vst [vmem:[#allocation3] sm:$0xff] %v1097
    %1099 = vst [vmem:[#allocation3 + $0x8] sm:$0xff] %v1094
    %v1100 = vld [vmem:[#allocation3] sm:$0xff]
    %v1101 = vld [vmem:[#allocation3 + $0x8] sm:$0xff]
    %1102 = vmatprep.subr.mxu0 %v57
    %1103 = vmatpush1.msra.mxu0 %v56
    %1104 = vmatprep.subr.mxu0 %v61
    %1105 = vmatpush1.msra.mxu0 %v60
    %1106 = vmatprep.subr.mxu0 %v65
    %1107 = vmatpush1.msra.mxu0 %v64
    %1108 = vmatprep.subr.mxu0 %v69
    %1109 = vmatpush1.msra.mxu0 %v68
    %1110 = vmatprep.subr.mxu0 %v73
    %1111 = vmatpush1.msra.mxu0 %v72
    %1112 = vmatprep.subr.mxu0 %v77
    %1113 = vmatpush1.msra.mxu0 %v76
    %1114 = vmatprep.subr.mxu0 %v81
    %1115 = vmatpush1.msra.mxu0 %v80
    %1116 = vmatprep.subr.mxu0 %v85
    %1117 = vmatpush1.msra.mxu0 %v84
    %1118 = vmatprep.subr.mxu0 %v89
    %1119 = vmatpush1.msra.mxu0 %v88
    %1120 = vmatprep.subr.mxu0 %v93
    %1121 = vmatpush1.msra.mxu0 %v92
    %1122 = vmatprep.subr.mxu0 %v97
    %1123 = vmatpush1.msra.mxu0 %v96
    %1124 = vmatprep.subr.mxu0 %v101
    %1125 = vmatpush1.msra.mxu0 %v100
    %1126 = vmatprep.subr.mxu0 %v105
    %1127 = vmatpush1.msra.mxu0 %v104
    %1128 = vmatprep.subr.mxu0 %v109
    %1129 = vmatpush1.msra.mxu0 %v108
    %1130 = vmatprep.subr.mxu0 %v113
    %1131 = vmatpush1.msra.mxu0 %v112
    %1132 = vmatprep.subr.mxu0 %v117
    %1133 = vmatpush1.msra.mxu0 %v116
    %1134 = vmatprep.subr.mxu0 %v121
    %1135 = vmatpush1.msra.mxu0 %v120
    %1136 = vmatprep.subr.mxu0 %v125
    %1137 = vmatpush1.msra.mxu0 %v124
    %1138 = vmatprep.subr.mxu0 %v129
    %1139 = vmatpush1.msra.mxu0 %v128
    %1140 = vmatprep.subr.mxu0 %v133
    %1141 = vmatpush1.msra.mxu0 %v132
    %1142 = vmatprep.subr.mxu0 %v137
    %1143 = vmatpush1.msra.mxu0 %v136
    %1144 = vmatprep.subr.mxu0 %v141
    %1145 = vmatpush1.msra.mxu0 %v140
    %1146 = vmatprep.subr.mxu0 %v145
    %1147 = vmatpush1.msra.mxu0 %v144
    %1148 = vmatprep.subr.mxu0 %v149
    %1149 = vmatpush1.msra.mxu0 %v148
    %1150 = vmatprep.subr.mxu0 %v153
    %1151 = vmatpush1.msra.mxu0 %v152
    %1152 = vmatprep.subr.mxu0 %v157
    %1153 = vmatpush1.msra.mxu0 %v156
    %1154 = vmatprep.subr.mxu0 %v161
    %1155 = vmatpush1.msra.mxu0 %v160
    %1156 = vmatprep.subr.mxu0 %v165
    %1157 = vmatpush1.msra.mxu0 %v164
    %1158 = vmatprep.subr.mxu0 %v169
    %1159 = vmatpush1.msra.mxu0 %v168
    %1160 = vmatprep.subr.mxu0 %v173
    %1161 = vmatpush1.msra.mxu0 %v172
    %1162 = vmatprep.subr.mxu0 %v177
    %1163 = vmatpush1.msra.mxu0 %v176
    %1164 = vmatprep.subr.mxu0 %v181
    %1165 = vmatpush1.msra.mxu0 %v180
    %1166 = vmatprep.mubr.f32.mxu0 %v1101
    %1167 = vmatmul.mubr.f32.gmra.mrb[0].mxu0 %v1100
    %v1168 = vpop.f32.mrb[0].mxu0
    %v1169 = vadd.f32 %v189, %v1168
    %v1170 = vpop.f32.mrb[0].mxu0
    %v1171 = vadd.f32 %v193, %v1170
    %1172 = vdwg.mxu0
    %1173 = vmatprep.subr.mxu0 %v59
    %1174 = vmatpush1.msra.mxu0 %v58
    %1175 = vmatprep.subr.mxu0 %v63
    %1176 = vmatpush1.msra.mxu0 %v62
    %1177 = vmatprep.subr.mxu0 %v67
    %1178 = vmatpush1.msra.mxu0 %v66
    %1179 = vmatprep.subr.mxu0 %v71
    %1180 = vmatpush1.msra.mxu0 %v70
    %1181 = vmatprep.subr.mxu0 %v75
    %1182 = vmatpush1.msra.mxu0 %v74
    %1183 = vmatprep.subr.mxu0 %v79
    %1184 = vmatpush1.msra.mxu0 %v78
    %1185 = vmatprep.subr.mxu0 %v83
    %1186 = vmatpush1.msra.mxu0 %v82
    %1187 = vmatprep.subr.mxu0 %v87
    %1188 = vmatpush1.msra.mxu0 %v86
    %1189 = vmatprep.subr.mxu0 %v91
    %1190 = vmatpush1.msra.mxu0 %v90
    %1191 = vmatprep.subr.mxu0 %v95
    %1192 = vmatpush1.msra.mxu0 %v94
    %1193 = vmatprep.subr.mxu0 %v99
    %1194 = vmatpush1.msra.mxu0 %v98
    %1195 = vmatprep.subr.mxu0 %v103
    %1196 = vmatpush1.msra.mxu0 %v102
    %1197 = vmatprep.subr.mxu0 %v107
    %1198 = vmatpush1.msra.mxu0 %v106
    %1199 = vmatprep.subr.mxu0 %v111
    %1200 = vmatpush1.msra.mxu0 %v110
    %1201 = vmatprep.subr.mxu0 %v115
    %1202 = vmatpush1.msra.mxu0 %v114
    %1203 = vmatprep.subr.mxu0 %v119
    %1204 = vmatpush1.msra.mxu0 %v118
    %1205 = vmatprep.subr.mxu0 %v123
    %1206 = vmatpush1.msra.mxu0 %v122
    %1207 = vmatprep.subr.mxu0 %v127
    %1208 = vmatpush1.msra.mxu0 %v126
    %1209 = vmatprep.subr.mxu0 %v131
    %1210 = vmatpush1.msra.mxu0 %v130
    %1211 = vmatprep.subr.mxu0 %v135
    %1212 = vmatpush1.msra.mxu0 %v134
    %1213 = vmatprep.subr.mxu0 %v139
    %1214 = vmatpush1.msra.mxu0 %v138
    %1215 = vmatprep.subr.mxu0 %v143
    %1216 = vmatpush1.msra.mxu0 %v142
    %1217 = vmatprep.subr.mxu0 %v147
    %1218 = vmatpush1.msra.mxu0 %v146
    %1219 = vmatprep.subr.mxu0 %v151
    %1220 = vmatpush1.msra.mxu0 %v150
    %1221 = vmatprep.subr.mxu0 %v155
    %1222 = vmatpush1.msra.mxu0 %v154
    %1223 = vmatprep.subr.mxu0 %v159
    %1224 = vmatpush1.msra.mxu0 %v158
    %1225 = vmatprep.subr.mxu0 %v163
    %1226 = vmatpush1.msra.mxu0 %v162
    %1227 = vmatprep.subr.mxu0 %v167
    %1228 = vmatpush1.msra.mxu0 %v166
    %1229 = vmatprep.subr.mxu0 %v171
    %1230 = vmatpush1.msra.mxu0 %v170
    %1231 = vmatprep.subr.mxu0 %v175
    %1232 = vmatpush1.msra.mxu0 %v174
    %1233 = vmatprep.subr.mxu0 %v179
    %1234 = vmatpush1.msra.mxu0 %v178
    %1235 = vmatprep.subr.mxu0 %v183
    %1236 = vmatpush1.msra.mxu0 %v182
    %1237 = vmatprep.mubr.f32.mxu0 %v1101
    %1238 = vmatmul.mubr.f32.gmra.mrb[0].mxu0 %v1100
    %v1239 = vpop.f32.mrb[0].mxu0
    %v1240 = vadd.f32 %v197, %v1239
    %v1241 = vpop.f32.mrb[0].mxu0
    %v1242 = vadd.f32 %v201, %v1241
    %1243 = vdwg.mxu0
    %v1244 = vxor.u32 %v1169, 2147483648
    %v1245 = vmul.f32 %v1244, 1.442695
    %v1246 = vpow.pop %v1245
    %v1247 = vadd.f32 %v1246, 1.0
    %v1248 = vrcp.pop %v1247
    %v1249 = vmul.f32 1.0, %v1248
    %v1250 = vxor.u32 %v1171, 2147483648
    %v1251 = vmul.f32 %v1250, 1.442695
    %v1252 = vpow.pop %v1251
    %v1253 = vadd.f32 %v1252, 1.0
    %v1254 = vrcp.pop %v1253
    %v1255 = vmul.f32 1.0, %v1254
    %v1256 = vtanh.pop %v1240
    %v1257 = vxor.u32 %v1242, 2147483648
    %v1258 = vmul.f32 %v1257, 1.442695
    %v1259 = vpow.pop %v1258
    %v1260 = vadd.f32 %v1259, 1.0
    %v1261 = vrcp.pop %v1260
    %v1262 = vmul.f32 1.0, %v1261
    %v1263 = vmul.f32 %v1255, %v1095
    %v1264 = vmul.f32 %v1249, %v1256
    %v1265 = vadd.f32 %v1263, %v1264
    %v1266 = vtanh.pop %v1265
    %v1267 = vmul.f32 %v1262, %v1266
    %1268 = vst [vmem:[#allocation5] sm:$0xff] %v1265
    %1269 = vst [vmem:[#allocation4] sm:$0xff] %v1267
    %s1270 = scalar_lea.vmem [#allocation2], 40
    %1271 = vst [vmem:[%s1270] sm:$0xff] %v1267
    %v1272 = vld [vmem:[#allocation4] sm:$0xff]
    %v1273 = vld [vmem:[#allocation5] sm:$0xff]
    %s1274 = scalar_lea.vmem %s0, 48
    %v1275 = vld [vmem:[%s1274] sm:$0xff]
    %1276 = vst [vmem:[#allocation3] sm:$0xff] %v1275
    %1277 = vst [vmem:[#allocation3 + $0x8] sm:$0xff] %v1272
    %v1278 = vld [vmem:[#allocation3] sm:$0xff]
    %v1279 = vld [vmem:[#allocation3 + $0x8] sm:$0xff]
    %1280 = vmatprep.subr.mxu0 %v57
    %1281 = vmatpush1.msra.mxu0 %v56
    %1282 = vmatprep.subr.mxu0 %v61
    %1283 = vmatpush1.msra.mxu0 %v60
    %1284 = vmatprep.subr.mxu0 %v65
    %1285 = vmatpush1.msra.mxu0 %v64
    %1286 = vmatprep.subr.mxu0 %v69
    %1287 = vmatpush1.msra.mxu0 %v68
    %1288 = vmatprep.subr.mxu0 %v73
    %1289 = vmatpush1.msra.mxu0 %v72
    %1290 = vmatprep.subr.mxu0 %v77
    %1291 = vmatpush1.msra.mxu0 %v76
    %1292 = vmatprep.subr.mxu0 %v81
    %1293 = vmatpush1.msra.mxu0 %v80
    %1294 = vmatprep.subr.mxu0 %v85
    %1295 = vmatpush1.msra.mxu0 %v84
    %1296 = vmatprep.subr.mxu0 %v89
    %1297 = vmatpush1.msra.mxu0 %v88
    %1298 = vmatprep.subr.mxu0 %v93
    %1299 = vmatpush1.msra.mxu0 %v92
    %1300 = vmatprep.subr.mxu0 %v97
    %1301 = vmatpush1.msra.mxu0 %v96
    %1302 = vmatprep.subr.mxu0 %v101
    %1303 = vmatpush1.msra.mxu0 %v100
    %1304 = vmatprep.subr.mxu0 %v105
    %1305 = vmatpush1.msra.mxu0 %v104
    %1306 = vmatprep.subr.mxu0 %v109
    %1307 = vmatpush1.msra.mxu0 %v108
    %1308 = vmatprep.subr.mxu0 %v113
    %1309 = vmatpush1.msra.mxu0 %v112
    %1310 = vmatprep.subr.mxu0 %v117
    %1311 = vmatpush1.msra.mxu0 %v116
    %1312 = vmatprep.subr.mxu0 %v121
    %1313 = vmatpush1.msra.mxu0 %v120
    %1314 = vmatprep.subr.mxu0 %v125
    %1315 = vmatpush1.msra.mxu0 %v124
    %1316 = vmatprep.subr.mxu0 %v129
    %1317 = vmatpush1.msra.mxu0 %v128
    %1318 = vmatprep.subr.mxu0 %v133
    %1319 = vmatpush1.msra.mxu0 %v132
    %1320 = vmatprep.subr.mxu0 %v137
    %1321 = vmatpush1.msra.mxu0 %v136
    %1322 = vmatprep.subr.mxu0 %v141
    %1323 = vmatpush1.msra.mxu0 %v140
    %1324 = vmatprep.subr.mxu0 %v145
    %1325 = vmatpush1.msra.mxu0 %v144
    %1326 = vmatprep.subr.mxu0 %v149
    %1327 = vmatpush1.msra.mxu0 %v148
    %1328 = vmatprep.subr.mxu0 %v153
    %1329 = vmatpush1.msra.mxu0 %v152
    %1330 = vmatprep.subr.mxu0 %v157
    %1331 = vmatpush1.msra.mxu0 %v156
    %1332 = vmatprep.subr.mxu0 %v161
    %1333 = vmatpush1.msra.mxu0 %v160
    %1334 = vmatprep.subr.mxu0 %v165
    %1335 = vmatpush1.msra.mxu0 %v164
    %1336 = vmatprep.subr.mxu0 %v169
    %1337 = vmatpush1.msra.mxu0 %v168
    %1338 = vmatprep.subr.mxu0 %v173
    %1339 = vmatpush1.msra.mxu0 %v172
    %1340 = vmatprep.subr.mxu0 %v177
    %1341 = vmatpush1.msra.mxu0 %v176
    %1342 = vmatprep.subr.mxu0 %v181
    %1343 = vmatpush1.msra.mxu0 %v180
    %1344 = vmatprep.mubr.f32.mxu0 %v1279
    %1345 = vmatmul.mubr.f32.gmra.mrb[0].mxu0 %v1278
    %v1346 = vpop.f32.mrb[0].mxu0
    %v1347 = vadd.f32 %v189, %v1346
    %v1348 = vpop.f32.mrb[0].mxu0
    %v1349 = vadd.f32 %v193, %v1348
    %1350 = vdwg.mxu0
    %1351 = vmatprep.subr.mxu0 %v59
    %1352 = vmatpush1.msra.mxu0 %v58
    %1353 = vmatprep.subr.mxu0 %v63
    %1354 = vmatpush1.msra.mxu0 %v62
    %1355 = vmatprep.subr.mxu0 %v67
    %1356 = vmatpush1.msra.mxu0 %v66
    %1357 = vmatprep.subr.mxu0 %v71
    %1358 = vmatpush1.msra.mxu0 %v70
    %1359 = vmatprep.subr.mxu0 %v75
    %1360 = vmatpush1.msra.mxu0 %v74
    %1361 = vmatprep.subr.mxu0 %v79
    %1362 = vmatpush1.msra.mxu0 %v78
    %1363 = vmatprep.subr.mxu0 %v83
    %1364 = vmatpush1.msra.mxu0 %v82
    %1365 = vmatprep.subr.mxu0 %v87
    %1366 = vmatpush1.msra.mxu0 %v86
    %1367 = vmatprep.subr.mxu0 %v91
    %1368 = vmatpush1.msra.mxu0 %v90
    %1369 = vmatprep.subr.mxu0 %v95
    %1370 = vmatpush1.msra.mxu0 %v94
    %1371 = vmatprep.subr.mxu0 %v99
    %1372 = vmatpush1.msra.mxu0 %v98
    %1373 = vmatprep.subr.mxu0 %v103
    %1374 = vmatpush1.msra.mxu0 %v102
    %1375 = vmatprep.subr.mxu0 %v107
    %1376 = vmatpush1.msra.mxu0 %v106
    %1377 = vmatprep.subr.mxu0 %v111
    %1378 = vmatpush1.msra.mxu0 %v110
    %1379 = vmatprep.subr.mxu0 %v115
    %1380 = vmatpush1.msra.mxu0 %v114
    %1381 = vmatprep.subr.mxu0 %v119
    %1382 = vmatpush1.msra.mxu0 %v118
    %1383 = vmatprep.subr.mxu0 %v123
    %1384 = vmatpush1.msra.mxu0 %v122
    %1385 = vmatprep.subr.mxu0 %v127
    %1386 = vmatpush1.msra.mxu0 %v126
    %1387 = vmatprep.subr.mxu0 %v131
    %1388 = vmatpush1.msra.mxu0 %v130
    %1389 = vmatprep.subr.mxu0 %v135
    %1390 = vmatpush1.msra.mxu0 %v134
    %1391 = vmatprep.subr.mxu0 %v139
    %1392 = vmatpush1.msra.mxu0 %v138
    %1393 = vmatprep.subr.mxu0 %v143
    %1394 = vmatpush1.msra.mxu0 %v142
    %1395 = vmatprep.subr.mxu0 %v147
    %1396 = vmatpush1.msra.mxu0 %v146
    %1397 = vmatprep.subr.mxu0 %v151
    %1398 = vmatpush1.msra.mxu0 %v150
    %1399 = vmatprep.subr.mxu0 %v155
    %1400 = vmatpush1.msra.mxu0 %v154
    %1401 = vmatprep.subr.mxu0 %v159
    %1402 = vmatpush1.msra.mxu0 %v158
    %1403 = vmatprep.subr.mxu0 %v163
    %1404 = vmatpush1.msra.mxu0 %v162
    %1405 = vmatprep.subr.mxu0 %v167
    %1406 = vmatpush1.msra.mxu0 %v166
    %1407 = vmatprep.subr.mxu0 %v171
    %1408 = vmatpush1.msra.mxu0 %v170
    %1409 = vmatprep.subr.mxu0 %v175
    %1410 = vmatpush1.msra.mxu0 %v174
    %1411 = vmatprep.subr.mxu0 %v179
    %1412 = vmatpush1.msra.mxu0 %v178
    %1413 = vmatprep.subr.mxu0 %v183
    %1414 = vmatpush1.msra.mxu0 %v182
    %1415 = vmatprep.mubr.f32.mxu0 %v1279
    %1416 = vmatmul.mubr.f32.gmra.mrb[0].mxu0 %v1278
    %v1417 = vpop.f32.mrb[0].mxu0
    %v1418 = vadd.f32 %v197, %v1417
    %v1419 = vpop.f32.mrb[0].mxu0
    %v1420 = vadd.f32 %v201, %v1419
    %1421 = vdwg.mxu0
    %v1422 = vxor.u32 %v1347, 2147483648
    %v1423 = vmul.f32 %v1422, 1.442695
    %v1424 = vpow.pop %v1423
    %v1425 = vadd.f32 %v1424, 1.0
    %v1426 = vrcp.pop %v1425
    %v1427 = vmul.f32 1.0, %v1426
    %v1428 = vxor.u32 %v1349, 2147483648
    %v1429 = vmul.f32 %v1428, 1.442695
    %v1430 = vpow.pop %v1429
    %v1431 = vadd.f32 %v1430, 1.0
    %v1432 = vrcp.pop %v1431
    %v1433 = vmul.f32 1.0, %v1432
    %v1434 = vtanh.pop %v1418
    %v1435 = vxor.u32 %v1420, 2147483648
    %v1436 = vmul.f32 %v1435, 1.442695
    %v1437 = vpow.pop %v1436
    %v1438 = vadd.f32 %v1437, 1.0
    %v1439 = vrcp.pop %v1438
    %v1440 = vmul.f32 1.0, %v1439
    %v1441 = vmul.f32 %v1433, %v1273
    %v1442 = vmul.f32 %v1427, %v1434
    %v1443 = vadd.f32 %v1441, %v1442
    %v1444 = vtanh.pop %v1443
    %v1445 = vmul.f32 %v1440, %v1444
    %1446 = vst [vmem:[#allocation5] sm:$0xff] %v1443
    %1447 = vst [vmem:[#allocation4] sm:$0xff] %v1445
    %s1448 = scalar_lea.vmem [#allocation2], 48
    %1449 = vst [vmem:[%s1448] sm:$0xff] %v1445
    %v1450 = vld [vmem:[#allocation4] sm:$0xff]
    %v1451 = vld [vmem:[#allocation5] sm:$0xff]
    %s1452 = scalar_lea.vmem %s0, 56
    %v1453 = vld [vmem:[%s1452] sm:$0xff]
    %1454 = vst [vmem:[#allocation3] sm:$0xff] %v1453
    %1455 = vst [vmem:[#allocation3 + $0x8] sm:$0xff] %v1450
    %v1456 = vld [vmem:[#allocation3] sm:$0xff]
    %v1457 = vld [vmem:[#allocation3 + $0x8] sm:$0xff]
    %1458 = vmatprep.subr.mxu0 %v57
    %1459 = vmatpush1.msra.mxu0 %v56
    %1460 = vmatprep.subr.mxu0 %v61
    %1461 = vmatpush1.msra.mxu0 %v60
    %1462 = vmatprep.subr.mxu0 %v65
    %1463 = vmatpush1.msra.mxu0 %v64
    %1464 = vmatprep.subr.mxu0 %v69
    %1465 = vmatpush1.msra.mxu0 %v68
    %1466 = vmatprep.subr.mxu0 %v73
    %1467 = vmatpush1.msra.mxu0 %v72
    %1468 = vmatprep.subr.mxu0 %v77
    %1469 = vmatpush1.msra.mxu0 %v76
    %1470 = vmatprep.subr.mxu0 %v81
    %1471 = vmatpush1.msra.mxu0 %v80
    %1472 = vmatprep.subr.mxu0 %v85
    %1473 = vmatpush1.msra.mxu0 %v84
    %1474 = vmatprep.subr.mxu0 %v89
    %1475 = vmatpush1.msra.mxu0 %v88
    %1476 = vmatprep.subr.mxu0 %v93
    %1477 = vmatpush1.msra.mxu0 %v92
    %1478 = vmatprep.subr.mxu0 %v97
    %1479 = vmatpush1.msra.mxu0 %v96
    %1480 = vmatprep.subr.mxu0 %v101
    %1481 = vmatpush1.msra.mxu0 %v100
    %1482 = vmatprep.subr.mxu0 %v105
    %1483 = vmatpush1.msra.mxu0 %v104
    %1484 = vmatprep.subr.mxu0 %v109
    %1485 = vmatpush1.msra.mxu0 %v108
    %1486 = vmatprep.subr.mxu0 %v113
    %1487 = vmatpush1.msra.mxu0 %v112
    %1488 = vmatprep.subr.mxu0 %v117
    %1489 = vmatpush1.msra.mxu0 %v116
    %1490 = vmatprep.subr.mxu0 %v121
    %1491 = vmatpush1.msra.mxu0 %v120
    %1492 = vmatprep.subr.mxu0 %v125
    %1493 = vmatpush1.msra.mxu0 %v124
    %1494 = vmatprep.subr.mxu0 %v129
    %1495 = vmatpush1.msra.mxu0 %v128
    %1496 = vmatprep.subr.mxu0 %v133
    %1497 = vmatpush1.msra.mxu0 %v132
    %1498 = vmatprep.subr.mxu0 %v137
    %1499 = vmatpush1.msra.mxu0 %v136
    %1500 = vmatprep.subr.mxu0 %v141
    %1501 = vmatpush1.msra.mxu0 %v140
    %1502 = vmatprep.subr.mxu0 %v145
    %1503 = vmatpush1.msra.mxu0 %v144
    %1504 = vmatprep.subr.mxu0 %v149
    %1505 = vmatpush1.msra.mxu0 %v148
    %1506 = vmatprep.subr.mxu0 %v153
    %1507 = vmatpush1.msra.mxu0 %v152
    %1508 = vmatprep.subr.mxu0 %v157
    %1509 = vmatpush1.msra.mxu0 %v156
    %1510 = vmatprep.subr.mxu0 %v161
    %1511 = vmatpush1.msra.mxu0 %v160
    %1512 = vmatprep.subr.mxu0 %v165
    %1513 = vmatpush1.msra.mxu0 %v164
    %1514 = vmatprep.subr.mxu0 %v169
    %1515 = vmatpush1.msra.mxu0 %v168
    %1516 = vmatprep.subr.mxu0 %v173
    %1517 = vmatpush1.msra.mxu0 %v172
    %1518 = vmatprep.subr.mxu0 %v177
    %1519 = vmatpush1.msra.mxu0 %v176
    %1520 = vmatprep.subr.mxu0 %v181
    %1521 = vmatpush1.msra.mxu0 %v180
    %1522 = vmatprep.mubr.f32.mxu0 %v1457
    %1523 = vmatmul.mubr.f32.gmra.mrb[0].mxu0 %v1456
    %v1524 = vpop.f32.mrb[0].mxu0
    %v1525 = vadd.f32 %v189, %v1524
    %v1526 = vpop.f32.mrb[0].mxu0
    %v1527 = vadd.f32 %v193, %v1526
    %1528 = vdwg.mxu0
    %1529 = vmatprep.subr.mxu0 %v59
    %1530 = vmatpush1.msra.mxu0 %v58
    %1531 = vmatprep.subr.mxu0 %v63
    %1532 = vmatpush1.msra.mxu0 %v62
    %1533 = vmatprep.subr.mxu0 %v67
    %1534 = vmatpush1.msra.mxu0 %v66
    %1535 = vmatprep.subr.mxu0 %v71
    %1536 = vmatpush1.msra.mxu0 %v70
    %1537 = vmatprep.subr.mxu0 %v75
    %1538 = vmatpush1.msra.mxu0 %v74
    %1539 = vmatprep.subr.mxu0 %v79
    %1540 = vmatpush1.msra.mxu0 %v78
    %1541 = vmatprep.subr.mxu0 %v83
    %1542 = vmatpush1.msra.mxu0 %v82
    %1543 = vmatprep.subr.mxu0 %v87
    %1544 = vmatpush1.msra.mxu0 %v86
    %1545 = vmatprep.subr.mxu0 %v91
    %1546 = vmatpush1.msra.mxu0 %v90
    %1547 = vmatprep.subr.mxu0 %v95
    %1548 = vmatpush1.msra.mxu0 %v94
    %1549 = vmatprep.subr.mxu0 %v99
    %1550 = vmatpush1.msra.mxu0 %v98
    %1551 = vmatprep.subr.mxu0 %v103
    %1552 = vmatpush1.msra.mxu0 %v102
    %1553 = vmatprep.subr.mxu0 %v107
    %1554 = vmatpush1.msra.mxu0 %v106
    %1555 = vmatprep.subr.mxu0 %v111
    %1556 = vmatpush1.msra.mxu0 %v110
    %1557 = vmatprep.subr.mxu0 %v115
    %1558 = vmatpush1.msra.mxu0 %v114
    %1559 = vmatprep.subr.mxu0 %v119
    %1560 = vmatpush1.msra.mxu0 %v118
    %1561 = vmatprep.subr.mxu0 %v123
    %1562 = vmatpush1.msra.mxu0 %v122
    %1563 = vmatprep.subr.mxu0 %v127
    %1564 = vmatpush1.msra.mxu0 %v126
    %1565 = vmatprep.subr.mxu0 %v131
    %1566 = vmatpush1.msra.mxu0 %v130
    %1567 = vmatprep.subr.mxu0 %v135
    %1568 = vmatpush1.msra.mxu0 %v134
    %1569 = vmatprep.subr.mxu0 %v139
    %1570 = vmatpush1.msra.mxu0 %v138
    %1571 = vmatprep.subr.mxu0 %v143
    %1572 = vmatpush1.msra.mxu0 %v142
    %1573 = vmatprep.subr.mxu0 %v147
    %1574 = vmatpush1.msra.mxu0 %v146
    %1575 = vmatprep.subr.mxu0 %v151
    %1576 = vmatpush1.msra.mxu0 %v150
    %1577 = vmatprep.subr.mxu0 %v155
    %1578 = vmatpush1.msra.mxu0 %v154
    %1579 = vmatprep.subr.mxu0 %v159
    %1580 = vmatpush1.msra.mxu0 %v158
    %1581 = vmatprep.subr.mxu0 %v163
    %1582 = vmatpush1.msra.mxu0 %v162
    %1583 = vmatprep.subr.mxu0 %v167
    %1584 = vmatpush1.msra.mxu0 %v166
    %1585 = vmatprep.subr.mxu0 %v171
    %1586 = vmatpush1.msra.mxu0 %v170
    %1587 = vmatprep.subr.mxu0 %v175
    %1588 = vmatpush1.msra.mxu0 %v174
    %1589 = vmatprep.subr.mxu0 %v179
    %1590 = vmatpush1.msra.mxu0 %v178
    %1591 = vmatprep.subr.mxu0 %v183
    %1592 = vmatpush1.msra.mxu0 %v182
    %1593 = vmatprep.mubr.f32.mxu0 %v1457
    %1594 = vmatmul.mubr.f32.gmra.mrb[0].mxu0 %v1456
    %v1595 = vpop.f32.mrb[0].mxu0
    %v1596 = vadd.f32 %v197, %v1595
    %v1597 = vpop.f32.mrb[0].mxu0
    %v1598 = vadd.f32 %v201, %v1597
    %1599 = vdwg.mxu0
    %v1600 = vxor.u32 %v1525, 2147483648
    %v1601 = vmul.f32 %v1600, 1.442695
    %v1602 = vpow.pop %v1601
    %v1603 = vadd.f32 %v1602, 1.0
    %v1604 = vrcp.pop %v1603
    %v1605 = vmul.f32 1.0, %v1604
    %v1606 = vxor.u32 %v1527, 2147483648
    %v1607 = vmul.f32 %v1606, 1.442695
    %v1608 = vpow.pop %v1607
    %v1609 = vadd.f32 %v1608, 1.0
    %v1610 = vrcp.pop %v1609
    %v1611 = vmul.f32 1.0, %v1610
    %v1612 = vtanh.pop %v1596
    %v1613 = vxor.u32 %v1598, 2147483648
    %v1614 = vmul.f32 %v1613, 1.442695
    %v1615 = vpow.pop %v1614
    %v1616 = vadd.f32 %v1615, 1.0
    %v1617 = vrcp.pop %v1616
    %v1618 = vmul.f32 1.0, %v1617
    %v1619 = vmul.f32 %v1611, %v1451
    %v1620 = vmul.f32 %v1605, %v1612
    %v1621 = vadd.f32 %v1619, %v1620
    %v1622 = vtanh.pop %v1621
    %v1623 = vmul.f32 %v1618, %v1622
    %1624 = vst [vmem:[#allocation5] sm:$0xff] %v1621
    %1625 = vst [vmem:[#allocation4] sm:$0xff] %v1623
    %s1626 = scalar_lea.vmem [#allocation2], 56
    %1627 = vst [vmem:[%s1626] sm:$0xff] %v1623
    %s1628 = scalar_lea.vmem [#allocation6], 1024
    %v1629 = vld [vmem:[%s1628] sm:$0xff]
    %v1630 = vld [vmem:[%s1628 + $0x8] sm:$0xff]
    %v1631 = vld [vmem:[%s1628 + $0x10] sm:$0xff]
    %v1632 = vld [vmem:[%s1628 + $0x18] sm:$0xff]
    %v1633 = vld [vmem:[%s1628 + $0x20] sm:$0xff]
    %v1634 = vld [vmem:[%s1628 + $0x28] sm:$0xff]
    %v1635 = vld [vmem:[%s1628 + $0x30] sm:$0xff]
    %v1636 = vld [vmem:[%s1628 + $0x38] sm:$0xff]
    %v1637 = vld [vmem:[%s1628 + $0x40] sm:$0xff]
    %v1638 = vld [vmem:[%s1628 + $0x48] sm:$0xff]
    %v1639 = vld [vmem:[%s1628 + $0x50] sm:$0xff]
    %v1640 = vld [vmem:[%s1628 + $0x58] sm:$0xff]
    %v1641 = vld [vmem:[%s1628 + $0x60] sm:$0xff]
    %v1642 = vld [vmem:[%s1628 + $0x68] sm:$0xff]
    %v1643 = vld [vmem:[%s1628 + $0x70] sm:$0xff]
    %v1644 = vld [vmem:[%s1628 + $0x78] sm:$0xff]
    %v1645 = vld [vmem:[%s1628 + $0x80] sm:$0xff]
    %v1646 = vld [vmem:[%s1628 + $0x88] sm:$0xff]
    %v1647 = vld [vmem:[%s1628 + $0x90] sm:$0xff]
    %v1648 = vld [vmem:[%s1628 + $0x98] sm:$0xff]
    %v1649 = vld [vmem:[%s1628 + $0xa0] sm:$0xff]
    %v1650 = vld [vmem:[%s1628 + $0xa8] sm:$0xff]
    %v1651 = vld [vmem:[%s1628 + $0xb0] sm:$0xff]
    %v1652 = vld [vmem:[%s1628 + $0xb8] sm:$0xff]
    %v1653 = vld [vmem:[%s1628 + $0xc0] sm:$0xff]
    %v1654 = vld [vmem:[%s1628 + $0xc8] sm:$0xff]
    %v1655 = vld [vmem:[%s1628 + $0xd0] sm:$0xff]
    %v1656 = vld [vmem:[%s1628 + $0xd8] sm:$0xff]
    %v1657 = vld [vmem:[%s1628 + $0xe0] sm:$0xff]
    %v1658 = vld [vmem:[%s1628 + $0xe8] sm:$0xff]
    %v1659 = vld [vmem:[%s1628 + $0xf0] sm:$0xff]
    %v1660 = vld [vmem:[%s1628 + $0xf8] sm:$0xff]
    %v1661 = vld [vmem:[%s1628 + $0x100] sm:$0xff]
    %v1662 = vld [vmem:[%s1628 + $0x108] sm:$0xff]
    %v1663 = vld [vmem:[%s1628 + $0x110] sm:$0xff]
    %v1664 = vld [vmem:[%s1628 + $0x118] sm:$0xff]
    %v1665 = vld [vmem:[%s1628 + $0x120] sm:$0xff]
    %v1666 = vld [vmem:[%s1628 + $0x128] sm:$0xff]
    %v1667 = vld [vmem:[%s1628 + $0x130] sm:$0xff]
    %v1668 = vld [vmem:[%s1628 + $0x138] sm:$0xff]
    %v1669 = vld [vmem:[%s1628 + $0x140] sm:$0xff]
    %v1670 = vld [vmem:[%s1628 + $0x148] sm:$0xff]
    %v1671 = vld [vmem:[%s1628 + $0x150] sm:$0xff]
    %v1672 = vld [vmem:[%s1628 + $0x158] sm:$0xff]
    %v1673 = vld [vmem:[%s1628 + $0x160] sm:$0xff]
    %v1674 = vld [vmem:[%s1628 + $0x168] sm:$0xff]
    %v1675 = vld [vmem:[%s1628 + $0x170] sm:$0xff]
    %v1676 = vld [vmem:[%s1628 + $0x178] sm:$0xff]
    %v1677 = vld [vmem:[%s1628 + $0x180] sm:$0xff]
    %v1678 = vld [vmem:[%s1628 + $0x188] sm:$0xff]
    %v1679 = vld [vmem:[%s1628 + $0x190] sm:$0xff]
    %v1680 = vld [vmem:[%s1628 + $0x198] sm:$0xff]
    %v1681 = vld [vmem:[%s1628 + $0x1a0] sm:$0xff]
    %v1682 = vld [vmem:[%s1628 + $0x1a8] sm:$0xff]
    %v1683 = vld [vmem:[%s1628 + $0x1b0] sm:$0xff]
    %v1684 = vld [vmem:[%s1628 + $0x1b8] sm:$0xff]
    %v1685 = vld [vmem:[%s1628 + $0x1c0] sm:$0xff]
    %v1686 = vld [vmem:[%s1628 + $0x1c8] sm:$0xff]
    %v1687 = vld [vmem:[%s1628 + $0x1d0] sm:$0xff]
    %v1688 = vld [vmem:[%s1628 + $0x1d8] sm:$0xff]
    %v1689 = vld [vmem:[%s1628 + $0x1e0] sm:$0xff]
    %v1690 = vld [vmem:[%s1628 + $0x1e8] sm:$0xff]
    %v1691 = vld [vmem:[%s1628 + $0x1f0] sm:$0xff]
    %v1692 = vld [vmem:[%s1628 + $0x1f8] sm:$0xff]
    %v1693 = vld [vmem:[%s1628 + $0x200] sm:$0xff]
    %v1694 = vld [vmem:[%s1628 + $0x208] sm:$0xff]
    %v1695 = vld [vmem:[%s1628 + $0x210] sm:$0xff]
    %v1696 = vld [vmem:[%s1628 + $0x218] sm:$0xff]
    %v1697 = vld [vmem:[%s1628 + $0x220] sm:$0xff]
    %v1698 = vld [vmem:[%s1628 + $0x228] sm:$0xff]
    %v1699 = vld [vmem:[%s1628 + $0x230] sm:$0xff]
    %v1700 = vld [vmem:[%s1628 + $0x238] sm:$0xff]
    %v1701 = vld [vmem:[%s1628 + $0x240] sm:$0xff]
    %v1702 = vld [vmem:[%s1628 + $0x248] sm:$0xff]
    %v1703 = vld [vmem:[%s1628 + $0x250] sm:$0xff]
    %v1704 = vld [vmem:[%s1628 + $0x258] sm:$0xff]
    %v1705 = vld [vmem:[%s1628 + $0x260] sm:$0xff]
    %v1706 = vld [vmem:[%s1628 + $0x268] sm:$0xff]
    %v1707 = vld [vmem:[%s1628 + $0x270] sm:$0xff]
    %v1708 = vld [vmem:[%s1628 + $0x278] sm:$0xff]
    %v1709 = vld [vmem:[%s1628 + $0x280] sm:$0xff]
    %v1710 = vld [vmem:[%s1628 + $0x288] sm:$0xff]
    %v1711 = vld [vmem:[%s1628 + $0x290] sm:$0xff]
    %v1712 = vld [vmem:[%s1628 + $0x298] sm:$0xff]
    %v1713 = vld [vmem:[%s1628 + $0x2a0] sm:$0xff]
    %v1714 = vld [vmem:[%s1628 + $0x2a8] sm:$0xff]
    %v1715 = vld [vmem:[%s1628 + $0x2b0] sm:$0xff]
    %v1716 = vld [vmem:[%s1628 + $0x2b8] sm:$0xff]
    %v1717 = vld [vmem:[%s1628 + $0x2c0] sm:$0xff]
    %v1718 = vld [vmem:[%s1628 + $0x2c8] sm:$0xff]
    %v1719 = vld [vmem:[%s1628 + $0x2d0] sm:$0xff]
    %v1720 = vld [vmem:[%s1628 + $0x2d8] sm:$0xff]
    %v1721 = vld [vmem:[%s1628 + $0x2e0] sm:$0xff]
    %v1722 = vld [vmem:[%s1628 + $0x2e8] sm:$0xff]
    %v1723 = vld [vmem:[%s1628 + $0x2f0] sm:$0xff]
    %v1724 = vld [vmem:[%s1628 + $0x2f8] sm:$0xff]
    %v1725 = vld [vmem:[%s1628 + $0x300] sm:$0xff]
    %v1726 = vld [vmem:[%s1628 + $0x308] sm:$0xff]
    %v1727 = vld [vmem:[%s1628 + $0x310] sm:$0xff]
    %v1728 = vld [vmem:[%s1628 + $0x318] sm:$0xff]
    %v1729 = vld [vmem:[%s1628 + $0x320] sm:$0xff]
    %v1730 = vld [vmem:[%s1628 + $0x328] sm:$0xff]
    %v1731 = vld [vmem:[%s1628 + $0x330] sm:$0xff]
    %v1732 = vld [vmem:[%s1628 + $0x338] sm:$0xff]
    %v1733 = vld [vmem:[%s1628 + $0x340] sm:$0xff]
    %v1734 = vld [vmem:[%s1628 + $0x348] sm:$0xff]
    %v1735 = vld [vmem:[%s1628 + $0x350] sm:$0xff]
    %v1736 = vld [vmem:[%s1628 + $0x358] sm:$0xff]
    %v1737 = vld [vmem:[%s1628 + $0x360] sm:$0xff]
    %v1738 = vld [vmem:[%s1628 + $0x368] sm:$0xff]
    %v1739 = vld [vmem:[%s1628 + $0x370] sm:$0xff]
    %v1740 = vld [vmem:[%s1628 + $0x378] sm:$0xff]
    %v1741 = vld [vmem:[%s1628 + $0x380] sm:$0xff]
    %v1742 = vld [vmem:[%s1628 + $0x388] sm:$0xff]
    %v1743 = vld [vmem:[%s1628 + $0x390] sm:$0xff]
    %v1744 = vld [vmem:[%s1628 + $0x398] sm:$0xff]
    %v1745 = vld [vmem:[%s1628 + $0x3a0] sm:$0xff]
    %v1746 = vld [vmem:[%s1628 + $0x3a8] sm:$0xff]
    %v1747 = vld [vmem:[%s1628 + $0x3b0] sm:$0xff]
    %v1748 = vld [vmem:[%s1628 + $0x3b8] sm:$0xff]
    %v1749 = vld [vmem:[%s1628 + $0x3c0] sm:$0xff]
    %v1750 = vld [vmem:[%s1628 + $0x3c8] sm:$0xff]
    %v1751 = vld [vmem:[%s1628 + $0x3d0] sm:$0xff]
    %v1752 = vld [vmem:[%s1628 + $0x3d8] sm:$0xff]
    %v1753 = vld [vmem:[%s1628 + $0x3e0] sm:$0xff]
    %v1754 = vld [vmem:[%s1628 + $0x3e8] sm:$0xff]
    %v1755 = vld [vmem:[%s1628 + $0x3f0] sm:$0xff]
    %v1756 = vld [vmem:[%s1628 + $0x3f8] sm:$0xff]
    %s1757 = scalar_lea.vmem %s2, 4
    %v1758 = vld [vmem:[%s1757] sm:$0xf]
    %v1760 = vlaneseq
    %v1761 = vshrl.u32 %v1760, 7
    %v1762 = vsub.s32 0, %v1761
    %v1763 = vrot.slane %v1758, %v1762
    %v1764 = vlaneseq
    %v1765 = vshrl.u32 %v1764, 7
    %v1766 = vsub.s32 1, %v1765
    %v1767 = vrot.slane %v1758, %v1766
    %v1768 = vlaneseq
    %v1769 = vshrl.u32 %v1768, 7
    %v1770 = vsub.s32 2, %v1769
    %v1771 = vrot.slane %v1758, %v1770
    %v1772 = vlaneseq
    %v1773 = vshrl.u32 %v1772, 7
    %v1774 = vsub.s32 3, %v1773
    %v1775 = vrot.slane %v1758, %v1774
    %s1780 = scalar_lea.vmem [#allocation4], 8
    %v1781 = vld [vmem:[%s1780] sm:$0xff]
    %s1782 = scalar_lea.vmem [#allocation5], 8
    %v1783 = vld [vmem:[%s1782] sm:$0xff]
    %v1784 = vld [vmem:[#allocation2] sm:$0xff]
    %1785 = vst [vmem:[#allocation3] sm:$0xff] %v1784
    %1786 = vst [vmem:[#allocation3 + $0x8] sm:$0xff] %v1781
    %v1787 = vld [vmem:[#allocation3] sm:$0xff]
    %v1788 = vld [vmem:[#allocation3 + $0x8] sm:$0xff]
    %1789 = vmatprep.subr.mxu0 %v1630
    %1790 = vmatpush1.msra.mxu0 %v1629
    %1791 = vmatprep.subr.mxu0 %v1634
    %1792 = vmatpush1.msra.mxu0 %v1633
    %1793 = vmatprep.subr.mxu0 %v1638
    %1794 = vmatpush1.msra.mxu0 %v1637
    %1795 = vmatprep.subr.mxu0 %v1642
    %1796 = vmatpush1.msra.mxu0 %v1641
    %1797 = vmatprep.subr.mxu0 %v1646
    %1798 = vmatpush1.msra.mxu0 %v1645
    %1799 = vmatprep.subr.mxu0 %v1650
    %1800 = vmatpush1.msra.mxu0 %v1649
    %1801 = vmatprep.subr.mxu0 %v1654
    %1802 = vmatpush1.msra.mxu0 %v1653
    %1803 = vmatprep.subr.mxu0 %v1658
    %1804 = vmatpush1.msra.mxu0 %v1657
    %1805 = vmatprep.subr.mxu0 %v1662
    %1806 = vmatpush1.msra.mxu0 %v1661
    %1807 = vmatprep.subr.mxu0 %v1666
    %1808 = vmatpush1.msra.mxu0 %v1665
    %1809 = vmatprep.subr.mxu0 %v1670
    %1810 = vmatpush1.msra.mxu0 %v1669
    %1811 = vmatprep.subr.mxu0 %v1674
    %1812 = vmatpush1.msra.mxu0 %v1673
    %1813 = vmatprep.subr.mxu0 %v1678
    %1814 = vmatpush1.msra.mxu0 %v1677
    %1815 = vmatprep.subr.mxu0 %v1682
    %1816 = vmatpush1.msra.mxu0 %v1681
    %1817 = vmatprep.subr.mxu0 %v1686
    %1818 = vmatpush1.msra.mxu0 %v1685
    %1819 = vmatprep.subr.mxu0 %v1690
    %1820 = vmatpush1.msra.mxu0 %v1689
    %1821 = vmatprep.subr.mxu0 %v1694
    %1822 = vmatpush1.msra.mxu0 %v1693
    %1823 = vmatprep.subr.mxu0 %v1698
    %1824 = vmatpush1.msra.mxu0 %v1697
    %1825 = vmatprep.subr.mxu0 %v1702
    %1826 = vmatpush1.msra.mxu0 %v1701
    %1827 = vmatprep.subr.mxu0 %v1706
    %1828 = vmatpush1.msra.mxu0 %v1705
    %1829 = vmatprep.subr.mxu0 %v1710
    %1830 = vmatpush1.msra.mxu0 %v1709
    %1831 = vmatprep.subr.mxu0 %v1714
    %1832 = vmatpush1.msra.mxu0 %v1713
    %1833 = vmatprep.subr.mxu0 %v1718
    %1834 = vmatpush1.msra.mxu0 %v1717
    %1835 = vmatprep.subr.mxu0 %v1722
    %1836 = vmatpush1.msra.mxu0 %v1721
    %1837 = vmatprep.subr.mxu0 %v1726
    %1838 = vmatpush1.msra.mxu0 %v1725
    %1839 = vmatprep.subr.mxu0 %v1730
    %1840 = vmatpush1.msra.mxu0 %v1729
    %1841 = vmatprep.subr.mxu0 %v1734
    %1842 = vmatpush1.msra.mxu0 %v1733
    %1843 = vmatprep.subr.mxu0 %v1738
    %1844 = vmatpush1.msra.mxu0 %v1737
    %1845 = vmatprep.subr.mxu0 %v1742
    %1846 = vmatpush1.msra.mxu0 %v1741
    %1847 = vmatprep.subr.mxu0 %v1746
    %1848 = vmatpush1.msra.mxu0 %v1745
    %1849 = vmatprep.subr.mxu0 %v1750
    %1850 = vmatpush1.msra.mxu0 %v1749
    %1851 = vmatprep.subr.mxu0 %v1754
    %1852 = vmatpush1.msra.mxu0 %v1753
    %1853 = vmatprep.mubr.f32.mxu0 %v1788
    %1854 = vmatmul.mubr.f32.gmra.mrb[0].mxu0 %v1787
    %v1855 = vpop.f32.mrb[0].mxu0
    %v1856 = vadd.f32 %v1763, %v1855
    %v1857 = vpop.f32.mrb[0].mxu0
    %v1858 = vadd.f32 %v1767, %v1857
    %1859 = vdwg.mxu0
    %1860 = vmatprep.subr.mxu0 %v1632
    %1861 = vmatpush1.msra.mxu0 %v1631
    %1862 = vmatprep.subr.mxu0 %v1636
    %1863 = vmatpush1.msra.mxu0 %v1635
    %1864 = vmatprep.subr.mxu0 %v1640
    %1865 = vmatpush1.msra.mxu0 %v1639
    %1866 = vmatprep.subr.mxu0 %v1644
    %1867 = vmatpush1.msra.mxu0 %v1643
    %1868 = vmatprep.subr.mxu0 %v1648
    %1869 = vmatpush1.msra.mxu0 %v1647
    %1870 = vmatprep.subr.mxu0 %v1652
    %1871 = vmatpush1.msra.mxu0 %v1651
    %1872 = vmatprep.subr.mxu0 %v1656
    %1873 = vmatpush1.msra.mxu0 %v1655
    %1874 = vmatprep.subr.mxu0 %v1660
    %1875 = vmatpush1.msra.mxu0 %v1659
    %1876 = vmatprep.subr.mxu0 %v1664
    %1877 = vmatpush1.msra.mxu0 %v1663
    %1878 = vmatprep.subr.mxu0 %v1668
    %1879 = vmatpush1.msra.mxu0 %v1667
    %1880 = vmatprep.subr.mxu0 %v1672
    %1881 = vmatpush1.msra.mxu0 %v1671
    %1882 = vmatprep.subr.mxu0 %v1676
    %1883 = vmatpush1.msra.mxu0 %v1675
    %1884 = vmatprep.subr.mxu0 %v1680
    %1885 = vmatpush1.msra.mxu0 %v1679
    %1886 = vmatprep.subr.mxu0 %v1684
    %1887 = vmatpush1.msra.mxu0 %v1683
    %1888 = vmatprep.subr.mxu0 %v1688
    %1889 = vmatpush1.msra.mxu0 %v1687
    %1890 = vmatprep.subr.mxu0 %v1692
    %1891 = vmatpush1.msra.mxu0 %v1691
    %1892 = vmatprep.subr.mxu0 %v1696
    %1893 = vmatpush1.msra.mxu0 %v1695
    %1894 = vmatprep.subr.mxu0 %v1700
    %1895 = vmatpush1.msra.mxu0 %v1699
    %1896 = vmatprep.subr.mxu0 %v1704
    %1897 = vmatpush1.msra.mxu0 %v1703
    %1898 = vmatprep.subr.mxu0 %v1708
    %1899 = vmatpush1.msra.mxu0 %v1707
    %1900 = vmatprep.subr.mxu0 %v1712
    %1901 = vmatpush1.msra.mxu0 %v1711
    %1902 = vmatprep.subr.mxu0 %v1716
    %1903 = vmatpush1.msra.mxu0 %v1715
    %1904 = vmatprep.subr.mxu0 %v1720
    %1905 = vmatpush1.msra.mxu0 %v1719
    %1906 = vmatprep.subr.mxu0 %v1724
    %1907 = vmatpush1.msra.mxu0 %v1723
    %1908 = vmatprep.subr.mxu0 %v1728
    %1909 = vmatpush1.msra.mxu0 %v1727
    %1910 = vmatprep.subr.mxu0 %v1732
    %1911 = vmatpush1.msra.mxu0 %v1731
    %1912 = vmatprep.subr.mxu0 %v1736
    %1913 = vmatpush1.msra.mxu0 %v1735
    %1914 = vmatprep.subr.mxu0 %v1740
    %1915 = vmatpush1.msra.mxu0 %v1739
    %1916 = vmatprep.subr.mxu0 %v1744
    %1917 = vmatpush1.msra.mxu0 %v1743
    %1918 = vmatprep.subr.mxu0 %v1748
    %1919 = vmatpush1.msra.mxu0 %v1747
    %1920 = vmatprep.subr.mxu0 %v1752
    %1921 = vmatpush1.msra.mxu0 %v1751
    %1922 = vmatprep.subr.mxu0 %v1756
    %1923 = vmatpush1.msra.mxu0 %v1755
    %1924 = vmatprep.mubr.f32.mxu0 %v1788
    %1925 = vmatmul.mubr.f32.gmra.mrb[0].mxu0 %v1787
    %v1926 = vpop.f32.mrb[0].mxu0
    %v1927 = vadd.f32 %v1771, %v1926
    %v1928 = vpop.f32.mrb[0].mxu0
    %v1929 = vadd.f32 %v1775, %v1928
    %1930 = vdwg.mxu0
    %v1931 = vxor.u32 %v1856, 2147483648
    %v1932 = vmul.f32 %v1931, 1.442695
    %v1933 = vpow.pop %v1932
    %v1934 = vadd.f32 %v1933, 1.0
    %v1935 = vrcp.pop %v1934
    %v1936 = vmul.f32 1.0, %v1935
    %v1937 = vxor.u32 %v1858, 2147483648
    %v1938 = vmul.f32 %v1937, 1.442695
    %v1939 = vpow.pop %v1938
    %v1940 = vadd.f32 %v1939, 1.0
    %v1941 = vrcp.pop %v1940
    %v1942 = vmul.f32 1.0, %v1941
    %v1943 = vtanh.pop %v1927
    %v1944 = vxor.u32 %v1929, 2147483648
    %v1945 = vmul.f32 %v1944, 1.442695
    %v1946 = vpow.pop %v1945
    %v1947 = vadd.f32 %v1946, 1.0
    %v1948 = vrcp.pop %v1947
    %v1949 = vmul.f32 1.0, %v1948
    %v1950 = vmul.f32 %v1942, %v1783
    %v1951 = vmul.f32 %v1936, %v1943
    %v1952 = vadd.f32 %v1950, %v1951
    %v1953 = vtanh.pop %v1952
    %v1954 = vmul.f32 %v1949, %v1953
    %1955 = vst [vmem:[%s1782] sm:$0xff] %v1952
    %1956 = vst [vmem:[%s1780] sm:$0xff] %v1954
    %v1957 = vld [vmem:[%s1780] sm:$0xff]
    %v1958 = vld [vmem:[%s1782] sm:$0xff]
    %v1959 = vld [vmem:[%s558] sm:$0xff]
    %1960 = vst [vmem:[#allocation3] sm:$0xff] %v1959
    %1961 = vst [vmem:[#allocation3 + $0x8] sm:$0xff] %v1957
    %v1962 = vld [vmem:[#allocation3] sm:$0xff]
    %v1963 = vld [vmem:[#allocation3 + $0x8] sm:$0xff]
    %1964 = vmatprep.subr.mxu0 %v1630
    %1965 = vmatpush1.msra.mxu0 %v1629
    %1966 = vmatprep.subr.mxu0 %v1634
    %1967 = vmatpush1.msra.mxu0 %v1633
    %1968 = vmatprep.subr.mxu0 %v1638
    %1969 = vmatpush1.msra.mxu0 %v1637
    %1970 = vmatprep.subr.mxu0 %v1642
    %1971 = vmatpush1.msra.mxu0 %v1641
    %1972 = vmatprep.subr.mxu0 %v1646
    %1973 = vmatpush1.msra.mxu0 %v1645
    %1974 = vmatprep.subr.mxu0 %v1650
    %1975 = vmatpush1.msra.mxu0 %v1649
    %1976 = vmatprep.subr.mxu0 %v1654
    %1977 = vmatpush1.msra.mxu0 %v1653
    %1978 = vmatprep.subr.mxu0 %v1658
    %1979 = vmatpush1.msra.mxu0 %v1657
    %1980 = vmatprep.subr.mxu0 %v1662
    %1981 = vmatpush1.msra.mxu0 %v1661
    %1982 = vmatprep.subr.mxu0 %v1666
    %1983 = vmatpush1.msra.mxu0 %v1665
    %1984 = vmatprep.subr.mxu0 %v1670
    %1985 = vmatpush1.msra.mxu0 %v1669
    %1986 = vmatprep.subr.mxu0 %v1674
    %1987 = vmatpush1.msra.mxu0 %v1673
    %1988 = vmatprep.subr.mxu0 %v1678
    %1989 = vmatpush1.msra.mxu0 %v1677
    %1990 = vmatprep.subr.mxu0 %v1682
    %1991 = vmatpush1.msra.mxu0 %v1681
    %1992 = vmatprep.subr.mxu0 %v1686
    %1993 = vmatpush1.msra.mxu0 %v1685
    %1994 = vmatprep.subr.mxu0 %v1690
    %1995 = vmatpush1.msra.mxu0 %v1689
    %1996 = vmatprep.subr.mxu0 %v1694
    %1997 = vmatpush1.msra.mxu0 %v1693
    %1998 = vmatprep.subr.mxu0 %v1698
    %1999 = vmatpush1.msra.mxu0 %v1697
    %2000 = vmatprep.subr.mxu0 %v1702
    %2001 = vmatpush1.msra.mxu0 %v1701
    %2002 = vmatprep.subr.mxu0 %v1706
    %2003 = vmatpush1.msra.mxu0 %v1705
    %2004 = vmatprep.subr.mxu0 %v1710
    %2005 = vmatpush1.msra.mxu0 %v1709
    %2006 = vmatprep.subr.mxu0 %v1714
    %2007 = vmatpush1.msra.mxu0 %v1713
    %2008 = vmatprep.subr.mxu0 %v1718
    %2009 = vmatpush1.msra.mxu0 %v1717
    %2010 = vmatprep.subr.mxu0 %v1722
    %2011 = vmatpush1.msra.mxu0 %v1721
    %2012 = vmatprep.subr.mxu0 %v1726
    %2013 = vmatpush1.msra.mxu0 %v1725
    %2014 = vmatprep.subr.mxu0 %v1730
    %2015 = vmatpush1.msra.mxu0 %v1729
    %2016 = vmatprep.subr.mxu0 %v1734
    %2017 = vmatpush1.msra.mxu0 %v1733
    %2018 = vmatprep.subr.mxu0 %v1738
    %2019 = vmatpush1.msra.mxu0 %v1737
    %2020 = vmatprep.subr.mxu0 %v1742
    %2021 = vmatpush1.msra.mxu0 %v1741
    %2022 = vmatprep.subr.mxu0 %v1746
    %2023 = vmatpush1.msra.mxu0 %v1745
    %2024 = vmatprep.subr.mxu0 %v1750
    %2025 = vmatpush1.msra.mxu0 %v1749
    %2026 = vmatprep.subr.mxu0 %v1754
    %2027 = vmatpush1.msra.mxu0 %v1753
    %2028 = vmatprep.mubr.f32.mxu0 %v1963
    %2029 = vmatmul.mubr.f32.gmra.mrb[0].mxu0 %v1962
    %v2030 = vpop.f32.mrb[0].mxu0
    %v2031 = vadd.f32 %v1763, %v2030
    %v2032 = vpop.f32.mrb[0].mxu0
    %v2033 = vadd.f32 %v1767, %v2032
    %2034 = vdwg.mxu0
    %2035 = vmatprep.subr.mxu0 %v1632
    %2036 = vmatpush1.msra.mxu0 %v1631
    %2037 = vmatprep.subr.mxu0 %v1636
    %2038 = vmatpush1.msra.mxu0 %v1635
    %2039 = vmatprep.subr.mxu0 %v1640
    %2040 = vmatpush1.msra.mxu0 %v1639
    %2041 = vmatprep.subr.mxu0 %v1644
    %2042 = vmatpush1.msra.mxu0 %v1643
    %2043 = vmatprep.subr.mxu0 %v1648
    %2044 = vmatpush1.msra.mxu0 %v1647
    %2045 = vmatprep.subr.mxu0 %v1652
    %2046 = vmatpush1.msra.mxu0 %v1651
    %2047 = vmatprep.subr.mxu0 %v1656
    %2048 = vmatpush1.msra.mxu0 %v1655
    %2049 = vmatprep.subr.mxu0 %v1660
    %2050 = vmatpush1.msra.mxu0 %v1659
    %2051 = vmatprep.subr.mxu0 %v1664
    %2052 = vmatpush1.msra.mxu0 %v1663
    %2053 = vmatprep.subr.mxu0 %v1668
    %2054 = vmatpush1.msra.mxu0 %v1667
    %2055 = vmatprep.subr.mxu0 %v1672
    %2056 = vmatpush1.msra.mxu0 %v1671
    %2057 = vmatprep.subr.mxu0 %v1676
    %2058 = vmatpush1.msra.mxu0 %v1675
    %2059 = vmatprep.subr.mxu0 %v1680
    %2060 = vmatpush1.msra.mxu0 %v1679
    %2061 = vmatprep.subr.mxu0 %v1684
    %2062 = vmatpush1.msra.mxu0 %v1683
    %2063 = vmatprep.subr.mxu0 %v1688
    %2064 = vmatpush1.msra.mxu0 %v1687
    %2065 = vmatprep.subr.mxu0 %v1692
    %2066 = vmatpush1.msra.mxu0 %v1691
    %2067 = vmatprep.subr.mxu0 %v1696
    %2068 = vmatpush1.msra.mxu0 %v1695
    %2069 = vmatprep.subr.mxu0 %v1700
    %2070 = vmatpush1.msra.mxu0 %v1699
    %2071 = vmatprep.subr.mxu0 %v1704
    %2072 = vmatpush1.msra.mxu0 %v1703
    %2073 = vmatprep.subr.mxu0 %v1708
    %2074 = vmatpush1.msra.mxu0 %v1707
    %2075 = vmatprep.subr.mxu0 %v1712
    %2076 = vmatpush1.msra.mxu0 %v1711
    %2077 = vmatprep.subr.mxu0 %v1716
    %2078 = vmatpush1.msra.mxu0 %v1715
    %2079 = vmatprep.subr.mxu0 %v1720
    %2080 = vmatpush1.msra.mxu0 %v1719
    %2081 = vmatprep.subr.mxu0 %v1724
    %2082 = vmatpush1.msra.mxu0 %v1723
    %2083 = vmatprep.subr.mxu0 %v1728
    %2084 = vmatpush1.msra.mxu0 %v1727
    %2085 = vmatprep.subr.mxu0 %v1732
    %2086 = vmatpush1.msra.mxu0 %v1731
    %2087 = vmatprep.subr.mxu0 %v1736
    %2088 = vmatpush1.msra.mxu0 %v1735
    %2089 = vmatprep.subr.mxu0 %v1740
    %2090 = vmatpush1.msra.mxu0 %v1739
    %2091 = vmatprep.subr.mxu0 %v1744
    %2092 = vmatpush1.msra.mxu0 %v1743
    %2093 = vmatprep.subr.mxu0 %v1748
    %2094 = vmatpush1.msra.mxu0 %v1747
    %2095 = vmatprep.subr.mxu0 %v1752
    %2096 = vmatpush1.msra.mxu0 %v1751
    %2097 = vmatprep.subr.mxu0 %v1756
    %2098 = vmatpush1.msra.mxu0 %v1755
    %2099 = vmatprep.mubr.f32.mxu0 %v1963
    %2100 = vmatmul.mubr.f32.gmra.mrb[0].mxu0 %v1962
    %v2101 = vpop.f32.mrb[0].mxu0
    %v2102 = vadd.f32 %v1771, %v2101
    %v2103 = vpop.f32.mrb[0].mxu0
    %v2104 = vadd.f32 %v1775, %v2103
    %2105 = vdwg.mxu0
    %v2106 = vxor.u32 %v2031, 2147483648
    %v2107 = vmul.f32 %v2106, 1.442695
    %v2108 = vpow.pop %v2107
    %v2109 = vadd.f32 %v2108, 1.0
    %v2110 = vrcp.pop %v2109
    %v2111 = vmul.f32 1.0, %v2110
    %v2112 = vxor.u32 %v2033, 2147483648
    %v2113 = vmul.f32 %v2112, 1.442695
    %v2114 = vpow.pop %v2113
    %v2115 = vadd.f32 %v2114, 1.0
    %v2116 = vrcp.pop %v2115
    %v2117 = vmul.f32 1.0, %v2116
    %v2118 = vtanh.pop %v2102
    %v2119 = vxor.u32 %v2104, 2147483648
    %v2120 = vmul.f32 %v2119, 1.442695
    %v2121 = vpow.pop %v2120
    %v2122 = vadd.f32 %v2121, 1.0
    %v2123 = vrcp.pop %v2122
    %v2124 = vmul.f32 1.0, %v2123
    %v2125 = vmul.f32 %v2117, %v1958
    %v2126 = vmul.f32 %v2111, %v2118
    %v2127 = vadd.f32 %v2125, %v2126
    %v2128 = vtanh.pop %v2127
    %v2129 = vmul.f32 %v2124, %v2128
    %2130 = vst [vmem:[%s1782] sm:$0xff] %v2127
    %2131 = vst [vmem:[%s1780] sm:$0xff] %v2129
    %v2132 = vld [vmem:[%s1780] sm:$0xff]
    %v2133 = vld [vmem:[%s1782] sm:$0xff]
    %v2134 = vld [vmem:[%s736] sm:$0xff]
    %2135 = vst [vmem:[#allocation3] sm:$0xff] %v2134
    %2136 = vst [vmem:[#allocation3 + $0x8] sm:$0xff] %v2132
    %v2137 = vld [vmem:[#allocation3] sm:$0xff]
    %v2138 = vld [vmem:[#allocation3 + $0x8] sm:$0xff]
    %2139 = vmatprep.subr.mxu0 %v1630
    %2140 = vmatpush1.msra.mxu0 %v1629
    %2141 = vmatprep.subr.mxu0 %v1634
    %2142 = vmatpush1.msra.mxu0 %v1633
    %2143 = vmatprep.subr.mxu0 %v1638
    %2144 = vmatpush1.msra.mxu0 %v1637
    %2145 = vmatprep.subr.mxu0 %v1642
    %2146 = vmatpush1.msra.mxu0 %v1641
    %2147 = vmatprep.subr.mxu0 %v1646
    %2148 = vmatpush1.msra.mxu0 %v1645
    %2149 = vmatprep.subr.mxu0 %v1650
    %2150 = vmatpush1.msra.mxu0 %v1649
    %2151 = vmatprep.subr.mxu0 %v1654
    %2152 = vmatpush1.msra.mxu0 %v1653
    %2153 = vmatprep.subr.mxu0 %v1658
    %2154 = vmatpush1.msra.mxu0 %v1657
    %2155 = vmatprep.subr.mxu0 %v1662
    %2156 = vmatpush1.msra.mxu0 %v1661
    %2157 = vmatprep.subr.mxu0 %v1666
    %2158 = vmatpush1.msra.mxu0 %v1665
    %2159 = vmatprep.subr.mxu0 %v1670
    %2160 = vmatpush1.msra.mxu0 %v1669
    %2161 = vmatprep.subr.mxu0 %v1674
    %2162 = vmatpush1.msra.mxu0 %v1673
    %2163 = vmatprep.subr.mxu0 %v1678
    %2164 = vmatpush1.msra.mxu0 %v1677
    %2165 = vmatprep.subr.mxu0 %v1682
    %2166 = vmatpush1.msra.mxu0 %v1681
    %2167 = vmatprep.subr.mxu0 %v1686
    %2168 = vmatpush1.msra.mxu0 %v1685
    %2169 = vmatprep.subr.mxu0 %v1690
    %2170 = vmatpush1.msra.mxu0 %v1689
    %2171 = vmatprep.subr.mxu0 %v1694
    %2172 = vmatpush1.msra.mxu0 %v1693
    %2173 = vmatprep.subr.mxu0 %v1698
    %2174 = vmatpush1.msra.mxu0 %v1697
    %2175 = vmatprep.subr.mxu0 %v1702
    %2176 = vmatpush1.msra.mxu0 %v1701
    %2177 = vmatprep.subr.mxu0 %v1706
    %2178 = vmatpush1.msra.mxu0 %v1705
    %2179 = vmatprep.subr.mxu0 %v1710
    %2180 = vmatpush1.msra.mxu0 %v1709
    %2181 = vmatprep.subr.mxu0 %v1714
    %2182 = vmatpush1.msra.mxu0 %v1713
    %2183 = vmatprep.subr.mxu0 %v1718
    %2184 = vmatpush1.msra.mxu0 %v1717
    %2185 = vmatprep.subr.mxu0 %v1722
    %2186 = vmatpush1.msra.mxu0 %v1721
    %2187 = vmatprep.subr.mxu0 %v1726
    %2188 = vmatpush1.msra.mxu0 %v1725
    %2189 = vmatprep.subr.mxu0 %v1730
    %2190 = vmatpush1.msra.mxu0 %v1729
    %2191 = vmatprep.subr.mxu0 %v1734
    %2192 = vmatpush1.msra.mxu0 %v1733
    %2193 = vmatprep.subr.mxu0 %v1738
    %2194 = vmatpush1.msra.mxu0 %v1737
    %2195 = vmatprep.subr.mxu0 %v1742
    %2196 = vmatpush1.msra.mxu0 %v1741
    %2197 = vmatprep.subr.mxu0 %v1746
    %2198 = vmatpush1.msra.mxu0 %v1745
    %2199 = vmatprep.subr.mxu0 %v1750
    %2200 = vmatpush1.msra.mxu0 %v1749
    %2201 = vmatprep.subr.mxu0 %v1754
    %2202 = vmatpush1.msra.mxu0 %v1753
    %2203 = vmatprep.mubr.f32.mxu0 %v2138
    %2204 = vmatmul.mubr.f32.gmra.mrb[0].mxu0 %v2137
    %v2205 = vpop.f32.mrb[0].mxu0
    %v2206 = vadd.f32 %v1763, %v2205
    %v2207 = vpop.f32.mrb[0].mxu0
    %v2208 = vadd.f32 %v1767, %v2207
    %2209 = vdwg.mxu0
    %2210 = vmatprep.subr.mxu0 %v1632
    %2211 = vmatpush1.msra.mxu0 %v1631
    %2212 = vmatprep.subr.mxu0 %v1636
    %2213 = vmatpush1.msra.mxu0 %v1635
    %2214 = vmatprep.subr.mxu0 %v1640
    %2215 = vmatpush1.msra.mxu0 %v1639
    %2216 = vmatprep.subr.mxu0 %v1644
    %2217 = vmatpush1.msra.mxu0 %v1643
    %2218 = vmatprep.subr.mxu0 %v1648
    %2219 = vmatpush1.msra.mxu0 %v1647
    %2220 = vmatprep.subr.mxu0 %v1652
    %2221 = vmatpush1.msra.mxu0 %v1651
    %2222 = vmatprep.subr.mxu0 %v1656
    %2223 = vmatpush1.msra.mxu0 %v1655
    %2224 = vmatprep.subr.mxu0 %v1660
    %2225 = vmatpush1.msra.mxu0 %v1659
    %2226 = vmatprep.subr.mxu0 %v1664
    %2227 = vmatpush1.msra.mxu0 %v1663
    %2228 = vmatprep.subr.mxu0 %v1668
    %2229 = vmatpush1.msra.mxu0 %v1667
    %2230 = vmatprep.subr.mxu0 %v1672
    %2231 = vmatpush1.msra.mxu0 %v1671
    %2232 = vmatprep.subr.mxu0 %v1676
    %2233 = vmatpush1.msra.mxu0 %v1675
    %2234 = vmatprep.subr.mxu0 %v1680
    %2235 = vmatpush1.msra.mxu0 %v1679
    %2236 = vmatprep.subr.mxu0 %v1684
    %2237 = vmatpush1.msra.mxu0 %v1683
    %2238 = vmatprep.subr.mxu0 %v1688
    %2239 = vmatpush1.msra.mxu0 %v1687
    %2240 = vmatprep.subr.mxu0 %v1692
    %2241 = vmatpush1.msra.mxu0 %v1691
    %2242 = vmatprep.subr.mxu0 %v1696
    %2243 = vmatpush1.msra.mxu0 %v1695
    %2244 = vmatprep.subr.mxu0 %v1700
    %2245 = vmatpush1.msra.mxu0 %v1699
    %2246 = vmatprep.subr.mxu0 %v1704
    %2247 = vmatpush1.msra.mxu0 %v1703
    %2248 = vmatprep.subr.mxu0 %v1708
    %2249 = vmatpush1.msra.mxu0 %v1707
    %2250 = vmatprep.subr.mxu0 %v1712
    %2251 = vmatpush1.msra.mxu0 %v1711
    %2252 = vmatprep.subr.mxu0 %v1716
    %2253 = vmatpush1.msra.mxu0 %v1715
    %2254 = vmatprep.subr.mxu0 %v1720
    %2255 = vmatpush1.msra.mxu0 %v1719
    %2256 = vmatprep.subr.mxu0 %v1724
    %2257 = vmatpush1.msra.mxu0 %v1723
    %2258 = vmatprep.subr.mxu0 %v1728
    %2259 = vmatpush1.msra.mxu0 %v1727
    %2260 = vmatprep.subr.mxu0 %v1732
    %2261 = vmatpush1.msra.mxu0 %v1731
    %2262 = vmatprep.subr.mxu0 %v1736
    %2263 = vmatpush1.msra.mxu0 %v1735
    %2264 = vmatprep.subr.mxu0 %v1740
    %2265 = vmatpush1.msra.mxu0 %v1739
    %2266 = vmatprep.subr.mxu0 %v1744
    %2267 = vmatpush1.msra.mxu0 %v1743
    %2268 = vmatprep.subr.mxu0 %v1748
    %2269 = vmatpush1.msra.mxu0 %v1747
    %2270 = vmatprep.subr.mxu0 %v1752
    %2271 = vmatpush1.msra.mxu0 %v1751
    %2272 = vmatprep.subr.mxu0 %v1756
    %2273 = vmatpush1.msra.mxu0 %v1755
    %2274 = vmatprep.mubr.f32.mxu0 %v2138
    %2275 = vmatmul.mubr.f32.gmra.mrb[0].mxu0 %v2137
    %v2276 = vpop.f32.mrb[0].mxu0
    %v2277 = vadd.f32 %v1771, %v2276
    %v2278 = vpop.f32.mrb[0].mxu0
    %v2279 = vadd.f32 %v1775, %v2278
    %2280 = vdwg.mxu0
    %v2281 = vxor.u32 %v2206, 2147483648
    %v2282 = vmul.f32 %v2281, 1.442695
    %v2283 = vpow.pop %v2282
    %v2284 = vadd.f32 %v2283, 1.0
    %v2285 = vrcp.pop %v2284
    %v2286 = vmul.f32 1.0, %v2285
    %v2287 = vxor.u32 %v2208, 2147483648
    %v2288 = vmul.f32 %v2287, 1.442695
    %v2289 = vpow.pop %v2288
    %v2290 = vadd.f32 %v2289, 1.0
    %v2291 = vrcp.pop %v2290
    %v2292 = vmul.f32 1.0, %v2291
    %v2293 = vtanh.pop %v2277
    %v2294 = vxor.u32 %v2279, 2147483648
    %v2295 = vmul.f32 %v2294, 1.442695
    %v2296 = vpow.pop %v2295
    %v2297 = vadd.f32 %v2296, 1.0
    %v2298 = vrcp.pop %v2297
    %v2299 = vmul.f32 1.0, %v2298
    %v2300 = vmul.f32 %v2292, %v2133
    %v2301 = vmul.f32 %v2286, %v2293
    %v2302 = vadd.f32 %v2300, %v2301
    %v2303 = vtanh.pop %v2302
    %v2304 = vmul.f32 %v2299, %v2303
    %2305 = vst [vmem:[%s1782] sm:$0xff] %v2302
    %2306 = vst [vmem:[%s1780] sm:$0xff] %v2304
    %v2307 = vld [vmem:[%s1780] sm:$0xff]
    %v2308 = vld [vmem:[%s1782] sm:$0xff]
    %v2309 = vld [vmem:[%s914] sm:$0xff]
    %2310 = vst [vmem:[#allocation3] sm:$0xff] %v2309
    %2311 = vst [vmem:[#allocation3 + $0x8] sm:$0xff] %v2307
    %v2312 = vld [vmem:[#allocation3] sm:$0xff]
    %v2313 = vld [vmem:[#allocation3 + $0x8] sm:$0xff]
    %2314 = vmatprep.subr.mxu0 %v1630
    %2315 = vmatpush1.msra.mxu0 %v1629
    %2316 = vmatprep.subr.mxu0 %v1634
    %2317 = vmatpush1.msra.mxu0 %v1633
    %2318 = vmatprep.subr.mxu0 %v1638
    %2319 = vmatpush1.msra.mxu0 %v1637
    %2320 = vmatprep.subr.mxu0 %v1642
    %2321 = vmatpush1.msra.mxu0 %v1641
    %2322 = vmatprep.subr.mxu0 %v1646
    %2323 = vmatpush1.msra.mxu0 %v1645
    %2324 = vmatprep.subr.mxu0 %v1650
    %2325 = vmatpush1.msra.mxu0 %v1649
    %2326 = vmatprep.subr.mxu0 %v1654
    %2327 = vmatpush1.msra.mxu0 %v1653
    %2328 = vmatprep.subr.mxu0 %v1658
    %2329 = vmatpush1.msra.mxu0 %v1657
    %2330 = vmatprep.subr.mxu0 %v1662
    %2331 = vmatpush1.msra.mxu0 %v1661
    %2332 = vmatprep.subr.mxu0 %v1666
    %2333 = vmatpush1.msra.mxu0 %v1665
    %2334 = vmatprep.subr.mxu0 %v1670
    %2335 = vmatpush1.msra.mxu0 %v1669
    %2336 = vmatprep.subr.mxu0 %v1674
    %2337 = vmatpush1.msra.mxu0 %v1673
    %2338 = vmatprep.subr.mxu0 %v1678
    %2339 = vmatpush1.msra.mxu0 %v1677
    %2340 = vmatprep.subr.mxu0 %v1682
    %2341 = vmatpush1.msra.mxu0 %v1681
    %2342 = vmatprep.subr.mxu0 %v1686
    %2343 = vmatpush1.msra.mxu0 %v1685
    %2344 = vmatprep.subr.mxu0 %v1690
    %2345 = vmatpush1.msra.mxu0 %v1689
    %2346 = vmatprep.subr.mxu0 %v1694
    %2347 = vmatpush1.msra.mxu0 %v1693
    %2348 = vmatprep.subr.mxu0 %v1698
    %2349 = vmatpush1.msra.mxu0 %v1697
    %2350 = vmatprep.subr.mxu0 %v1702
    %2351 = vmatpush1.msra.mxu0 %v1701
    %2352 = vmatprep.subr.mxu0 %v1706
    %2353 = vmatpush1.msra.mxu0 %v1705
    %2354 = vmatprep.subr.mxu0 %v1710
    %2355 = vmatpush1.msra.mxu0 %v1709
    %2356 = vmatprep.subr.mxu0 %v1714
    %2357 = vmatpush1.msra.mxu0 %v1713
    %2358 = vmatprep.subr.mxu0 %v1718
    %2359 = vmatpush1.msra.mxu0 %v1717
    %2360 = vmatprep.subr.mxu0 %v1722
    %2361 = vmatpush1.msra.mxu0 %v1721
    %2362 = vmatprep.subr.mxu0 %v1726
    %2363 = vmatpush1.msra.mxu0 %v1725
    %2364 = vmatprep.subr.mxu0 %v1730
    %2365 = vmatpush1.msra.mxu0 %v1729
    %2366 = vmatprep.subr.mxu0 %v1734
    %2367 = vmatpush1.msra.mxu0 %v1733
    %2368 = vmatprep.subr.mxu0 %v1738
    %2369 = vmatpush1.msra.mxu0 %v1737
    %2370 = vmatprep.subr.mxu0 %v1742
    %2371 = vmatpush1.msra.mxu0 %v1741
    %2372 = vmatprep.subr.mxu0 %v1746
    %2373 = vmatpush1.msra.mxu0 %v1745
    %2374 = vmatprep.subr.mxu0 %v1750
    %2375 = vmatpush1.msra.mxu0 %v1749
    %2376 = vmatprep.subr.mxu0 %v1754
    %2377 = vmatpush1.msra.mxu0 %v1753
    %2378 = vmatprep.mubr.f32.mxu0 %v2313
    %2379 = vmatmul.mubr.f32.gmra.mrb[0].mxu0 %v2312
    %v2380 = vpop.f32.mrb[0].mxu0
    %v2381 = vadd.f32 %v1763, %v2380
    %v2382 = vpop.f32.mrb[0].mxu0
    %v2383 = vadd.f32 %v1767, %v2382
    %2384 = vdwg.mxu0
    %2385 = vmatprep.subr.mxu0 %v1632
    %2386 = vmatpush1.msra.mxu0 %v1631
    %2387 = vmatprep.subr.mxu0 %v1636
    %2388 = vmatpush1.msra.mxu0 %v1635
    %2389 = vmatprep.subr.mxu0 %v1640
    %2390 = vmatpush1.msra.mxu0 %v1639
    %2391 = vmatprep.subr.mxu0 %v1644
    %2392 = vmatpush1.msra.mxu0 %v1643
    %2393 = vmatprep.subr.mxu0 %v1648
    %2394 = vmatpush1.msra.mxu0 %v1647
    %2395 = vmatprep.subr.mxu0 %v1652
    %2396 = vmatpush1.msra.mxu0 %v1651
    %2397 = vmatprep.subr.mxu0 %v1656
    %2398 = vmatpush1.msra.mxu0 %v1655
    %2399 = vmatprep.subr.mxu0 %v1660
    %2400 = vmatpush1.msra.mxu0 %v1659
    %2401 = vmatprep.subr.mxu0 %v1664
    %2402 = vmatpush1.msra.mxu0 %v1663
    %2403 = vmatprep.subr.mxu0 %v1668
    %2404 = vmatpush1.msra.mxu0 %v1667
    %2405 = vmatprep.subr.mxu0 %v1672
    %2406 = vmatpush1.msra.mxu0 %v1671
    %2407 = vmatprep.subr.mxu0 %v1676
    %2408 = vmatpush1.msra.mxu0 %v1675
    %2409 = vmatprep.subr.mxu0 %v1680
    %2410 = vmatpush1.msra.mxu0 %v1679
    %2411 = vmatprep.subr.mxu0 %v1684
    %2412 = vmatpush1.msra.mxu0 %v1683
    %2413 = vmatprep.subr.mxu0 %v1688
    %2414 = vmatpush1.msra.mxu0 %v1687
    %2415 = vmatprep.subr.mxu0 %v1692
    %2416 = vmatpush1.msra.mxu0 %v1691
    %2417 = vmatprep.subr.mxu0 %v1696
    %2418 = vmatpush1.msra.mxu0 %v1695
    %2419 = vmatprep.subr.mxu0 %v1700
    %2420 = vmatpush1.msra.mxu0 %v1699
    %2421 = vmatprep.subr.mxu0 %v1704
    %2422 = vmatpush1.msra.mxu0 %v1703
    %2423 = vmatprep.subr.mxu0 %v1708
    %2424 = vmatpush1.msra.mxu0 %v1707
    %2425 = vmatprep.subr.mxu0 %v1712
    %2426 = vmatpush1.msra.mxu0 %v1711
    %2427 = vmatprep.subr.mxu0 %v1716
    %2428 = vmatpush1.msra.mxu0 %v1715
    %2429 = vmatprep.subr.mxu0 %v1720
    %2430 = vmatpush1.msra.mxu0 %v1719
    %2431 = vmatprep.subr.mxu0 %v1724
    %2432 = vmatpush1.msra.mxu0 %v1723
    %2433 = vmatprep.subr.mxu0 %v1728
    %2434 = vmatpush1.msra.mxu0 %v1727
    %2435 = vmatprep.subr.mxu0 %v1732
    %2436 = vmatpush1.msra.mxu0 %v1731
    %2437 = vmatprep.subr.mxu0 %v1736
    %2438 = vmatpush1.msra.mxu0 %v1735
    %2439 = vmatprep.subr.mxu0 %v1740
    %2440 = vmatpush1.msra.mxu0 %v1739
    %2441 = vmatprep.subr.mxu0 %v1744
    %2442 = vmatpush1.msra.mxu0 %v1743
    %2443 = vmatprep.subr.mxu0 %v1748
    %2444 = vmatpush1.msra.mxu0 %v1747
    %2445 = vmatprep.subr.mxu0 %v1752
    %2446 = vmatpush1.msra.mxu0 %v1751
    %2447 = vmatprep.subr.mxu0 %v1756
    %2448 = vmatpush1.msra.mxu0 %v1755
    %2449 = vmatprep.mubr.f32.mxu0 %v2313
    %2450 = vmatmul.mubr.f32.gmra.mrb[0].mxu0 %v2312
    %v2451 = vpop.f32.mrb[0].mxu0
    %v2452 = vadd.f32 %v1771, %v2451
    %v2453 = vpop.f32.mrb[0].mxu0
    %v2454 = vadd.f32 %v1775, %v2453
    %2455 = vdwg.mxu0
    %v2456 = vxor.u32 %v2381, 2147483648
    %v2457 = vmul.f32 %v2456, 1.442695
    %v2458 = vpow.pop %v2457
    %v2459 = vadd.f32 %v2458, 1.0
    %v2460 = vrcp.pop %v2459
    %v2461 = vmul.f32 1.0, %v2460
    %v2462 = vxor.u32 %v2383, 2147483648
    %v2463 = vmul.f32 %v2462, 1.442695
    %v2464 = vpow.pop %v2463
    %v2465 = vadd.f32 %v2464, 1.0
    %v2466 = vrcp.pop %v2465
    %v2467 = vmul.f32 1.0, %v2466
    %v2468 = vtanh.pop %v2452
    %v2469 = vxor.u32 %v2454, 2147483648
    %v2470 = vmul.f32 %v2469, 1.442695
    %v2471 = vpow.pop %v2470
    %v2472 = vadd.f32 %v2471, 1.0
    %v2473 = vrcp.pop %v2472
    %v2474 = vmul.f32 1.0, %v2473
    %v2475 = vmul.f32 %v2467, %v2308
    %v2476 = vmul.f32 %v2461, %v2468
    %v2477 = vadd.f32 %v2475, %v2476
    %v2478 = vtanh.pop %v2477
    %v2479 = vmul.f32 %v2474, %v2478
    %2480 = vst [vmem:[%s1782] sm:$0xff] %v2477
    %2481 = vst [vmem:[%s1780] sm:$0xff] %v2479
    %v2482 = vld [vmem:[%s1780] sm:$0xff]
    %v2483 = vld [vmem:[%s1782] sm:$0xff]
    %v2484 = vld [vmem:[%s1092] sm:$0xff]
    %2485 = vst [vmem:[#allocation3] sm:$0xff] %v2484
    %2486 = vst [vmem:[#allocation3 + $0x8] sm:$0xff] %v2482
    %v2487 = vld [vmem:[#allocation3] sm:$0xff]
    %v2488 = vld [vmem:[#allocation3 + $0x8] sm:$0xff]
    %2489 = vmatprep.subr.mxu0 %v1630
    %2490 = vmatpush1.msra.mxu0 %v1629
    %2491 = vmatprep.subr.mxu0 %v1634
    %2492 = vmatpush1.msra.mxu0 %v1633
    %2493 = vmatprep.subr.mxu0 %v1638
    %2494 = vmatpush1.msra.mxu0 %v1637
    %2495 = vmatprep.subr.mxu0 %v1642
    %2496 = vmatpush1.msra.mxu0 %v1641
    %2497 = vmatprep.subr.mxu0 %v1646
    %2498 = vmatpush1.msra.mxu0 %v1645
    %2499 = vmatprep.subr.mxu0 %v1650
    %2500 = vmatpush1.msra.mxu0 %v1649
    %2501 = vmatprep.subr.mxu0 %v1654
    %2502 = vmatpush1.msra.mxu0 %v1653
    %2503 = vmatprep.subr.mxu0 %v1658
    %2504 = vmatpush1.msra.mxu0 %v1657
    %2505 = vmatprep.subr.mxu0 %v1662
    %2506 = vmatpush1.msra.mxu0 %v1661
    %2507 = vmatprep.subr.mxu0 %v1666
    %2508 = vmatpush1.msra.mxu0 %v1665
    %2509 = vmatprep.subr.mxu0 %v1670
    %2510 = vmatpush1.msra.mxu0 %v1669
    %2511 = vmatprep.subr.mxu0 %v1674
    %2512 = vmatpush1.msra.mxu0 %v1673
    %2513 = vmatprep.subr.mxu0 %v1678
    %2514 = vmatpush1.msra.mxu0 %v1677
    %2515 = vmatprep.subr.mxu0 %v1682
    %2516 = vmatpush1.msra.mxu0 %v1681
    %2517 = vmatprep.subr.mxu0 %v1686
    %2518 = vmatpush1.msra.mxu0 %v1685
    %2519 = vmatprep.subr.mxu0 %v1690
    %2520 = vmatpush1.msra.mxu0 %v1689
    %2521 = vmatprep.subr.mxu0 %v1694
    %2522 = vmatpush1.msra.mxu0 %v1693
    %2523 = vmatprep.subr.mxu0 %v1698
    %2524 = vmatpush1.msra.mxu0 %v1697
    %2525 = vmatprep.subr.mxu0 %v1702
    %2526 = vmatpush1.msra.mxu0 %v1701
    %2527 = vmatprep.subr.mxu0 %v1706
    %2528 = vmatpush1.msra.mxu0 %v1705
    %2529 = vmatprep.subr.mxu0 %v1710
    %2530 = vmatpush1.msra.mxu0 %v1709
    %2531 = vmatprep.subr.mxu0 %v1714
    %2532 = vmatpush1.msra.mxu0 %v1713
    %2533 = vmatprep.subr.mxu0 %v1718
    %2534 = vmatpush1.msra.mxu0 %v1717
    %2535 = vmatprep.subr.mxu0 %v1722
    %2536 = vmatpush1.msra.mxu0 %v1721
    %2537 = vmatprep.subr.mxu0 %v1726
    %2538 = vmatpush1.msra.mxu0 %v1725
    %2539 = vmatprep.subr.mxu0 %v1730
    %2540 = vmatpush1.msra.mxu0 %v1729
    %2541 = vmatprep.subr.mxu0 %v1734
    %2542 = vmatpush1.msra.mxu0 %v1733
    %2543 = vmatprep.subr.mxu0 %v1738
    %2544 = vmatpush1.msra.mxu0 %v1737
    %2545 = vmatprep.subr.mxu0 %v1742
    %2546 = vmatpush1.msra.mxu0 %v1741
    %2547 = vmatprep.subr.mxu0 %v1746
    %2548 = vmatpush1.msra.mxu0 %v1745
    %2549 = vmatprep.subr.mxu0 %v1750
    %2550 = vmatpush1.msra.mxu0 %v1749
    %2551 = vmatprep.subr.mxu0 %v1754
    %2552 = vmatpush1.msra.mxu0 %v1753
    %2553 = vmatprep.mubr.f32.mxu0 %v2488
    %2554 = vmatmul.mubr.f32.gmra.mrb[0].mxu0 %v2487
    %v2555 = vpop.f32.mrb[0].mxu0
    %v2556 = vadd.f32 %v1763, %v2555
    %v2557 = vpop.f32.mrb[0].mxu0
    %v2558 = vadd.f32 %v1767, %v2557
    %2559 = vdwg.mxu0
    %2560 = vmatprep.subr.mxu0 %v1632
    %2561 = vmatpush1.msra.mxu0 %v1631
    %2562 = vmatprep.subr.mxu0 %v1636
    %2563 = vmatpush1.msra.mxu0 %v1635
    %2564 = vmatprep.subr.mxu0 %v1640
    %2565 = vmatpush1.msra.mxu0 %v1639
    %2566 = vmatprep.subr.mxu0 %v1644
    %2567 = vmatpush1.msra.mxu0 %v1643
    %2568 = vmatprep.subr.mxu0 %v1648
    %2569 = vmatpush1.msra.mxu0 %v1647
    %2570 = vmatprep.subr.mxu0 %v1652
    %2571 = vmatpush1.msra.mxu0 %v1651
    %2572 = vmatprep.subr.mxu0 %v1656
    %2573 = vmatpush1.msra.mxu0 %v1655
    %2574 = vmatprep.subr.mxu0 %v1660
    %2575 = vmatpush1.msra.mxu0 %v1659
    %2576 = vmatprep.subr.mxu0 %v1664
    %2577 = vmatpush1.msra.mxu0 %v1663
    %2578 = vmatprep.subr.mxu0 %v1668
    %2579 = vmatpush1.msra.mxu0 %v1667
    %2580 = vmatprep.subr.mxu0 %v1672
    %2581 = vmatpush1.msra.mxu0 %v1671
    %2582 = vmatprep.subr.mxu0 %v1676
    %2583 = vmatpush1.msra.mxu0 %v1675
    %2584 = vmatprep.subr.mxu0 %v1680
    %2585 = vmatpush1.msra.mxu0 %v1679
    %2586 = vmatprep.subr.mxu0 %v1684
    %2587 = vmatpush1.msra.mxu0 %v1683
    %2588 = vmatprep.subr.mxu0 %v1688
    %2589 = vmatpush1.msra.mxu0 %v1687
    %2590 = vmatprep.subr.mxu0 %v1692
    %2591 = vmatpush1.msra.mxu0 %v1691
    %2592 = vmatprep.subr.mxu0 %v1696
    %2593 = vmatpush1.msra.mxu0 %v1695
    %2594 = vmatprep.subr.mxu0 %v1700
    %2595 = vmatpush1.msra.mxu0 %v1699
    %2596 = vmatprep.subr.mxu0 %v1704
    %2597 = vmatpush1.msra.mxu0 %v1703
    %2598 = vmatprep.subr.mxu0 %v1708
    %2599 = vmatpush1.msra.mxu0 %v1707
    %2600 = vmatprep.subr.mxu0 %v1712
    %2601 = vmatpush1.msra.mxu0 %v1711
    %2602 = vmatprep.subr.mxu0 %v1716
    %2603 = vmatpush1.msra.mxu0 %v1715
    %2604 = vmatprep.subr.mxu0 %v1720
    %2605 = vmatpush1.msra.mxu0 %v1719
    %2606 = vmatprep.subr.mxu0 %v1724
    %2607 = vmatpush1.msra.mxu0 %v1723
    %2608 = vmatprep.subr.mxu0 %v1728
    %2609 = vmatpush1.msra.mxu0 %v1727
    %2610 = vmatprep.subr.mxu0 %v1732
    %2611 = vmatpush1.msra.mxu0 %v1731
    %2612 = vmatprep.subr.mxu0 %v1736
    %2613 = vmatpush1.msra.mxu0 %v1735
    %2614 = vmatprep.subr.mxu0 %v1740
    %2615 = vmatpush1.msra.mxu0 %v1739
    %2616 = vmatprep.subr.mxu0 %v1744
    %2617 = vmatpush1.msra.mxu0 %v1743
    %2618 = vmatprep.subr.mxu0 %v1748
    %2619 = vmatpush1.msra.mxu0 %v1747
    %2620 = vmatprep.subr.mxu0 %v1752
    %2621 = vmatpush1.msra.mxu0 %v1751
    %2622 = vmatprep.subr.mxu0 %v1756
    %2623 = vmatpush1.msra.mxu0 %v1755
    %2624 = vmatprep.mubr.f32.mxu0 %v2488
    %2625 = vmatmul.mubr.f32.gmra.mrb[0].mxu0 %v2487
    %v2626 = vpop.f32.mrb[0].mxu0
    %v2627 = vadd.f32 %v1771, %v2626
    %v2628 = vpop.f32.mrb[0].mxu0
    %v2629 = vadd.f32 %v1775, %v2628
    %2630 = vdwg.mxu0
    %v2631 = vxor.u32 %v2556, 2147483648
    %v2632 = vmul.f32 %v2631, 1.442695
    %v2633 = vpow.pop %v2632
    %v2634 = vadd.f32 %v2633, 1.0
    %v2635 = vrcp.pop %v2634
    %v2636 = vmul.f32 1.0, %v2635
    %v2637 = vxor.u32 %v2558, 2147483648
    %v2638 = vmul.f32 %v2637, 1.442695
    %v2639 = vpow.pop %v2638
    %v2640 = vadd.f32 %v2639, 1.0
    %v2641 = vrcp.pop %v2640
    %v2642 = vmul.f32 1.0, %v2641
    %v2643 = vtanh.pop %v2627
    %v2644 = vxor.u32 %v2629, 2147483648
    %v2645 = vmul.f32 %v2644, 1.442695
    %v2646 = vpow.pop %v2645
    %v2647 = vadd.f32 %v2646, 1.0
    %v2648 = vrcp.pop %v2647
    %v2649 = vmul.f32 1.0, %v2648
    %v2650 = vmul.f32 %v2642, %v2483
    %v2651 = vmul.f32 %v2636, %v2643
    %v2652 = vadd.f32 %v2650, %v2651
    %v2653 = vtanh.pop %v2652
    %v2654 = vmul.f32 %v2649, %v2653
    %2655 = vst [vmem:[%s1782] sm:$0xff] %v2652
    %2656 = vst [vmem:[%s1780] sm:$0xff] %v2654
    %v2657 = vld [vmem:[%s1780] sm:$0xff]
    %v2658 = vld [vmem:[%s1782] sm:$0xff]
    %v2659 = vld [vmem:[%s1270] sm:$0xff]
    %2660 = vst [vmem:[#allocation3] sm:$0xff] %v2659
    %2661 = vst [vmem:[#allocation3 + $0x8] sm:$0xff] %v2657
    %v2662 = vld [vmem:[#allocation3] sm:$0xff]
    %v2663 = vld [vmem:[#allocation3 + $0x8] sm:$0xff]
    %2664 = vmatprep.subr.mxu0 %v1630
    %2665 = vmatpush1.msra.mxu0 %v1629
    %2666 = vmatprep.subr.mxu0 %v1634
    %2667 = vmatpush1.msra.mxu0 %v1633
    %2668 = vmatprep.subr.mxu0 %v1638
    %2669 = vmatpush1.msra.mxu0 %v1637
    %2670 = vmatprep.subr.mxu0 %v1642
    %2671 = vmatpush1.msra.mxu0 %v1641
    %2672 = vmatprep.subr.mxu0 %v1646
    %2673 = vmatpush1.msra.mxu0 %v1645
    %2674 = vmatprep.subr.mxu0 %v1650
    %2675 = vmatpush1.msra.mxu0 %v1649
    %2676 = vmatprep.subr.mxu0 %v1654
    %2677 = vmatpush1.msra.mxu0 %v1653
    %2678 = vmatprep.subr.mxu0 %v1658
    %2679 = vmatpush1.msra.mxu0 %v1657
    %2680 = vmatprep.subr.mxu0 %v1662
    %2681 = vmatpush1.msra.mxu0 %v1661
    %2682 = vmatprep.subr.mxu0 %v1666
    %2683 = vmatpush1.msra.mxu0 %v1665
    %2684 = vmatprep.subr.mxu0 %v1670
    %2685 = vmatpush1.msra.mxu0 %v1669
    %2686 = vmatprep.subr.mxu0 %v1674
    %2687 = vmatpush1.msra.mxu0 %v1673
    %2688 = vmatprep.subr.mxu0 %v1678
    %2689 = vmatpush1.msra.mxu0 %v1677
    %2690 = vmatprep.subr.mxu0 %v1682
    %2691 = vmatpush1.msra.mxu0 %v1681
    %2692 = vmatprep.subr.mxu0 %v1686
    %2693 = vmatpush1.msra.mxu0 %v1685
    %2694 = vmatprep.subr.mxu0 %v1690
    %2695 = vmatpush1.msra.mxu0 %v1689
    %2696 = vmatprep.subr.mxu0 %v1694
    %2697 = vmatpush1.msra.mxu0 %v1693
    %2698 = vmatprep.subr.mxu0 %v1698
    %2699 = vmatpush1.msra.mxu0 %v1697
    %2700 = vmatprep.subr.mxu0 %v1702
    %2701 = vmatpush1.msra.mxu0 %v1701
    %2702 = vmatprep.subr.mxu0 %v1706
    %2703 = vmatpush1.msra.mxu0 %v1705
    %2704 = vmatprep.subr.mxu0 %v1710
    %2705 = vmatpush1.msra.mxu0 %v1709
    %2706 = vmatprep.subr.mxu0 %v1714
    %2707 = vmatpush1.msra.mxu0 %v1713
    %2708 = vmatprep.subr.mxu0 %v1718
    %2709 = vmatpush1.msra.mxu0 %v1717
    %2710 = vmatprep.subr.mxu0 %v1722
    %2711 = vmatpush1.msra.mxu0 %v1721
    %2712 = vmatprep.subr.mxu0 %v1726
    %2713 = vmatpush1.msra.mxu0 %v1725
    %2714 = vmatprep.subr.mxu0 %v1730
    %2715 = vmatpush1.msra.mxu0 %v1729
    %2716 = vmatprep.subr.mxu0 %v1734
    %2717 = vmatpush1.msra.mxu0 %v1733
    %2718 = vmatprep.subr.mxu0 %v1738
    %2719 = vmatpush1.msra.mxu0 %v1737
    %2720 = vmatprep.subr.mxu0 %v1742
    %2721 = vmatpush1.msra.mxu0 %v1741
    %2722 = vmatprep.subr.mxu0 %v1746
    %2723 = vmatpush1.msra.mxu0 %v1745
    %2724 = vmatprep.subr.mxu0 %v1750
    %2725 = vmatpush1.msra.mxu0 %v1749
    %2726 = vmatprep.subr.mxu0 %v1754
    %2727 = vmatpush1.msra.mxu0 %v1753
    %2728 = vmatprep.mubr.f32.mxu0 %v2663
    %2729 = vmatmul.mubr.f32.gmra.mrb[0].mxu0 %v2662
    %v2730 = vpop.f32.mrb[0].mxu0
    %v2731 = vadd.f32 %v1763, %v2730
    %v2732 = vpop.f32.mrb[0].mxu0
    %v2733 = vadd.f32 %v1767, %v2732
    %2734 = vdwg.mxu0
    %2735 = vmatprep.subr.mxu0 %v1632
    %2736 = vmatpush1.msra.mxu0 %v1631
    %2737 = vmatprep.subr.mxu0 %v1636
    %2738 = vmatpush1.msra.mxu0 %v1635
    %2739 = vmatprep.subr.mxu0 %v1640
    %2740 = vmatpush1.msra.mxu0 %v1639
    %2741 = vmatprep.subr.mxu0 %v1644
    %2742 = vmatpush1.msra.mxu0 %v1643
    %2743 = vmatprep.subr.mxu0 %v1648
    %2744 = vmatpush1.msra.mxu0 %v1647
    %2745 = vmatprep.subr.mxu0 %v1652
    %2746 = vmatpush1.msra.mxu0 %v1651
    %2747 = vmatprep.subr.mxu0 %v1656
    %2748 = vmatpush1.msra.mxu0 %v1655
    %2749 = vmatprep.subr.mxu0 %v1660
    %2750 = vmatpush1.msra.mxu0 %v1659
    %2751 = vmatprep.subr.mxu0 %v1664
    %2752 = vmatpush1.msra.mxu0 %v1663
    %2753 = vmatprep.subr.mxu0 %v1668
    %2754 = vmatpush1.msra.mxu0 %v1667
    %2755 = vmatprep.subr.mxu0 %v1672
    %2756 = vmatpush1.msra.mxu0 %v1671
    %2757 = vmatprep.subr.mxu0 %v1676
    %2758 = vmatpush1.msra.mxu0 %v1675
    %2759 = vmatprep.subr.mxu0 %v1680
    %2760 = vmatpush1.msra.mxu0 %v1679
    %2761 = vmatprep.subr.mxu0 %v1684
    %2762 = vmatpush1.msra.mxu0 %v1683
    %2763 = vmatprep.subr.mxu0 %v1688
    %2764 = vmatpush1.msra.mxu0 %v1687
    %2765 = vmatprep.subr.mxu0 %v1692
    %2766 = vmatpush1.msra.mxu0 %v1691
    %2767 = vmatprep.subr.mxu0 %v1696
    %2768 = vmatpush1.msra.mxu0 %v1695
    %2769 = vmatprep.subr.mxu0 %v1700
    %2770 = vmatpush1.msra.mxu0 %v1699
    %2771 = vmatprep.subr.mxu0 %v1704
    %2772 = vmatpush1.msra.mxu0 %v1703
    %2773 = vmatprep.subr.mxu0 %v1708
    %2774 = vmatpush1.msra.mxu0 %v1707
    %2775 = vmatprep.subr.mxu0 %v1712
    %2776 = vmatpush1.msra.mxu0 %v1711
    %2777 = vmatprep.subr.mxu0 %v1716
    %2778 = vmatpush1.msra.mxu0 %v1715
    %2779 = vmatprep.subr.mxu0 %v1720
    %2780 = vmatpush1.msra.mxu0 %v1719
    %2781 = vmatprep.subr.mxu0 %v1724
    %2782 = vmatpush1.msra.mxu0 %v1723
    %2783 = vmatprep.subr.mxu0 %v1728
    %2784 = vmatpush1.msra.mxu0 %v1727
    %2785 = vmatprep.subr.mxu0 %v1732
    %2786 = vmatpush1.msra.mxu0 %v1731
    %2787 = vmatprep.subr.mxu0 %v1736
    %2788 = vmatpush1.msra.mxu0 %v1735
    %2789 = vmatprep.subr.mxu0 %v1740
    %2790 = vmatpush1.msra.mxu0 %v1739
    %2791 = vmatprep.subr.mxu0 %v1744
    %2792 = vmatpush1.msra.mxu0 %v1743
    %2793 = vmatprep.subr.mxu0 %v1748
    %2794 = vmatpush1.msra.mxu0 %v1747
    %2795 = vmatprep.subr.mxu0 %v1752
    %2796 = vmatpush1.msra.mxu0 %v1751
    %2797 = vmatprep.subr.mxu0 %v1756
    %2798 = vmatpush1.msra.mxu0 %v1755
    %2799 = vmatprep.mubr.f32.mxu0 %v2663
    %2800 = vmatmul.mubr.f32.gmra.mrb[0].mxu0 %v2662
    %v2801 = vpop.f32.mrb[0].mxu0
    %v2802 = vadd.f32 %v1771, %v2801
    %v2803 = vpop.f32.mrb[0].mxu0
    %v2804 = vadd.f32 %v1775, %v2803
    %2805 = vdwg.mxu0
    %v2806 = vxor.u32 %v2731, 2147483648
    %v2807 = vmul.f32 %v2806, 1.442695
    %v2808 = vpow.pop %v2807
    %v2809 = vadd.f32 %v2808, 1.0
    %v2810 = vrcp.pop %v2809
    %v2811 = vmul.f32 1.0, %v2810
    %v2812 = vxor.u32 %v2733, 2147483648
    %v2813 = vmul.f32 %v2812, 1.442695
    %v2814 = vpow.pop %v2813
    %v2815 = vadd.f32 %v2814, 1.0
    %v2816 = vrcp.pop %v2815
    %v2817 = vmul.f32 1.0, %v2816
    %v2818 = vtanh.pop %v2802
    %v2819 = vxor.u32 %v2804, 2147483648
    %v2820 = vmul.f32 %v2819, 1.442695
    %v2821 = vpow.pop %v2820
    %v2822 = vadd.f32 %v2821, 1.0
    %v2823 = vrcp.pop %v2822
    %v2824 = vmul.f32 1.0, %v2823
    %v2825 = vmul.f32 %v2817, %v2658
    %v2826 = vmul.f32 %v2811, %v2818
    %v2827 = vadd.f32 %v2825, %v2826
    %v2828 = vtanh.pop %v2827
    %v2829 = vmul.f32 %v2824, %v2828
    %2830 = vst [vmem:[%s1782] sm:$0xff] %v2827
    %2831 = vst [vmem:[%s1780] sm:$0xff] %v2829
    %v2832 = vld [vmem:[%s1780] sm:$0xff]
    %v2833 = vld [vmem:[%s1782] sm:$0xff]
    %v2834 = vld [vmem:[%s1448] sm:$0xff]
    %2835 = vst [vmem:[#allocation3] sm:$0xff] %v2834
    %2836 = vst [vmem:[#allocation3 + $0x8] sm:$0xff] %v2832
    %v2837 = vld [vmem:[#allocation3] sm:$0xff]
    %v2838 = vld [vmem:[#allocation3 + $0x8] sm:$0xff]
    %2839 = vmatprep.subr.mxu0 %v1630
    %2840 = vmatpush1.msra.mxu0 %v1629
    %2841 = vmatprep.subr.mxu0 %v1634
    %2842 = vmatpush1.msra.mxu0 %v1633
    %2843 = vmatprep.subr.mxu0 %v1638
    %2844 = vmatpush1.msra.mxu0 %v1637
    %2845 = vmatprep.subr.mxu0 %v1642
    %2846 = vmatpush1.msra.mxu0 %v1641
    %2847 = vmatprep.subr.mxu0 %v1646
    %2848 = vmatpush1.msra.mxu0 %v1645
    %2849 = vmatprep.subr.mxu0 %v1650
    %2850 = vmatpush1.msra.mxu0 %v1649
    %2851 = vmatprep.subr.mxu0 %v1654
    %2852 = vmatpush1.msra.mxu0 %v1653
    %2853 = vmatprep.subr.mxu0 %v1658
    %2854 = vmatpush1.msra.mxu0 %v1657
    %2855 = vmatprep.subr.mxu0 %v1662
    %2856 = vmatpush1.msra.mxu0 %v1661
    %2857 = vmatprep.subr.mxu0 %v1666
    %2858 = vmatpush1.msra.mxu0 %v1665
    %2859 = vmatprep.subr.mxu0 %v1670
    %2860 = vmatpush1.msra.mxu0 %v1669
    %2861 = vmatprep.subr.mxu0 %v1674
    %2862 = vmatpush1.msra.mxu0 %v1673
    %2863 = vmatprep.subr.mxu0 %v1678
    %2864 = vmatpush1.msra.mxu0 %v1677
    %2865 = vmatprep.subr.mxu0 %v1682
    %2866 = vmatpush1.msra.mxu0 %v1681
    %2867 = vmatprep.subr.mxu0 %v1686
    %2868 = vmatpush1.msra.mxu0 %v1685
    %2869 = vmatprep.subr.mxu0 %v1690
    %2870 = vmatpush1.msra.mxu0 %v1689
    %2871 = vmatprep.subr.mxu0 %v1694
    %2872 = vmatpush1.msra.mxu0 %v1693
    %2873 = vmatprep.subr.mxu0 %v1698
    %2874 = vmatpush1.msra.mxu0 %v1697
    %2875 = vmatprep.subr.mxu0 %v1702
    %2876 = vmatpush1.msra.mxu0 %v1701
    %2877 = vmatprep.subr.mxu0 %v1706
    %2878 = vmatpush1.msra.mxu0 %v1705
    %2879 = vmatprep.subr.mxu0 %v1710
    %2880 = vmatpush1.msra.mxu0 %v1709
    %2881 = vmatprep.subr.mxu0 %v1714
    %2882 = vmatpush1.msra.mxu0 %v1713
    %2883 = vmatprep.subr.mxu0 %v1718
    %2884 = vmatpush1.msra.mxu0 %v1717
    %2885 = vmatprep.subr.mxu0 %v1722
    %2886 = vmatpush1.msra.mxu0 %v1721
    %2887 = vmatprep.subr.mxu0 %v1726
    %2888 = vmatpush1.msra.mxu0 %v1725
    %2889 = vmatprep.subr.mxu0 %v1730
    %2890 = vmatpush1.msra.mxu0 %v1729
    %2891 = vmatprep.subr.mxu0 %v1734
    %2892 = vmatpush1.msra.mxu0 %v1733
    %2893 = vmatprep.subr.mxu0 %v1738
    %2894 = vmatpush1.msra.mxu0 %v1737
    %2895 = vmatprep.subr.mxu0 %v1742
    %2896 = vmatpush1.msra.mxu0 %v1741
    %2897 = vmatprep.subr.mxu0 %v1746
    %2898 = vmatpush1.msra.mxu0 %v1745
    %2899 = vmatprep.subr.mxu0 %v1750
    %2900 = vmatpush1.msra.mxu0 %v1749
    %2901 = vmatprep.subr.mxu0 %v1754
    %2902 = vmatpush1.msra.mxu0 %v1753
    %2903 = vmatprep.mubr.f32.mxu0 %v2838
    %2904 = vmatmul.mubr.f32.gmra.mrb[0].mxu0 %v2837
    %v2905 = vpop.f32.mrb[0].mxu0
    %v2906 = vadd.f32 %v1763, %v2905
    %v2907 = vpop.f32.mrb[0].mxu0
    %v2908 = vadd.f32 %v1767, %v2907
    %2909 = vdwg.mxu0
    %2910 = vmatprep.subr.mxu0 %v1632
    %2911 = vmatpush1.msra.mxu0 %v1631
    %2912 = vmatprep.subr.mxu0 %v1636
    %2913 = vmatpush1.msra.mxu0 %v1635
    %2914 = vmatprep.subr.mxu0 %v1640
    %2915 = vmatpush1.msra.mxu0 %v1639
    %2916 = vmatprep.subr.mxu0 %v1644
    %2917 = vmatpush1.msra.mxu0 %v1643
    %2918 = vmatprep.subr.mxu0 %v1648
    %2919 = vmatpush1.msra.mxu0 %v1647
    %2920 = vmatprep.subr.mxu0 %v1652
    %2921 = vmatpush1.msra.mxu0 %v1651
    %2922 = vmatprep.subr.mxu0 %v1656
    %2923 = vmatpush1.msra.mxu0 %v1655
    %2924 = vmatprep.subr.mxu0 %v1660
    %2925 = vmatpush1.msra.mxu0 %v1659
    %2926 = vmatprep.subr.mxu0 %v1664
    %2927 = vmatpush1.msra.mxu0 %v1663
    %2928 = vmatprep.subr.mxu0 %v1668
    %2929 = vmatpush1.msra.mxu0 %v1667
    %2930 = vmatprep.subr.mxu0 %v1672
    %2931 = vmatpush1.msra.mxu0 %v1671
    %2932 = vmatprep.subr.mxu0 %v1676
    %2933 = vmatpush1.msra.mxu0 %v1675
    %2934 = vmatprep.subr.mxu0 %v1680
    %2935 = vmatpush1.msra.mxu0 %v1679
    %2936 = vmatprep.subr.mxu0 %v1684
    %2937 = vmatpush1.msra.mxu0 %v1683
    %2938 = vmatprep.subr.mxu0 %v1688
    %2939 = vmatpush1.msra.mxu0 %v1687
    %2940 = vmatprep.subr.mxu0 %v1692
    %2941 = vmatpush1.msra.mxu0 %v1691
    %2942 = vmatprep.subr.mxu0 %v1696
    %2943 = vmatpush1.msra.mxu0 %v1695
    %2944 = vmatprep.subr.mxu0 %v1700
    %2945 = vmatpush1.msra.mxu0 %v1699
    %2946 = vmatprep.subr.mxu0 %v1704
    %2947 = vmatpush1.msra.mxu0 %v1703
    %2948 = vmatprep.subr.mxu0 %v1708
    %2949 = vmatpush1.msra.mxu0 %v1707
    %2950 = vmatprep.subr.mxu0 %v1712
    %2951 = vmatpush1.msra.mxu0 %v1711
    %2952 = vmatprep.subr.mxu0 %v1716
    %2953 = vmatpush1.msra.mxu0 %v1715
    %2954 = vmatprep.subr.mxu0 %v1720
    %2955 = vmatpush1.msra.mxu0 %v1719
    %2956 = vmatprep.subr.mxu0 %v1724
    %2957 = vmatpush1.msra.mxu0 %v1723
    %2958 = vmatprep.subr.mxu0 %v1728
    %2959 = vmatpush1.msra.mxu0 %v1727
    %2960 = vmatprep.subr.mxu0 %v1732
    %2961 = vmatpush1.msra.mxu0 %v1731
    %2962 = vmatprep.subr.mxu0 %v1736
    %2963 = vmatpush1.msra.mxu0 %v1735
    %2964 = vmatprep.subr.mxu0 %v1740
    %2965 = vmatpush1.msra.mxu0 %v1739
    %2966 = vmatprep.subr.mxu0 %v1744
    %2967 = vmatpush1.msra.mxu0 %v1743
    %2968 = vmatprep.subr.mxu0 %v1748
    %2969 = vmatpush1.msra.mxu0 %v1747
    %2970 = vmatprep.subr.mxu0 %v1752
    %2971 = vmatpush1.msra.mxu0 %v1751
    %2972 = vmatprep.subr.mxu0 %v1756
    %2973 = vmatpush1.msra.mxu0 %v1755
    %2974 = vmatprep.mubr.f32.mxu0 %v2838
    %2975 = vmatmul.mubr.f32.gmra.mrb[0].mxu0 %v2837
    %v2976 = vpop.f32.mrb[0].mxu0
    %v2977 = vadd.f32 %v1771, %v2976
    %v2978 = vpop.f32.mrb[0].mxu0
    %v2979 = vadd.f32 %v1775, %v2978
    %2980 = vdwg.mxu0
    %v2981 = vxor.u32 %v2906, 2147483648
    %v2982 = vmul.f32 %v2981, 1.442695
    %v2983 = vpow.pop %v2982
    %v2984 = vadd.f32 %v2983, 1.0
    %v2985 = vrcp.pop %v2984
    %v2986 = vmul.f32 1.0, %v2985
    %v2987 = vxor.u32 %v2908, 2147483648
    %v2988 = vmul.f32 %v2987, 1.442695
    %v2989 = vpow.pop %v2988
    %v2990 = vadd.f32 %v2989, 1.0
    %v2991 = vrcp.pop %v2990
    %v2992 = vmul.f32 1.0, %v2991
    %v2993 = vtanh.pop %v2977
    %v2994 = vxor.u32 %v2979, 2147483648
    %v2995 = vmul.f32 %v2994, 1.442695
    %v2996 = vpow.pop %v2995
    %v2997 = vadd.f32 %v2996, 1.0
    %v2998 = vrcp.pop %v2997
    %v2999 = vmul.f32 1.0, %v2998
    %v3000 = vmul.f32 %v2992, %v2833
    %v3001 = vmul.f32 %v2986, %v2993
    %v3002 = vadd.f32 %v3000, %v3001
    %v3003 = vtanh.pop %v3002
    %v3004 = vmul.f32 %v2999, %v3003
    %3005 = vst [vmem:[%s1782] sm:$0xff] %v3002
    %3006 = vst [vmem:[%s1780] sm:$0xff] %v3004
    %v3007 = vld [vmem:[%s1780] sm:$0xff]
    %v3008 = vld [vmem:[%s1782] sm:$0xff]
    %v3009 = vld [vmem:[%s1626] sm:$0xff]
    %3010 = vst [vmem:[#allocation3] sm:$0xff] %v3009
    %3011 = vst [vmem:[#allocation3 + $0x8] sm:$0xff] %v3007
    %v3012 = vld [vmem:[#allocation3] sm:$0xff]
    %v3013 = vld [vmem:[#allocation3 + $0x8] sm:$0xff]
    %3014 = vmatprep.subr.mxu0 %v1630
    %3015 = vmatpush1.msra.mxu0 %v1629
    %3016 = vmatprep.subr.mxu0 %v1634
    %3017 = vmatpush1.msra.mxu0 %v1633
    %3018 = vmatprep.subr.mxu0 %v1638
    %3019 = vmatpush1.msra.mxu0 %v1637
    %3020 = vmatprep.subr.mxu0 %v1642
    %3021 = vmatpush1.msra.mxu0 %v1641
    %3022 = vmatprep.subr.mxu0 %v1646
    %3023 = vmatpush1.msra.mxu0 %v1645
    %3024 = vmatprep.subr.mxu0 %v1650
    %3025 = vmatpush1.msra.mxu0 %v1649
    %3026 = vmatprep.subr.mxu0 %v1654
    %3027 = vmatpush1.msra.mxu0 %v1653
    %3028 = vmatprep.subr.mxu0 %v1658
    %3029 = vmatpush1.msra.mxu0 %v1657
    %3030 = vmatprep.subr.mxu0 %v1662
    %3031 = vmatpush1.msra.mxu0 %v1661
    %3032 = vmatprep.subr.mxu0 %v1666
    %3033 = vmatpush1.msra.mxu0 %v1665
    %3034 = vmatprep.subr.mxu0 %v1670
    %3035 = vmatpush1.msra.mxu0 %v1669
    %3036 = vmatprep.subr.mxu0 %v1674
    %3037 = vmatpush1.msra.mxu0 %v1673
    %3038 = vmatprep.subr.mxu0 %v1678
    %3039 = vmatpush1.msra.mxu0 %v1677
    %3040 = vmatprep.subr.mxu0 %v1682
    %3041 = vmatpush1.msra.mxu0 %v1681
    %3042 = vmatprep.subr.mxu0 %v1686
    %3043 = vmatpush1.msra.mxu0 %v1685
    %3044 = vmatprep.subr.mxu0 %v1690
    %3045 = vmatpush1.msra.mxu0 %v1689
    %3046 = vmatprep.subr.mxu0 %v1694
    %3047 = vmatpush1.msra.mxu0 %v1693
    %3048 = vmatprep.subr.mxu0 %v1698
    %3049 = vmatpush1.msra.mxu0 %v1697
    %3050 = vmatprep.subr.mxu0 %v1702
    %3051 = vmatpush1.msra.mxu0 %v1701
    %3052 = vmatprep.subr.mxu0 %v1706
    %3053 = vmatpush1.msra.mxu0 %v1705
    %3054 = vmatprep.subr.mxu0 %v1710
    %3055 = vmatpush1.msra.mxu0 %v1709
    %3056 = vmatprep.subr.mxu0 %v1714
    %3057 = vmatpush1.msra.mxu0 %v1713
    %3058 = vmatprep.subr.mxu0 %v1718
    %3059 = vmatpush1.msra.mxu0 %v1717
    %3060 = vmatprep.subr.mxu0 %v1722
    %3061 = vmatpush1.msra.mxu0 %v1721
    %3062 = vmatprep.subr.mxu0 %v1726
    %3063 = vmatpush1.msra.mxu0 %v1725
    %3064 = vmatprep.subr.mxu0 %v1730
    %3065 = vmatpush1.msra.mxu0 %v1729
    %3066 = vmatprep.subr.mxu0 %v1734
    %3067 = vmatpush1.msra.mxu0 %v1733
    %3068 = vmatprep.subr.mxu0 %v1738
    %3069 = vmatpush1.msra.mxu0 %v1737
    %3070 = vmatprep.subr.mxu0 %v1742
    %3071 = vmatpush1.msra.mxu0 %v1741
    %3072 = vmatprep.subr.mxu0 %v1746
    %3073 = vmatpush1.msra.mxu0 %v1745
    %3074 = vmatprep.subr.mxu0 %v1750
    %3075 = vmatpush1.msra.mxu0 %v1749
    %3076 = vmatprep.subr.mxu0 %v1754
    %3077 = vmatpush1.msra.mxu0 %v1753
    %3078 = vmatprep.mubr.f32.mxu0 %v3013
    %3079 = vmatmul.mubr.f32.gmra.mrb[0].mxu0 %v3012
    %v3080 = vpop.f32.mrb[0].mxu0
    %v3081 = vadd.f32 %v1763, %v3080
    %v3082 = vpop.f32.mrb[0].mxu0
    %v3083 = vadd.f32 %v1767, %v3082
    %3084 = vdwg.mxu0
    %3085 = vmatprep.subr.mxu0 %v1632
    %3086 = vmatpush1.msra.mxu0 %v1631
    %3087 = vmatprep.subr.mxu0 %v1636
    %3088 = vmatpush1.msra.mxu0 %v1635
    %3089 = vmatprep.subr.mxu0 %v1640
    %3090 = vmatpush1.msra.mxu0 %v1639
    %3091 = vmatprep.subr.mxu0 %v1644
    %3092 = vmatpush1.msra.mxu0 %v1643
    %3093 = vmatprep.subr.mxu0 %v1648
    %3094 = vmatpush1.msra.mxu0 %v1647
    %3095 = vmatprep.subr.mxu0 %v1652
    %3096 = vmatpush1.msra.mxu0 %v1651
    %3097 = vmatprep.subr.mxu0 %v1656
    %3098 = vmatpush1.msra.mxu0 %v1655
    %3099 = vmatprep.subr.mxu0 %v1660
    %3100 = vmatpush1.msra.mxu0 %v1659
    %3101 = vmatprep.subr.mxu0 %v1664
    %3102 = vmatpush1.msra.mxu0 %v1663
    %3103 = vmatprep.subr.mxu0 %v1668
    %3104 = vmatpush1.msra.mxu0 %v1667
    %3105 = vmatprep.subr.mxu0 %v1672
    %3106 = vmatpush1.msra.mxu0 %v1671
    %3107 = vmatprep.subr.mxu0 %v1676
    %3108 = vmatpush1.msra.mxu0 %v1675
    %3109 = vmatprep.subr.mxu0 %v1680
    %3110 = vmatpush1.msra.mxu0 %v1679
    %3111 = vmatprep.subr.mxu0 %v1684
    %3112 = vmatpush1.msra.mxu0 %v1683
    %3113 = vmatprep.subr.mxu0 %v1688
    %3114 = vmatpush1.msra.mxu0 %v1687
    %3115 = vmatprep.subr.mxu0 %v1692
    %3116 = vmatpush1.msra.mxu0 %v1691
    %3117 = vmatprep.subr.mxu0 %v1696
    %3118 = vmatpush1.msra.mxu0 %v1695
    %3119 = vmatprep.subr.mxu0 %v1700
    %3120 = vmatpush1.msra.mxu0 %v1699
    %3121 = vmatprep.subr.mxu0 %v1704
    %3122 = vmatpush1.msra.mxu0 %v1703
    %3123 = vmatprep.subr.mxu0 %v1708
    %3124 = vmatpush1.msra.mxu0 %v1707
    %3125 = vmatprep.subr.mxu0 %v1712
    %3126 = vmatpush1.msra.mxu0 %v1711
    %3127 = vmatprep.subr.mxu0 %v1716
    %3128 = vmatpush1.msra.mxu0 %v1715
    %3129 = vmatprep.subr.mxu0 %v1720
    %3130 = vmatpush1.msra.mxu0 %v1719
    %3131 = vmatprep.subr.mxu0 %v1724
    %3132 = vmatpush1.msra.mxu0 %v1723
    %3133 = vmatprep.subr.mxu0 %v1728
    %3134 = vmatpush1.msra.mxu0 %v1727
    %3135 = vmatprep.subr.mxu0 %v1732
    %3136 = vmatpush1.msra.mxu0 %v1731
    %3137 = vmatprep.subr.mxu0 %v1736
    %3138 = vmatpush1.msra.mxu0 %v1735
    %3139 = vmatprep.subr.mxu0 %v1740
    %3140 = vmatpush1.msra.mxu0 %v1739
    %3141 = vmatprep.subr.mxu0 %v1744
    %3142 = vmatpush1.msra.mxu0 %v1743
    %3143 = vmatprep.subr.mxu0 %v1748
    %3144 = vmatpush1.msra.mxu0 %v1747
    %3145 = vmatprep.subr.mxu0 %v1752
    %3146 = vmatpush1.msra.mxu0 %v1751
    %3147 = vmatprep.subr.mxu0 %v1756
    %3148 = vmatpush1.msra.mxu0 %v1755
    %3149 = vmatprep.mubr.f32.mxu0 %v3013
    %3150 = vmatmul.mubr.f32.gmra.mrb[0].mxu0 %v3012
    %v3151 = vpop.f32.mrb[0].mxu0
    %v3152 = vadd.f32 %v1771, %v3151
    %v3153 = vpop.f32.mrb[0].mxu0
    %v3154 = vadd.f32 %v1775, %v3153
    %3155 = vdwg.mxu0
    %v3156 = vxor.u32 %v3081, 2147483648
    %v3157 = vmul.f32 %v3156, 1.442695
    %v3158 = vpow.pop %v3157
    %v3159 = vadd.f32 %v3158, 1.0
    %v3160 = vrcp.pop %v3159
    %v3161 = vmul.f32 1.0, %v3160
    %v3162 = vxor.u32 %v3083, 2147483648
    %v3163 = vmul.f32 %v3162, 1.442695
    %v3164 = vpow.pop %v3163
    %v3165 = vadd.f32 %v3164, 1.0
    %v3166 = vrcp.pop %v3165
    %v3167 = vmul.f32 1.0, %v3166
    %v3168 = vtanh.pop %v3152
    %v3169 = vxor.u32 %v3154, 2147483648
    %v3170 = vmul.f32 %v3169, 1.442695
    %v3171 = vpow.pop %v3170
    %v3172 = vadd.f32 %v3171, 1.0
    %v3173 = vrcp.pop %v3172
    %v3174 = vmul.f32 1.0, %v3173
    %v3175 = vmul.f32 %v3167, %v3008
    %v3176 = vmul.f32 %v3161, %v3168
    %v3177 = vadd.f32 %v3175, %v3176
    %v3178 = vtanh.pop %v3177
    %v3179 = vmul.f32 %v3174, %v3178
    %3180 = vst [vmem:[%s1782] sm:$0xff] %v3177
    %3181 = vst [vmem:[%s1780] sm:$0xff] %v3179
    // Predicated region
    $region34: #{lstm_classifier_forward.1} parent=1 // pred_check
      %p3182 = pneg %p48
    $region35: #{lstm_classifier_forward.1} parent=1 // pred_check_branch
      %3184 = sbr.rel (%p3182) target = $region37
    $region36: #{lstm_classifier_forward.1} parent=1 // pred_region
      %v3185 = vld [vmem:[%s1780] sm:$0xff]
      %v3186 = vld [vmem:[#allocation8] sm:$0xff]
      %v3187 = vld [vmem:[#allocation8 + $0x8] sm:$0xff]
      %v3188 = vld [vmem:[#allocation8 + $0x10] sm:$0xff]
      %v3189 = vld [vmem:[#allocation8 + $0x18] sm:$0xff]
      %v3190 = vld [vmem:[#allocation8 + $0x20] sm:$0xff]
      %v3191 = vld [vmem:[#allocation8 + $0x28] sm:$0xff]
      %v3192 = vld [vmem:[#allocation8 + $0x30] sm:$0xff]
      %v3193 = vld [vmem:[#allocation8 + $0x38] sm:$0xff]
      %v3194 = vld [vmem:[#allocation8 + $0x40] sm:$0xff]
      %v3195 = vld [vmem:[#allocation8 + $0x48] sm:$0xff]
      %v3196 = vld [vmem:[#allocation8 + $0x50] sm:$0xff]
      %v3197 = vld [vmem:[#allocation8 + $0x58] sm:$0xff]
      %v3198 = vld [vmem:[#allocation8 + $0x60] sm:$0xff]
      %v3199 = vld [vmem:[#allocation8 + $0x68] sm:$0xff]
      %v3200 = vld [vmem:[#allocation8 + $0x70] sm:$0xff]
      %v3201 = vld [vmem:[#allocation8 + $0x78] sm:$0xff]
      %v3202 = vld [vmem:[%s4] sm:$0x1]
      %v3204 = vlaneseq
      %v3205 = vshrl.u32 %v3204, 7
      %v3206 = vsub.s32 0, %v3205
      %v3207 = vrot.slane %v3202, %v3206
      %3209 = vmatprep.subr.mxu0 0.0
      %3210 = vmatpush1.msra.mxu0 %v3186
      %3211 = vmatprep.subr.mxu0 0.0
      %3212 = vmatpush1.msra.mxu0 %v3187
      %3213 = vmatprep.subr.mxu0 0.0
      %3214 = vmatpush1.msra.mxu0 %v3188
      %3215 = vmatprep.subr.mxu0 0.0
      %3216 = vmatpush1.msra.mxu0 %v3189
      %3217 = vmatprep.subr.mxu0 0.0
      %3218 = vmatpush1.msra.mxu0 %v3190
      %3219 = vmatprep.subr.mxu0 0.0
      %3220 = vmatpush1.msra.mxu0 %v3191
      %3221 = vmatprep.subr.mxu0 0.0
      %3222 = vmatpush1.msra.mxu0 %v3192
      %3223 = vmatprep.subr.mxu0 0.0
      %3224 = vmatpush1.msra.mxu0 %v3193
      %3225 = vmatprep.subr.mxu0 0.0
      %3226 = vmatpush1.msra.mxu0 %v3194
      %3227 = vmatprep.subr.mxu0 0.0
      %3228 = vmatpush1.msra.mxu0 %v3195
      %3229 = vmatprep.subr.mxu0 0.0
      %3230 = vmatpush1.msra.mxu0 %v3196
      %3231 = vmatprep.subr.mxu0 0.0
      %3232 = vmatpush1.msra.mxu0 %v3197
      %3233 = vmatprep.subr.mxu0 0.0
      %3234 = vmatpush1.msra.mxu0 %v3198
      %3235 = vmatprep.subr.mxu0 0.0
      %3236 = vmatpush1.msra.mxu0 %v3199
      %3237 = vmatprep.subr.mxu0 0.0
      %3238 = vmatpush1.msra.mxu0 %v3200
      %3239 = vmatprep.subr.mxu0 0.0
      %3240 = vmatpush1.msra.mxu0 %v3201
      %3241 = vmatprep.subr.mxu0 0.0
      %3242 = vmatpush1.msra.mxu0 0.0
      %3243 = vmatprep.subr.mxu0 0.0
      %3244 = vmatpush1.msra.mxu0 0.0
      %3245 = vmatprep.subr.mxu0 0.0
      %3246 = vmatpush1.msra.mxu0 0.0
      %3247 = vmatprep.subr.mxu0 0.0
      %3248 = vmatpush1.msra.mxu0 0.0
      %3249 = vmatprep.subr.mxu0 0.0
      %3250 = vmatpush1.msra.mxu0 0.0
      %3251 = vmatprep.subr.mxu0 0.0
      %3252 = vmatpush1.msra.mxu0 0.0
      %3253 = vmatprep.subr.mxu0 0.0
      %3254 = vmatpush1.msra.mxu0 0.0
      %3255 = vmatprep.subr.mxu0 0.0
      %3256 = vmatpush1.msra.mxu0 0.0
      %3257 = vmatprep.subr.mxu0 0.0
      %3258 = vmatpush1.msra.mxu0 0.0
      %3259 = vmatprep.subr.mxu0 0.0
      %3260 = vmatpush1.msra.mxu0 0.0
      %3261 = vmatprep.subr.mxu0 0.0
      %3262 = vmatpush1.msra.mxu0 0.0
      %3263 = vmatprep.subr.mxu0 0.0
      %3264 = vmatpush1.msra.mxu0 0.0
      %3265 = vmatprep.subr.mxu0 0.0
      %3266 = vmatpush1.msra.mxu0 0.0
      %3267 = vmatprep.subr.mxu0 0.0
      %3268 = vmatpush1.msra.mxu0 0.0
      %3269 = vmatprep.subr.mxu0 0.0
      %3270 = vmatpush1.msra.mxu0 0.0
      %3271 = vmatprep.subr.mxu0 0.0
      %3272 = vmatpush1.msra.mxu0 0.0
      %3273 = vmatprep.mubr.f32.mxu0 0.0
      %3274 = vmatmul.mubr.f32.gmra.mrb[0].mxu0 %v3185
      %v3275 = vpop.f32.mrb[0].mxu0
      %v3276 = vadd.f32 %v3207, %v3275
      %v3277 = vpop.f32.mrb[0].mxu0
      %3278 = vdwg.mxu0
      %3279 = vst [vmem:[%s5] sm:$0xff] %v3276
    $region37: #{lstm_classifier_forward.1} parent=1 // pred_fallthru
      _
    // Predicated region
    $region38: #{lstm_classifier_forward.1} parent=1 // pred_check
      _
    $region39: #{lstm_classifier_forward.1} parent=1 // pred_check_branch
      %3281 = sbr.rel (0) target = $region41
    $region40: #{lstm_classifier_forward.1} parent=1 // pred_region
      _
    $region41: #{lstm_classifier_forward.1} parent=1 // pred_fallthru
      _
    // Predicated region
    $region42: #{lstm_classifier_forward.1} parent=1 // pred_check
      _
    $region43: #{lstm_classifier_forward.1} parent=1 // pred_check_branch
      %3283 = sbr.rel (0) target = $region45
    $region44: #{lstm_classifier_forward.1} parent=1 // pred_region
      _
    $region45: #{lstm_classifier_forward.1} parent=1 // pred_fallthru
      _
    %3284 = vsyncpa [#allocation7], 1
    %3285 = vsyncpa [#allocation9], 1

</llo_original>
